<compile_context>
chip_gen: v6e
topology: v6e:2x2x1
jax: 0.10.0
libtpu: 0.0.40
codegen_flags: <defaults>
</compile_context>

<pallas_src>
import functools
import math

import jax
import jax.numpy as jnp
from jax import lax
from jax.experimental import pallas as pl
from jax.experimental.pallas import tpu as pltpu

# ------------------------- config -------------------------
IN_CHANNELS = 16
HIDDEN = 32
OUT_CHANNELS = 8
NUM_RELATIONS = 2
NUM_LAYERS = 2
HEADS = 4
HEAD_DIM = HIDDEN // HEADS          # 8
# neighbor-sampled node counts per hop: N0 total nodes, N1 targets of layer0, N2 targets of layer1
NODE_SIZES = [12, 8, 4]

_VMEM = functools.partial(pl.BlockSpec, memory_space=pltpu.MemorySpace.VMEM)


# ------------------------- fused kernel -------------------------

def _gat_relation(h_all, n_dst, att_src, att_dst, mask):
    """One relation's GATConv attention + aggregation.

    h_all:   [N_src, HEADS*HEAD_DIM]  projected features (lin_src == lin_dst)
    att_src/att_dst: [1, HEADS*HEAD_DIM]
    mask:    [N_dst, N_src] in {0,1}
    returns  [N_dst, HEADS*HEAD_DIM]  (all heads, lane-dense, no partial stores)
    """
    h_dst = h_all[:n_dst]
    neg = (1.0 - mask) * (-1e30)
    head_outs = []
    for h in range(HEADS):
        sl = slice(h * HEAD_DIM, (h + 1) * HEAD_DIM)
        hs = h_all[:, sl]                                            # [Ns, C]
        hd = h_dst[:, sl]                                            # [Nd, C]
        # MXU dots instead of cross-lane sum + sublane<->lane transpose.
        a_s = lax.dot_general(att_src[:, sl], hs, (((1,), (1,)), ((), ())),
                              preferred_element_type=jnp.float32)    # [1, Ns]
        a_d = lax.dot_general(hd, att_dst[:, sl], (((1,), (1,)), ((), ())),
                              preferred_element_type=jnp.float32)    # [Nd, 1]
        e = a_d + a_s                                                # [Nd, Ns]
        e = jnp.where(e > 0, e, 0.2 * e)                             # leaky_relu(0.2)
        e = e + neg                                                  # mask non-edges
        m = jnp.max(e, axis=1, keepdims=True)
        p = jnp.exp(e - m) * mask        # keep *mask so fully-masked rows contribute 0
        denom = jnp.sum(p, axis=1, keepdims=True)
        agg = jnp.dot(p, hs, preferred_element_type=jnp.float32)     # [Nd, C]
        # normalize after aggregation: Nd*C scales instead of Nd*Ns divides, EUP reciprocal
        agg = agg * pl.reciprocal(jnp.maximum(denom, 1e-30), approx=True)
        head_outs.append(agg)
    return jnp.concatenate(head_outs, axis=1)                        # [Nd, HEADS*HEAD_DIM]


def _bn_rows(v, bn):
    """bn rows: 0=gamma, 1=beta, 2=running_mean, 3=running_var (eval-mode BatchNorm1d)."""
    return (v - bn[2:3, :]) * lax.rsqrt(bn[3:4, :] + 1e-5) * bn[0:1, :] + bn[1:2, :]


def rgat_fused_kernel(x_ref,
                      w0_ref, bs0_ref, att0_ref, msk0_ref, bn0_ref,
                      w1_ref, bs1_ref, att1_ref, msk1_ref, bn1_ref,
                      mw1_ref, mb1_ref, mbn_ref, mw2_ref, mb2_ref,
                      o_ref):
    """Entire eval-mode RGAT forward in one kernel invocation (all data resident in VMEM)."""
    x = x_ref[...]
    layers = ((w0_ref, bs0_ref, att0_ref, msk0_ref, bn0_ref),
              (w1_ref, bs1_ref, att1_ref, msk1_ref, bn1_ref))
    for i, (w_ref, bs_ref, att_ref, msk_ref, bn_ref) in enumerate(layers):
        n_dst = NODE_SIZES[i + 1]
        # Batched projection: columns = [ skip_W | rel0_W | rel1_W ]  ->  [N_src, (1+R)*HIDDEN]
        h_cat = jnp.dot(x, w_ref[...], preferred_element_type=jnp.float32)
        out = h_cat[:n_dst, :HIDDEN] + bs_ref[...]                   # skip(x_target)
        att = att_ref[...]                                           # [R*3, HIDDEN]
        for j in range(NUM_RELATIONS):
            # NOTE: all synthetic relations have nnz > 0, so the `nnz() > 0` skip never triggers.
            h_all = h_cat[:, (j + 1) * HIDDEN:(j + 2) * HIDDEN]      # relation projection (bias-free)
            att_src = att[3 * j:3 * j + 1, :]
            att_dst = att[3 * j + 1:3 * j + 2, :]
            conv_b = att[3 * j + 2:3 * j + 3, :]
            rel = _gat_relation(h_all, n_dst, att_src, att_dst, msk_ref[j])
            out = out + rel + conv_b
        xn = _bn_rows(out, bn_ref[...])
        x = jnp.where(xn > 0, xn, jnp.exp(jnp.minimum(xn, 0.0)) - 1.0)   # ELU (overflow-safe)
        # F.dropout(training=False) -> identity (eval mode)
    # MLP: Linear -> BatchNorm -> ReLU -> (Dropout=id) -> Linear
    h = jnp.dot(x, mw1_ref[...], preferred_element_type=jnp.float32) + mb1_ref[...]
    h = jnp.maximum(_bn_rows(h, mbn_ref[...]), 0.0)
    o_ref[...] = jnp.dot(h, mw2_ref[...], preferred_element_type=jnp.float32) + mb2_ref[...]
    # TODO(synk): unused `self.years` / MAG240MDataset attribute from __init__ has no role in forward.


# ------------------------- parameter init -------------------------

def glorot(key, shape):
    fan_in, fan_out = shape[0], shape[1]
    lim = math.sqrt(6.0 / (fan_in + fan_out))
    return jax.random.uniform(key, shape, jnp.float32, -lim, lim)


def init_params(key):
    p = {"skips": [], "convs": [], "norms": []}
    dims = [IN_CHANNELS] + [HIDDEN] * (NUM_LAYERS - 1)
    for i in range(NUM_LAYERS):
        key, k1, k2 = jax.random.split(key, 3)
        p["skips"].append({
            "w": glorot(k1, (dims[i], HIDDEN)),
            "b": jax.random.normal(k2, (HIDDEN,), jnp.float32) * 0.01,
        })
        rel = []
        for _ in range(NUM_RELATIONS):
            key, kw, ks, kd = jax.random.split(key, 4)
            rel.append({
                "w": glorot(kw, (dims[i], HEADS * HEAD_DIM)),        # lin_src == lin_dst, bias=False
                "att_src": glorot(ks, (1, HEADS * HEAD_DIM)),
                "att_dst": glorot(kd, (1, HEADS * HEAD_DIM)),
                "bias": jnp.zeros((1, HEADS * HEAD_DIM), jnp.float32),
            })
        p["convs"].append(rel)
        p["norms"].append({                                          # PyTorch BN defaults
            "gamma": jnp.ones((1, HIDDEN), jnp.float32),
            "beta": jnp.zeros((1, HIDDEN), jnp.float32),
            "mean": jnp.zeros((1, HIDDEN), jnp.float32),
            "var": jnp.ones((1, HIDDEN), jnp.float32),
        })
    key, k1, k2, k3, k4 = jax.random.split(key, 5)
    p["mlp"] = {
        "w1": glorot(k1, (HIDDEN, HIDDEN)),
        "b1": jax.random.normal(k2, (HIDDEN,), jnp.float32) * 0.01,
        "bn": {
            "gamma": jnp.ones((1, HIDDEN), jnp.float32),
            "beta": jnp.zeros((1, HIDDEN), jnp.float32),
            "mean": jnp.zeros((1, HIDDEN), jnp.float32),
            "var": jnp.ones((1, HIDDEN), jnp.float32),
        },
        "w2": glorot(k3, (HIDDEN, OUT_CHANNELS)),
        "b2": jax.random.normal(k4, (OUT_CHANNELS,), jnp.float32) * 0.01,
    }
    return p


# ------------------------- forward (single fused pallas_call) -------------------------

def _pack_inputs(params, x, masks):
    """Pack all parameters into a small flat operand list for the fused kernel."""
    flat = [x]
    for i in range(NUM_LAYERS):
        w_cat = jnp.concatenate(
            [params["skips"][i]["w"]]
            + [params["convs"][i][j]["w"] for j in range(NUM_RELATIONS)], axis=1)
        att = jnp.concatenate(
            [jnp.concatenate([params["convs"][i][j]["att_src"],
                              params["convs"][i][j]["att_dst"],
                              params["convs"][i][j]["bias"]], axis=0)
             for j in range(NUM_RELATIONS)], axis=0)                 # [R*3, HIDDEN]
        msk = jnp.stack(masks[i], axis=0)                            # [R, N_dst, N_src]
        bn = jnp.concatenate([params["norms"][i][k]
                              for k in ("gamma", "beta", "mean", "var")], axis=0)
        flat += [w_cat, params["skips"][i]["b"].reshape(1, -1), att, msk, bn]
    m = params["mlp"]
    bn_mlp = jnp.concatenate([m["bn"][k] for k in ("gamma", "beta", "mean", "var")], axis=0)
    flat += [m["w1"], m["b1"].reshape(1, -1), bn_mlp, m["w2"], m["b2"].reshape(1, -1)]
    return flat


def rgat_forward(params, x, masks):
    """masks[i][j]: dense [N_{i+1}, N_i] edge mask for layer i, relation j."""
    flat = _pack_inputs(params, x, masks)
    return pl.pallas_call(
        rgat_fused_kernel,
        out_shape=jax.ShapeDtypeStruct((NODE_SIZES[-1], OUT_CHANNELS), jnp.float32),
        in_specs=[_VMEM() for _ in flat],
        out_specs=_VMEM(),
    )(*flat)


# ------------------------- main -------------------------

if __name__ == "__main__":
    key = jax.random.PRNGKey(0)
    key, kx = jax.random.split(key)
    x = jax.random.normal(kx, (NODE_SIZES[0], IN_CHANNELS), jnp.float32)

    masks = []
    for i in range(NUM_LAYERS):
        layer_masks = []
        for j in range(NUM_RELATIONS):
            key, km = jax.random.split(key)
            m = jax.random.bernoulli(
                km, 0.5, (NODE_SIZES[i + 1], NODE_SIZES[i])).astype(jnp.float32)
            layer_masks.append(m)
        masks.append(layer_masks)

    params = init_params(jax.random.PRNGKey(42))

    out = rgat_forward(params, x, masks)
    out = jax.block_until_ready(out)
    assert out.shape == (NODE_SIZES[-1], OUT_CHANNELS)
    assert bool(jnp.all(jnp.isfinite(out)))
    print("KERNEL_OK")
</pallas_src>

<mosaic_0001>
module attributes {stable_mosaic.version = 11 : i64} {
  func.func @rgat_fused_kernel(%arg0: memref<12x16xf32, #tpu.memory_space<vmem>>, %arg1: memref<16x96xf32, #tpu.memory_space<vmem>>, %arg2: memref<1x32xf32, #tpu.memory_space<vmem>>, %arg3: memref<6x32xf32, #tpu.memory_space<vmem>>, %arg4: memref<2x8x12xf32, #tpu.memory_space<vmem>>, %arg5: memref<4x32xf32, #tpu.memory_space<vmem>>, %arg6: memref<32x96xf32, #tpu.memory_space<vmem>>, %arg7: memref<1x32xf32, #tpu.memory_space<vmem>>, %arg8: memref<6x32xf32, #tpu.memory_space<vmem>>, %arg9: memref<2x4x8xf32, #tpu.memory_space<vmem>>, %arg10: memref<4x32xf32, #tpu.memory_space<vmem>>, %arg11: memref<32x32xf32, #tpu.memory_space<vmem>>, %arg12: memref<1x32xf32, #tpu.memory_space<vmem>>, %arg13: memref<4x32xf32, #tpu.memory_space<vmem>>, %arg14: memref<32x8xf32, #tpu.memory_space<vmem>>, %arg15: memref<1x8xf32, #tpu.memory_space<vmem>>, %arg16: memref<4x8xf32, #tpu.memory_space<vmem>>) attributes {dimension_semantics = [], scalar_prefetch = 0 : i64, scratch_operands = 0 : i64, tpu.core_type = #tpu.core_type<tc>} {
    %c0 = arith.constant 0 : index
    %c0_0 = arith.constant 0 : index
    %0 = vector.load %arg0[%c0, %c0_0] : memref<12x16xf32, #tpu.memory_space<vmem>>, vector<12x16xf32>
    %c0_1 = arith.constant 0 : index
    %c0_2 = arith.constant 0 : index
    %1 = vector.load %arg1[%c0_1, %c0_2] : memref<16x96xf32, #tpu.memory_space<vmem>>, vector<16x96xf32>
    %cst = arith.constant dense<0.000000e+00> : vector<12x96xf32>
    %2 = tpu.matmul %0, %1, %cst {dimension_numbers = #tpu.dot_dimension_numbers<[1], [0], [0], [1], [0, 0, 1, 1], [], []>} : vector<12x16xf32>, vector<16x96xf32>, vector<12x96xf32> -> vector<12x96xf32>
    %3 = vector.extract_strided_slice %2 {offsets = [0, 0], sizes = [8, 32], strides = [1, 1]} : vector<12x96xf32> to vector<8x32xf32>
    %c0_3 = arith.constant 0 : index
    %c0_4 = arith.constant 0 : index
    %4 = vector.load %arg2[%c0_3, %c0_4] : memref<1x32xf32, #tpu.memory_space<vmem>>, vector<1x32xf32>
    %5 = vector.broadcast %4 : vector<1x32xf32> to vector<8x32xf32>
    %6 = arith.addf %3, %5 : vector<8x32xf32>
    %c0_5 = arith.constant 0 : index
    %c0_6 = arith.constant 0 : index
    %7 = vector.load %arg3[%c0_5, %c0_6] : memref<6x32xf32, #tpu.memory_space<vmem>>, vector<6x32xf32>
    %8 = vector.extract_strided_slice %2 {offsets = [0, 32], sizes = [12, 32], strides = [1, 1]} : vector<12x96xf32> to vector<12x32xf32>
    %9 = vector.extract_strided_slice %7 {offsets = [0, 0], sizes = [1, 32], strides = [1, 1]} : vector<6x32xf32> to vector<1x32xf32>
    %10 = vector.extract_strided_slice %7 {offsets = [1, 0], sizes = [1, 32], strides = [1, 1]} : vector<6x32xf32> to vector<1x32xf32>
    %11 = vector.extract_strided_slice %7 {offsets = [2, 0], sizes = [1, 32], strides = [1, 1]} : vector<6x32xf32> to vector<1x32xf32>
    %c0_7 = arith.constant 0 : index
    %c0_8 = arith.constant 0 : index
    %c0_9 = arith.constant 0 : index
    %12 = vector.load %arg4[%c0_7, %c0_8, %c0_9] : memref<2x8x12xf32, #tpu.memory_space<vmem>>, vector<1x8x12xf32>
    %13 = vector.shape_cast %12 : vector<1x8x12xf32> to vector<8x12xf32>
    %14 = vector.extract_strided_slice %8 {offsets = [0, 0], sizes = [8, 32], strides = [1, 1]} : vector<12x32xf32> to vector<8x32xf32>
    %cst_10 = arith.constant 1.000000e+00 : f32
    %15 = vector.broadcast %cst_10 : f32 to vector<8x12xf32>
    %16 = arith.subf %15, %13 : vector<8x12xf32>
    %cst_11 = arith.constant -1.000000e+30 : f32
    %17 = vector.broadcast %cst_11 : f32 to vector<8x12xf32>
    %18 = arith.mulf %16, %17 : vector<8x12xf32>
    %19 = vector.extract_strided_slice %8 {offsets = [0, 0], sizes = [12, 8], strides = [1, 1]} : vector<12x32xf32> to vector<12x8xf32>
    %20 = vector.extract_strided_slice %14 {offsets = [0, 0], sizes = [8, 8], strides = [1, 1]} : vector<8x32xf32> to vector<8x8xf32>
    %21 = vector.extract_strided_slice %9 {offsets = [0, 0], sizes = [1, 8], strides = [1, 1]} : vector<1x32xf32> to vector<1x8xf32>
    %cst_12 = arith.constant dense<0.000000e+00> : vector<1x12xf32>
    %22 = tpu.matmul %21, %19, %cst_12 {dimension_numbers = #tpu.dot_dimension_numbers<[1], [1], [0], [0], [0, 0, 1, 0], [], []>} : vector<1x8xf32>, vector<12x8xf32>, vector<1x12xf32> -> vector<1x12xf32>
    %23 = vector.extract_strided_slice %10 {offsets = [0, 0], sizes = [1, 8], strides = [1, 1]} : vector<1x32xf32> to vector<1x8xf32>
    %cst_13 = arith.constant dense<0.000000e+00> : vector<8x1xf32>
    %24 = tpu.matmul %20, %23, %cst_13 {dimension_numbers = #tpu.dot_dimension_numbers<[1], [1], [0], [0], [0, 0, 1, 0], [], []>} : vector<8x8xf32>, vector<1x8xf32>, vector<8x1xf32> -> vector<8x1xf32>
    %25 = vector.broadcast %24 : vector<8x1xf32> to vector<8x12xf32>
    %26 = vector.broadcast %22 : vector<1x12xf32> to vector<8x12xf32>
    %27 = arith.addf %25, %26 : vector<8x12xf32>
    %cst_14 = arith.constant 0.000000e+00 : f32
    %28 = vector.broadcast %cst_14 : f32 to vector<8x12xf32>
    %29 = arith.cmpf ogt, %27, %28 : vector<8x12xf32>
    %cst_15 = arith.constant 2.000000e-01 : f32
    %30 = vector.broadcast %cst_15 : f32 to vector<8x12xf32>
    %31 = arith.mulf %30, %27 : vector<8x12xf32>
    %32 = arith.select %29, %27, %31 : vector<8x12xi1>, vector<8x12xf32>
    %33 = arith.addf %32, %18 : vector<8x12xf32>
    %cst_16 = arith.constant dense<0xFF800000> : vector<8xf32>
    %34 = vector.multi_reduction <maximumf>, %33, %cst_16 [1] : vector<8x12xf32> to vector<8xf32>
    %35 = vector.shape_cast %34 : vector<8xf32> to vector<8x1xf32>
    %36 = vector.broadcast %35 : vector<8x1xf32> to vector<8x12xf32>
    %37 = arith.subf %33, %36 : vector<8x12xf32>
    %38 = math.exp %37 : vector<8x12xf32>
    %39 = arith.mulf %38, %13 : vector<8x12xf32>
    %cst_17 = arith.constant dense<0.000000e+00> : vector<8xf32>
    %40 = vector.multi_reduction <add>, %39, %cst_17 [1] : vector<8x12xf32> to vector<8xf32>
    %41 = vector.shape_cast %40 : vector<8xf32> to vector<8x1xf32>
    %cst_18 = arith.constant dense<0.000000e+00> : vector<8x8xf32>
    %42 = tpu.matmul %39, %19, %cst_18 {dimension_numbers = #tpu.dot_dimension_numbers<[1], [0], [0], [1], [0, 0, 1, 1], [], []>} : vector<8x12xf32>, vector<12x8xf32>, vector<8x8xf32> -> vector<8x8xf32>
    %cst_19 = arith.constant 1.000000e-30 : f32
    %43 = vector.broadcast %cst_19 : f32 to vector<8x1xf32>
    %44 = arith.maximumf %41, %43 : vector<8x1xf32>
    %45 = tpu.reciprocal %44 {approx = true} : vector<8x1xf32> -> vector<8x1xf32>
    %46 = vector.broadcast %45 : vector<8x1xf32> to vector<8x8xf32>
    %47 = arith.mulf %42, %46 : vector<8x8xf32>
    %48 = vector.extract_strided_slice %8 {offsets = [0, 8], sizes = [12, 8], strides = [1, 1]} : vector<12x32xf32> to vector<12x8xf32>
    %49 = vector.extract_strided_slice %14 {offsets = [0, 8], sizes = [8, 8], strides = [1, 1]} : vector<8x32xf32> to vector<8x8xf32>
    %50 = vector.extract_strided_slice %9 {offsets = [0, 8], sizes = [1, 8], strides = [1, 1]} : vector<1x32xf32> to vector<1x8xf32>
    %cst_20 = arith.constant dense<0.000000e+00> : vector<1x12xf32>
    %51 = tpu.matmul %50, %48, %cst_20 {dimension_numbers = #tpu.dot_dimension_numbers<[1], [1], [0], [0], [0, 0, 1, 0], [], []>} : vector<1x8xf32>, vector<12x8xf32>, vector<1x12xf32> -> vector<1x12xf32>
    %52 = vector.extract_strided_slice %10 {offsets = [0, 8], sizes = [1, 8], strides = [1, 1]} : vector<1x32xf32> to vector<1x8xf32>
    %cst_21 = arith.constant dense<0.000000e+00> : vector<8x1xf32>
    %53 = tpu.matmul %49, %52, %cst_21 {dimension_numbers = #tpu.dot_dimension_numbers<[1], [1], [0], [0], [0, 0, 1, 0], [], []>} : vector<8x8xf32>, vector<1x8xf32>, vector<8x1xf32> -> vector<8x1xf32>
    %54 = vector.broadcast %53 : vector<8x1xf32> to vector<8x12xf32>
    %55 = vector.broadcast %51 : vector<1x12xf32> to vector<8x12xf32>
    %56 = arith.addf %54, %55 : vector<8x12xf32>
    %cst_22 = arith.constant 0.000000e+00 : f32
    %57 = vector.broadcast %cst_22 : f32 to vector<8x12xf32>
    %58 = arith.cmpf ogt, %56, %57 : vector<8x12xf32>
    %cst_23 = arith.constant 2.000000e-01 : f32
    %59 = vector.broadcast %cst_23 : f32 to vector<8x12xf32>
    %60 = arith.mulf %59, %56 : vector<8x12xf32>
    %61 = arith.select %58, %56, %60 : vector<8x12xi1>, vector<8x12xf32>
    %62 = arith.addf %61, %18 : vector<8x12xf32>
    %cst_24 = arith.constant dense<0xFF800000> : vector<8xf32>
    %63 = vector.multi_reduction <maximumf>, %62, %cst_24 [1] : vector<8x12xf32> to vector<8xf32>
    %64 = vector.shape_cast %63 : vector<8xf32> to vector<8x1xf32>
    %65 = vector.broadcast %64 : vector<8x1xf32> to vector<8x12xf32>
    %66 = arith.subf %62, %65 : vector<8x12xf32>
    %67 = math.exp %66 : vector<8x12xf32>
    %68 = arith.mulf %67, %13 : vector<8x12xf32>
    %cst_25 = arith.constant dense<0.000000e+00> : vector<8xf32>
    %69 = vector.multi_reduction <add>, %68, %cst_25 [1] : vector<8x12xf32> to vector<8xf32>
    %70 = vector.shape_cast %69 : vector<8xf32> to vector<8x1xf32>
    %cst_26 = arith.constant dense<0.000000e+00> : vector<8x8xf32>
    %71 = tpu.matmul %68, %48, %cst_26 {dimension_numbers = #tpu.dot_dimension_numbers<[1], [0], [0], [1], [0, 0, 1, 1], [], []>} : vector<8x12xf32>, vector<12x8xf32>, vector<8x8xf32> -> vector<8x8xf32>
    %cst_27 = arith.constant 1.000000e-30 : f32
    %72 = vector.broadcast %cst_27 : f32 to vector<8x1xf32>
    %73 = arith.maximumf %70, %72 : vector<8x1xf32>
    %74 = tpu.reciprocal %73 {approx = true} : vector<8x1xf32> -> vector<8x1xf32>
    %75 = vector.broadcast %74 : vector<8x1xf32> to vector<8x8xf32>
    %76 = arith.mulf %71, %75 : vector<8x8xf32>
    %77 = vector.extract_strided_slice %8 {offsets = [0, 16], sizes = [12, 8], strides = [1, 1]} : vector<12x32xf32> to vector<12x8xf32>
    %78 = vector.extract_strided_slice %14 {offsets = [0, 16], sizes = [8, 8], strides = [1, 1]} : vector<8x32xf32> to vector<8x8xf32>
    %79 = vector.extract_strided_slice %9 {offsets = [0, 16], sizes = [1, 8], strides = [1, 1]} : vector<1x32xf32> to vector<1x8xf32>
    %cst_28 = arith.constant dense<0.000000e+00> : vector<1x12xf32>
    %80 = tpu.matmul %79, %77, %cst_28 {dimension_numbers = #tpu.dot_dimension_numbers<[1], [1], [0], [0], [0, 0, 1, 0], [], []>} : vector<1x8xf32>, vector<12x8xf32>, vector<1x12xf32> -> vector<1x12xf32>
    %81 = vector.extract_strided_slice %10 {offsets = [0, 16], sizes = [1, 8], strides = [1, 1]} : vector<1x32xf32> to vector<1x8xf32>
    %cst_29 = arith.constant dense<0.000000e+00> : vector<8x1xf32>
    %82 = tpu.matmul %78, %81, %cst_29 {dimension_numbers = #tpu.dot_dimension_numbers<[1], [1], [0], [0], [0, 0, 1, 0], [], []>} : vector<8x8xf32>, vector<1x8xf32>, vector<8x1xf32> -> vector<8x1xf32>
    %83 = vector.broadcast %82 : vector<8x1xf32> to vector<8x12xf32>
    %84 = vector.broadcast %80 : vector<1x12xf32> to vector<8x12xf32>
    %85 = arith.addf %83, %84 : vector<8x12xf32>
    %cst_30 = arith.constant 0.000000e+00 : f32
    %86 = vector.broadcast %cst_30 : f32 to vector<8x12xf32>
    %87 = arith.cmpf ogt, %85, %86 : vector<8x12xf32>
    %cst_31 = arith.constant 2.000000e-01 : f32
    %88 = vector.broadcast %cst_31 : f32 to vector<8x12xf32>
    %89 = arith.mulf %88, %85 : vector<8x12xf32>
    %90 = arith.select %87, %85, %89 : vector<8x12xi1>, vector<8x12xf32>
    %91 = arith.addf %90, %18 : vector<8x12xf32>
    %cst_32 = arith.constant dense<0xFF800000> : vector<8xf32>
    %92 = vector.multi_reduction <maximumf>, %91, %cst_32 [1] : vector<8x12xf32> to vector<8xf32>
    %93 = vector.shape_cast %92 : vector<8xf32> to vector<8x1xf32>
    %94 = vector.broadcast %93 : vector<8x1xf32> to vector<8x12xf32>
    %95 = arith.subf %91, %94 : vector<8x12xf32>
    %96 = math.exp %95 : vector<8x12xf32>
    %97 = arith.mulf %96, %13 : vector<8x12xf32>
    %cst_33 = arith.constant dense<0.000000e+00> : vector<8xf32>
    %98 = vector.multi_reduction <add>, %97, %cst_33 [1] : vector<8x12xf32> to vector<8xf32>
    %99 = vector.shape_cast %98 : vector<8xf32> to vector<8x1xf32>
    %cst_34 = arith.constant dense<0.000000e+00> : vector<8x8xf32>
    %100 = tpu.matmul %97, %77, %cst_34 {dimension_numbers = #tpu.dot_dimension_numbers<[1], [0], [0], [1], [0, 0, 1, 1], [], []>} : vector<8x12xf32>, vector<12x8xf32>, vector<8x8xf32> -> vector<8x8xf32>
    %cst_35 = arith.constant 1.000000e-30 : f32
    %101 = vector.broadcast %cst_35 : f32 to vector<8x1xf32>
    %102 = arith.maximumf %99, %101 : vector<8x1xf32>
    %103 = tpu.reciprocal %102 {approx = true} : vector<8x1xf32> -> vector<8x1xf32>
    %104 = vector.broadcast %103 : vector<8x1xf32> to vector<8x8xf32>
    %105 = arith.mulf %100, %104 : vector<8x8xf32>
    %106 = vector.extract_strided_slice %8 {offsets = [0, 24], sizes = [12, 8], strides = [1, 1]} : vector<12x32xf32> to vector<12x8xf32>
    %107 = vector.extract_strided_slice %14 {offsets = [0, 24], sizes = [8, 8], strides = [1, 1]} : vector<8x32xf32> to vector<8x8xf32>
    %108 = vector.extract_strided_slice %9 {offsets = [0, 24], sizes = [1, 8], strides = [1, 1]} : vector<1x32xf32> to vector<1x8xf32>
    %cst_36 = arith.constant dense<0.000000e+00> : vector<1x12xf32>
    %109 = tpu.matmul %108, %106, %cst_36 {dimension_numbers = #tpu.dot_dimension_numbers<[1], [1], [0], [0], [0, 0, 1, 0], [], []>} : vector<1x8xf32>, vector<12x8xf32>, vector<1x12xf32> -> vector<1x12xf32>
    %110 = vector.extract_strided_slice %10 {offsets = [0, 24], sizes = [1, 8], strides = [1, 1]} : vector<1x32xf32> to vector<1x8xf32>
    %cst_37 = arith.constant dense<0.000000e+00> : vector<8x1xf32>
    %111 = tpu.matmul %107, %110, %cst_37 {dimension_numbers = #tpu.dot_dimension_numbers<[1], [1], [0], [0], [0, 0, 1, 0], [], []>} : vector<8x8xf32>, vector<1x8xf32>, vector<8x1xf32> -> vector<8x1xf32>
    %112 = vector.broadcast %111 : vector<8x1xf32> to vector<8x12xf32>
    %113 = vector.broadcast %109 : vector<1x12xf32> to vector<8x12xf32>
    %114 = arith.addf %112, %113 : vector<8x12xf32>
    %cst_38 = arith.constant 0.000000e+00 : f32
    %115 = vector.broadcast %cst_38 : f32 to vector<8x12xf32>
    %116 = arith.cmpf ogt, %114, %115 : vector<8x12xf32>
    %cst_39 = arith.constant 2.000000e-01 : f32
    %117 = vector.broadcast %cst_39 : f32 to vector<8x12xf32>
    %118 = arith.mulf %117, %114 : vector<8x12xf32>
    %119 = arith.select %116, %114, %118 : vector<8x12xi1>, vector<8x12xf32>
    %120 = arith.addf %119, %18 : vector<8x12xf32>
    %cst_40 = arith.constant dense<0xFF800000> : vector<8xf32>
    %121 = vector.multi_reduction <maximumf>, %120, %cst_40 [1] : vector<8x12xf32> to vector<8xf32>
    %122 = vector.shape_cast %121 : vector<8xf32> to vector<8x1xf32>
    %123 = vector.broadcast %122 : vector<8x1xf32> to vector<8x12xf32>
    %124 = arith.subf %120, %123 : vector<8x12xf32>
    %125 = math.exp %124 : vector<8x12xf32>
    %126 = arith.mulf %125, %13 : vector<8x12xf32>
    %cst_41 = arith.constant dense<0.000000e+00> : vector<8xf32>
    %127 = vector.multi_reduction <add>, %126, %cst_41 [1] : vector<8x12xf32> to vector<8xf32>
    %128 = vector.shape_cast %127 : vector<8xf32> to vector<8x1xf32>
    %cst_42 = arith.constant dense<0.000000e+00> : vector<8x8xf32>
    %129 = tpu.matmul %126, %106, %cst_42 {dimension_numbers = #tpu.dot_dimension_numbers<[1], [0], [0], [1], [0, 0, 1, 1], [], []>} : vector<8x12xf32>, vector<12x8xf32>, vector<8x8xf32> -> vector<8x8xf32>
    %cst_43 = arith.constant 1.000000e-30 : f32
    %130 = vector.broadcast %cst_43 : f32 to vector<8x1xf32>
    %131 = arith.maximumf %128, %130 : vector<8x1xf32>
    %132 = tpu.reciprocal %131 {approx = true} : vector<8x1xf32> -> vector<8x1xf32>
    %133 = vector.broadcast %132 : vector<8x1xf32> to vector<8x8xf32>
    %134 = arith.mulf %129, %133 : vector<8x8xf32>
    %135 = tpu.concatenate %47, %76, %105, %134 in 1 : vector<8x8xf32>, vector<8x8xf32>, vector<8x8xf32>, vector<8x8xf32> -> vector<8x32xf32>
    %136 = arith.addf %6, %135 : vector<8x32xf32>
    %137 = vector.broadcast %11 : vector<1x32xf32> to vector<8x32xf32>
    %138 = arith.addf %136, %137 : vector<8x32xf32>
    %139 = vector.extract_strided_slice %2 {offsets = [0, 64], sizes = [12, 32], strides = [1, 1]} : vector<12x96xf32> to vector<12x32xf32>
    %140 = vector.extract_strided_slice %7 {offsets = [3, 0], sizes = [1, 32], strides = [1, 1]} : vector<6x32xf32> to vector<1x32xf32>
    %141 = vector.extract_strided_slice %7 {offsets = [4, 0], sizes = [1, 32], strides = [1, 1]} : vector<6x32xf32> to vector<1x32xf32>
    %142 = vector.extract_strided_slice %7 {offsets = [5, 0], sizes = [1, 32], strides = [1, 1]} : vector<6x32xf32> to vector<1x32xf32>
    %c1 = arith.constant 1 : index
    %c0_44 = arith.constant 0 : index
    %c0_45 = arith.constant 0 : index
    %143 = vector.load %arg4[%c1, %c0_44, %c0_45] : memref<2x8x12xf32, #tpu.memory_space<vmem>>, vector<1x8x12xf32>
    %144 = vector.shape_cast %143 : vector<1x8x12xf32> to vector<8x12xf32>
    %145 = vector.extract_strided_slice %139 {offsets = [0, 0], sizes = [8, 32], strides = [1, 1]} : vector<12x32xf32> to vector<8x32xf32>
    %cst_46 = arith.constant 1.000000e+00 : f32
    %146 = vector.broadcast %cst_46 : f32 to vector<8x12xf32>
    %147 = arith.subf %146, %144 : vector<8x12xf32>
    %cst_47 = arith.constant -1.000000e+30 : f32
    %148 = vector.broadcast %cst_47 : f32 to vector<8x12xf32>
    %149 = arith.mulf %147, %148 : vector<8x12xf32>
    %150 = vector.extract_strided_slice %139 {offsets = [0, 0], sizes = [12, 8], strides = [1, 1]} : vector<12x32xf32> to vector<12x8xf32>
    %151 = vector.extract_strided_slice %145 {offsets = [0, 0], sizes = [8, 8], strides = [1, 1]} : vector<8x32xf32> to vector<8x8xf32>
    %152 = vector.extract_strided_slice %140 {offsets = [0, 0], sizes = [1, 8], strides = [1, 1]} : vector<1x32xf32> to vector<1x8xf32>
    %cst_48 = arith.constant dense<0.000000e+00> : vector<1x12xf32>
    %153 = tpu.matmul %152, %150, %cst_48 {dimension_numbers = #tpu.dot_dimension_numbers<[1], [1], [0], [0], [0, 0, 1, 0], [], []>} : vector<1x8xf32>, vector<12x8xf32>, vector<1x12xf32> -> vector<1x12xf32>
    %154 = vector.extract_strided_slice %141 {offsets = [0, 0], sizes = [1, 8], strides = [1, 1]} : vector<1x32xf32> to vector<1x8xf32>
    %cst_49 = arith.constant dense<0.000000e+00> : vector<8x1xf32>
    %155 = tpu.matmul %151, %154, %cst_49 {dimension_numbers = #tpu.dot_dimension_numbers<[1], [1], [0], [0], [0, 0, 1, 0], [], []>} : vector<8x8xf32>, vector<1x8xf32>, vector<8x1xf32> -> vector<8x1xf32>
    %156 = vector.broadcast %155 : vector<8x1xf32> to vector<8x12xf32>
    %157 = vector.broadcast %153 : vector<1x12xf32> to vector<8x12xf32>
    %158 = arith.addf %156, %157 : vector<8x12xf32>
    %cst_50 = arith.constant 0.000000e+00 : f32
    %159 = vector.broadcast %cst_50 : f32 to vector<8x12xf32>
    %160 = arith.cmpf ogt, %158, %159 : vector<8x12xf32>
    %cst_51 = arith.constant 2.000000e-01 : f32
    %161 = vector.broadcast %cst_51 : f32 to vector<8x12xf32>
    %162 = arith.mulf %161, %158 : vector<8x12xf32>
    %163 = arith.select %160, %158, %162 : vector<8x12xi1>, vector<8x12xf32>
    %164 = arith.addf %163, %149 : vector<8x12xf32>
    %cst_52 = arith.constant dense<0xFF800000> : vector<8xf32>
    %165 = vector.multi_reduction <maximumf>, %164, %cst_52 [1] : vector<8x12xf32> to vector<8xf32>
    %166 = vector.shape_cast %165 : vector<8xf32> to vector<8x1xf32>
    %167 = vector.broadcast %166 : vector<8x1xf32> to vector<8x12xf32>
    %168 = arith.subf %164, %167 : vector<8x12xf32>
    %169 = math.exp %168 : vector<8x12xf32>
    %170 = arith.mulf %169, %144 : vector<8x12xf32>
    %cst_53 = arith.constant dense<0.000000e+00> : vector<8xf32>
    %171 = vector.multi_reduction <add>, %170, %cst_53 [1] : vector<8x12xf32> to vector<8xf32>
    %172 = vector.shape_cast %171 : vector<8xf32> to vector<8x1xf32>
    %cst_54 = arith.constant dense<0.000000e+00> : vector<8x8xf32>
    %173 = tpu.matmul %170, %150, %cst_54 {dimension_numbers = #tpu.dot_dimension_numbers<[1], [0], [0], [1], [0, 0, 1, 1], [], []>} : vector<8x12xf32>, vector<12x8xf32>, vector<8x8xf32> -> vector<8x8xf32>
    %cst_55 = arith.constant 1.000000e-30 : f32
    %174 = vector.broadcast %cst_55 : f32 to vector<8x1xf32>
    %175 = arith.maximumf %172, %174 : vector<8x1xf32>
    %176 = tpu.reciprocal %175 {approx = true} : vector<8x1xf32> -> vector<8x1xf32>
    %177 = vector.broadcast %176 : vector<8x1xf32> to vector<8x8xf32>
    %178 = arith.mulf %173, %177 : vector<8x8xf32>
    %179 = vector.extract_strided_slice %139 {offsets = [0, 8], sizes = [12, 8], strides = [1, 1]} : vector<12x32xf32> to vector<12x8xf32>
    %180 = vector.extract_strided_slice %145 {offsets = [0, 8], sizes = [8, 8], strides = [1, 1]} : vector<8x32xf32> to vector<8x8xf32>
    %181 = vector.extract_strided_slice %140 {offsets = [0, 8], sizes = [1, 8], strides = [1, 1]} : vector<1x32xf32> to vector<1x8xf32>
    %cst_56 = arith.constant dense<0.000000e+00> : vector<1x12xf32>
    %182 = tpu.matmul %181, %179, %cst_56 {dimension_numbers = #tpu.dot_dimension_numbers<[1], [1], [0], [0], [0, 0, 1, 0], [], []>} : vector<1x8xf32>, vector<12x8xf32>, vector<1x12xf32> -> vector<1x12xf32>
    %183 = vector.extract_strided_slice %141 {offsets = [0, 8], sizes = [1, 8], strides = [1, 1]} : vector<1x32xf32> to vector<1x8xf32>
    %cst_57 = arith.constant dense<0.000000e+00> : vector<8x1xf32>
    %184 = tpu.matmul %180, %183, %cst_57 {dimension_numbers = #tpu.dot_dimension_numbers<[1], [1], [0], [0], [0, 0, 1, 0], [], []>} : vector<8x8xf32>, vector<1x8xf32>, vector<8x1xf32> -> vector<8x1xf32>
    %185 = vector.broadcast %184 : vector<8x1xf32> to vector<8x12xf32>
    %186 = vector.broadcast %182 : vector<1x12xf32> to vector<8x12xf32>
    %187 = arith.addf %185, %186 : vector<8x12xf32>
    %cst_58 = arith.constant 0.000000e+00 : f32
    %188 = vector.broadcast %cst_58 : f32 to vector<8x12xf32>
    %189 = arith.cmpf ogt, %187, %188 : vector<8x12xf32>
    %cst_59 = arith.constant 2.000000e-01 : f32
    %190 = vector.broadcast %cst_59 : f32 to vector<8x12xf32>
    %191 = arith.mulf %190, %187 : vector<8x12xf32>
    %192 = arith.select %189, %187, %191 : vector<8x12xi1>, vector<8x12xf32>
    %193 = arith.addf %192, %149 : vector<8x12xf32>
    %cst_60 = arith.constant dense<0xFF800000> : vector<8xf32>
    %194 = vector.multi_reduction <maximumf>, %193, %cst_60 [1] : vector<8x12xf32> to vector<8xf32>
    %195 = vector.shape_cast %194 : vector<8xf32> to vector<8x1xf32>
    %196 = vector.broadcast %195 : vector<8x1xf32> to vector<8x12xf32>
    %197 = arith.subf %193, %196 : vector<8x12xf32>
    %198 = math.exp %197 : vector<8x12xf32>
    %199 = arith.mulf %198, %144 : vector<8x12xf32>
    %cst_61 = arith.constant dense<0.000000e+00> : vector<8xf32>
    %200 = vector.multi_reduction <add>, %199, %cst_61 [1] : vector<8x12xf32> to vector<8xf32>
    %201 = vector.shape_cast %200 : vector<8xf32> to vector<8x1xf32>
    %cst_62 = arith.constant dense<0.000000e+00> : vector<8x8xf32>
    %202 = tpu.matmul %199, %179, %cst_62 {dimension_numbers = #tpu.dot_dimension_numbers<[1], [0], [0], [1], [0, 0, 1, 1], [], []>} : vector<8x12xf32>, vector<12x8xf32>, vector<8x8xf32> -> vector<8x8xf32>
    %cst_63 = arith.constant 1.000000e-30 : f32
    %203 = vector.broadcast %cst_63 : f32 to vector<8x1xf32>
    %204 = arith.maximumf %201, %203 : vector<8x1xf32>
    %205 = tpu.reciprocal %204 {approx = true} : vector<8x1xf32> -> vector<8x1xf32>
    %206 = vector.broadcast %205 : vector<8x1xf32> to vector<8x8xf32>
    %207 = arith.mulf %202, %206 : vector<8x8xf32>
    %208 = vector.extract_strided_slice %139 {offsets = [0, 16], sizes = [12, 8], strides = [1, 1]} : vector<12x32xf32> to vector<12x8xf32>
    %209 = vector.extract_strided_slice %145 {offsets = [0, 16], sizes = [8, 8], strides = [1, 1]} : vector<8x32xf32> to vector<8x8xf32>
    %210 = vector.extract_strided_slice %140 {offsets = [0, 16], sizes = [1, 8], strides = [1, 1]} : vector<1x32xf32> to vector<1x8xf32>
    %cst_64 = arith.constant dense<0.000000e+00> : vector<1x12xf32>
    %211 = tpu.matmul %210, %208, %cst_64 {dimension_numbers = #tpu.dot_dimension_numbers<[1], [1], [0], [0], [0, 0, 1, 0], [], []>} : vector<1x8xf32>, vector<12x8xf32>, vector<1x12xf32> -> vector<1x12xf32>
    %212 = vector.extract_strided_slice %141 {offsets = [0, 16], sizes = [1, 8], strides = [1, 1]} : vector<1x32xf32> to vector<1x8xf32>
    %cst_65 = arith.constant dense<0.000000e+00> : vector<8x1xf32>
    %213 = tpu.matmul %209, %212, %cst_65 {dimension_numbers = #tpu.dot_dimension_numbers<[1], [1], [0], [0], [0, 0, 1, 0], [], []>} : vector<8x8xf32>, vector<1x8xf32>, vector<8x1xf32> -> vector<8x1xf32>
    %214 = vector.broadcast %213 : vector<8x1xf32> to vector<8x12xf32>
    %215 = vector.broadcast %211 : vector<1x12xf32> to vector<8x12xf32>
    %216 = arith.addf %214, %215 : vector<8x12xf32>
    %cst_66 = arith.constant 0.000000e+00 : f32
    %217 = vector.broadcast %cst_66 : f32 to vector<8x12xf32>
    %218 = arith.cmpf ogt, %216, %217 : vector<8x12xf32>
    %cst_67 = arith.constant 2.000000e-01 : f32
    %219 = vector.broadcast %cst_67 : f32 to vector<8x12xf32>
    %220 = arith.mulf %219, %216 : vector<8x12xf32>
    %221 = arith.select %218, %216, %220 : vector<8x12xi1>, vector<8x12xf32>
    %222 = arith.addf %221, %149 : vector<8x12xf32>
    %cst_68 = arith.constant dense<0xFF800000> : vector<8xf32>
    %223 = vector.multi_reduction <maximumf>, %222, %cst_68 [1] : vector<8x12xf32> to vector<8xf32>
    %224 = vector.shape_cast %223 : vector<8xf32> to vector<8x1xf32>
    %225 = vector.broadcast %224 : vector<8x1xf32> to vector<8x12xf32>
    %226 = arith.subf %222, %225 : vector<8x12xf32>
    %227 = math.exp %226 : vector<8x12xf32>
    %228 = arith.mulf %227, %144 : vector<8x12xf32>
    %cst_69 = arith.constant dense<0.000000e+00> : vector<8xf32>
    %229 = vector.multi_reduction <add>, %228, %cst_69 [1] : vector<8x12xf32> to vector<8xf32>
    %230 = vector.shape_cast %229 : vector<8xf32> to vector<8x1xf32>
    %cst_70 = arith.constant dense<0.000000e+00> : vector<8x8xf32>
    %231 = tpu.matmul %228, %208, %cst_70 {dimension_numbers = #tpu.dot_dimension_numbers<[1], [0], [0], [1], [0, 0, 1, 1], [], []>} : vector<8x12xf32>, vector<12x8xf32>, vector<8x8xf32> -> vector<8x8xf32>
    %cst_71 = arith.constant 1.000000e-30 : f32
    %232 = vector.broadcast %cst_71 : f32 to vector<8x1xf32>
    %233 = arith.maximumf %230, %232 : vector<8x1xf32>
    %234 = tpu.reciprocal %233 {approx = true} : vector<8x1xf32> -> vector<8x1xf32>
    %235 = vector.broadcast %234 : vector<8x1xf32> to vector<8x8xf32>
    %236 = arith.mulf %231, %235 : vector<8x8xf32>
    %237 = vector.extract_strided_slice %139 {offsets = [0, 24], sizes = [12, 8], strides = [1, 1]} : vector<12x32xf32> to vector<12x8xf32>
    %238 = vector.extract_strided_slice %145 {offsets = [0, 24], sizes = [8, 8], strides = [1, 1]} : vector<8x32xf32> to vector<8x8xf32>
    %239 = vector.extract_strided_slice %140 {offsets = [0, 24], sizes = [1, 8], strides = [1, 1]} : vector<1x32xf32> to vector<1x8xf32>
    %cst_72 = arith.constant dense<0.000000e+00> : vector<1x12xf32>
    %240 = tpu.matmul %239, %237, %cst_72 {dimension_numbers = #tpu.dot_dimension_numbers<[1], [1], [0], [0], [0, 0, 1, 0], [], []>} : vector<1x8xf32>, vector<12x8xf32>, vector<1x12xf32> -> vector<1x12xf32>
    %241 = vector.extract_strided_slice %141 {offsets = [0, 24], sizes = [1, 8], strides = [1, 1]} : vector<1x32xf32> to vector<1x8xf32>
    %cst_73 = arith.constant dense<0.000000e+00> : vector<8x1xf32>
    %242 = tpu.matmul %238, %241, %cst_73 {dimension_numbers = #tpu.dot_dimension_numbers<[1], [1], [0], [0], [0, 0, 1, 0], [], []>} : vector<8x8xf32>, vector<1x8xf32>, vector<8x1xf32> -> vector<8x1xf32>
    %243 = vector.broadcast %242 : vector<8x1xf32> to vector<8x12xf32>
    %244 = vector.broadcast %240 : vector<1x12xf32> to vector<8x12xf32>
    %245 = arith.addf %243, %244 : vector<8x12xf32>
    %cst_74 = arith.constant 0.000000e+00 : f32
    %246 = vector.broadcast %cst_74 : f32 to vector<8x12xf32>
    %247 = arith.cmpf ogt, %245, %246 : vector<8x12xf32>
    %cst_75 = arith.constant 2.000000e-01 : f32
    %248 = vector.broadcast %cst_75 : f32 to vector<8x12xf32>
    %249 = arith.mulf %248, %245 : vector<8x12xf32>
    %250 = arith.select %247, %245, %249 : vector<8x12xi1>, vector<8x12xf32>
    %251 = arith.addf %250, %149 : vector<8x12xf32>
    %cst_76 = arith.constant dense<0xFF800000> : vector<8xf32>
    %252 = vector.multi_reduction <maximumf>, %251, %cst_76 [1] : vector<8x12xf32> to vector<8xf32>
    %253 = vector.shape_cast %252 : vector<8xf32> to vector<8x1xf32>
    %254 = vector.broadcast %253 : vector<8x1xf32> to vector<8x12xf32>
    %255 = arith.subf %251, %254 : vector<8x12xf32>
    %256 = math.exp %255 : vector<8x12xf32>
    %257 = arith.mulf %256, %144 : vector<8x12xf32>
    %cst_77 = arith.constant dense<0.000000e+00> : vector<8xf32>
    %258 = vector.multi_reduction <add>, %257, %cst_77 [1] : vector<8x12xf32> to vector<8xf32>
    %259 = vector.shape_cast %258 : vector<8xf32> to vector<8x1xf32>
    %cst_78 = arith.constant dense<0.000000e+00> : vector<8x8xf32>
    %260 = tpu.matmul %257, %237, %cst_78 {dimension_numbers = #tpu.dot_dimension_numbers<[1], [0], [0], [1], [0, 0, 1, 1], [], []>} : vector<8x12xf32>, vector<12x8xf32>, vector<8x8xf32> -> vector<8x8xf32>
    %cst_79 = arith.constant 1.000000e-30 : f32
    %261 = vector.broadcast %cst_79 : f32 to vector<8x1xf32>
    %262 = arith.maximumf %259, %261 : vector<8x1xf32>
    %263 = tpu.reciprocal %262 {approx = true} : vector<8x1xf32> -> vector<8x1xf32>
    %264 = vector.broadcast %263 : vector<8x1xf32> to vector<8x8xf32>
    %265 = arith.mulf %260, %264 : vector<8x8xf32>
    %266 = tpu.concatenate %178, %207, %236, %265 in 1 : vector<8x8xf32>, vector<8x8xf32>, vector<8x8xf32>, vector<8x8xf32> -> vector<8x32xf32>
    %267 = arith.addf %138, %266 : vector<8x32xf32>
    %268 = vector.broadcast %142 : vector<1x32xf32> to vector<8x32xf32>
    %269 = arith.addf %267, %268 : vector<8x32xf32>
    %c0_80 = arith.constant 0 : index
    %c0_81 = arith.constant 0 : index
    %270 = vector.load %arg5[%c0_80, %c0_81] : memref<4x32xf32, #tpu.memory_space<vmem>>, vector<4x32xf32>
    %271 = vector.extract_strided_slice %270 {offsets = [2, 0], sizes = [1, 32], strides = [1, 1]} : vector<4x32xf32> to vector<1x32xf32>
    %272 = vector.broadcast %271 : vector<1x32xf32> to vector<8x32xf32>
    %273 = arith.subf %269, %272 : vector<8x32xf32>
    %274 = vector.extract_strided_slice %270 {offsets = [3, 0], sizes = [1, 32], strides = [1, 1]} : vector<4x32xf32> to vector<1x32xf32>
    %cst_82 = arith.constant 9.99999974E-6 : f32
    %275 = vector.broadcast %cst_82 : f32 to vector<1x32xf32>
    %276 = arith.addf %274, %275 : vector<1x32xf32>
    %277 = math.rsqrt %276 : vector<1x32xf32>
    %278 = vector.broadcast %277 : vector<1x32xf32> to vector<8x32xf32>
    %279 = arith.mulf %273, %278 : vector<8x32xf32>
    %280 = vector.extract_strided_slice %270 {offsets = [0, 0], sizes = [1, 32], strides = [1, 1]} : vector<4x32xf32> to vector<1x32xf32>
    %281 = vector.broadcast %280 : vector<1x32xf32> to vector<8x32xf32>
    %282 = arith.mulf %279, %281 : vector<8x32xf32>
    %283 = vector.extract_strided_slice %270 {offsets = [1, 0], sizes = [1, 32], strides = [1, 1]} : vector<4x32xf32> to vector<1x32xf32>
    %284 = vector.broadcast %283 : vector<1x32xf32> to vector<8x32xf32>
    %285 = arith.addf %282, %284 : vector<8x32xf32>
    %cst_83 = arith.constant 0.000000e+00 : f32
    %286 = vector.broadcast %cst_83 : f32 to vector<8x32xf32>
    %287 = arith.cmpf ogt, %285, %286 : vector<8x32xf32>
    %cst_84 = arith.constant 0.000000e+00 : f32
    %288 = vector.broadcast %cst_84 : f32 to vector<8x32xf32>
    %289 = arith.minimumf %285, %288 : vector<8x32xf32>
    %290 = math.exp %289 : vector<8x32xf32>
    %cst_85 = arith.constant 1.000000e+00 : f32
    %291 = vector.broadcast %cst_85 : f32 to vector<8x32xf32>
    %292 = arith.subf %290, %291 : vector<8x32xf32>
    %293 = arith.select %287, %285, %292 : vector<8x32xi1>, vector<8x32xf32>
    %c0_86 = arith.constant 0 : index
    %c0_87 = arith.constant 0 : index
    %294 = vector.load %arg6[%c0_86, %c0_87] : memref<32x96xf32, #tpu.memory_space<vmem>>, vector<32x96xf32>
    %cst_88 = arith.constant dense<0.000000e+00> : vector<8x96xf32>
    %295 = tpu.matmul %293, %294, %cst_88 {dimension_numbers = #tpu.dot_dimension_numbers<[1], [0], [0], [1], [0, 0, 1, 1], [], []>} : vector<8x32xf32>, vector<32x96xf32>, vector<8x96xf32> -> vector<8x96xf32>
    %296 = vector.extract_strided_slice %295 {offsets = [0, 0], sizes = [4, 32], strides = [1, 1]} : vector<8x96xf32> to vector<4x32xf32>
    %c0_89 = arith.constant 0 : index
    %c0_90 = arith.constant 0 : index
    %297 = vector.load %arg7[%c0_89, %c0_90] : memref<1x32xf32, #tpu.memory_space<vmem>>, vector<1x32xf32>
    %298 = vector.broadcast %297 : vector<1x32xf32> to vector<4x32xf32>
    %299 = arith.addf %296, %298 : vector<4x32xf32>
    %c0_91 = arith.constant 0 : index
    %c0_92 = arith.constant 0 : index
    %300 = vector.load %arg8[%c0_91, %c0_92] : memref<6x32xf32, #tpu.memory_space<vmem>>, vector<6x32xf32>
    %301 = vector.extract_strided_slice %295 {offsets = [0, 32], sizes = [8, 32], strides = [1, 1]} : vector<8x96xf32> to vector<8x32xf32>
    %302 = vector.extract_strided_slice %300 {offsets = [0, 0], sizes = [1, 32], strides = [1, 1]} : vector<6x32xf32> to vector<1x32xf32>
    %303 = vector.extract_strided_slice %300 {offsets = [1, 0], sizes = [1, 32], strides = [1, 1]} : vector<6x32xf32> to vector<1x32xf32>
    %304 = vector.extract_strided_slice %300 {offsets = [2, 0], sizes = [1, 32], strides = [1, 1]} : vector<6x32xf32> to vector<1x32xf32>
    %c0_93 = arith.constant 0 : index
    %c0_94 = arith.constant 0 : index
    %c0_95 = arith.constant 0 : index
    %305 = vector.load %arg9[%c0_93, %c0_94, %c0_95] : memref<2x4x8xf32, #tpu.memory_space<vmem>>, vector<1x4x8xf32>
    %306 = vector.shape_cast %305 : vector<1x4x8xf32> to vector<4x8xf32>
    %307 = vector.extract_strided_slice %301 {offsets = [0, 0], sizes = [4, 32], strides = [1, 1]} : vector<8x32xf32> to vector<4x32xf32>
    %cst_96 = arith.constant 1.000000e+00 : f32
    %308 = vector.broadcast %cst_96 : f32 to vector<4x8xf32>
    %309 = arith.subf %308, %306 : vector<4x8xf32>
    %cst_97 = arith.constant -1.000000e+30 : f32
    %310 = vector.broadcast %cst_97 : f32 to vector<4x8xf32>
    %311 = arith.mulf %309, %310 : vector<4x8xf32>
    %312 = vector.extract_strided_slice %301 {offsets = [0, 0], sizes = [8, 8], strides = [1, 1]} : vector<8x32xf32> to vector<8x8xf32>
    %313 = vector.extract_strided_slice %307 {offsets = [0, 0], sizes = [4, 8], strides = [1, 1]} : vector<4x32xf32> to vector<4x8xf32>
    %314 = vector.extract_strided_slice %302 {offsets = [0, 0], sizes = [1, 8], strides = [1, 1]} : vector<1x32xf32> to vector<1x8xf32>
    %cst_98 = arith.constant dense<0.000000e+00> : vector<1x8xf32>
    %315 = tpu.matmul %314, %312, %cst_98 {dimension_numbers = #tpu.dot_dimension_numbers<[1], [1], [0], [0], [0, 0, 1, 0], [], []>} : vector<1x8xf32>, vector<8x8xf32>, vector<1x8xf32> -> vector<1x8xf32>
    %316 = vector.extract_strided_slice %303 {offsets = [0, 0], sizes = [1, 8], strides = [1, 1]} : vector<1x32xf32> to vector<1x8xf32>
    %cst_99 = arith.constant dense<0.000000e+00> : vector<4x1xf32>
    %317 = tpu.matmul %313, %316, %cst_99 {dimension_numbers = #tpu.dot_dimension_numbers<[1], [1], [0], [0], [0, 0, 1, 0], [], []>} : vector<4x8xf32>, vector<1x8xf32>, vector<4x1xf32> -> vector<4x1xf32>
    %318 = vector.broadcast %317 : vector<4x1xf32> to vector<4x8xf32>
    %319 = vector.broadcast %315 : vector<1x8xf32> to vector<4x8xf32>
    %320 = arith.addf %318, %319 : vector<4x8xf32>
    %cst_100 = arith.constant 0.000000e+00 : f32
    %321 = vector.broadcast %cst_100 : f32 to vector<4x8xf32>
    %322 = arith.cmpf ogt, %320, %321 : vector<4x8xf32>
    %cst_101 = arith.constant 2.000000e-01 : f32
    %323 = vector.broadcast %cst_101 : f32 to vector<4x8xf32>
    %324 = arith.mulf %323, %320 : vector<4x8xf32>
    %325 = arith.select %322, %320, %324 : vector<4x8xi1>, vector<4x8xf32>
    %326 = arith.addf %325, %311 : vector<4x8xf32>
    %cst_102 = arith.constant dense<0xFF800000> : vector<4xf32>
    %327 = vector.multi_reduction <maximumf>, %326, %cst_102 [1] : vector<4x8xf32> to vector<4xf32>
    %328 = vector.shape_cast %327 : vector<4xf32> to vector<4x1xf32>
    %329 = vector.broadcast %328 : vector<4x1xf32> to vector<4x8xf32>
    %330 = arith.subf %326, %329 : vector<4x8xf32>
    %331 = math.exp %330 : vector<4x8xf32>
    %332 = arith.mulf %331, %306 : vector<4x8xf32>
    %cst_103 = arith.constant dense<0.000000e+00> : vector<4xf32>
    %333 = vector.multi_reduction <add>, %332, %cst_103 [1] : vector<4x8xf32> to vector<4xf32>
    %334 = vector.shape_cast %333 : vector<4xf32> to vector<4x1xf32>
    %cst_104 = arith.constant dense<0.000000e+00> : vector<4x8xf32>
    %335 = tpu.matmul %332, %312, %cst_104 {dimension_numbers = #tpu.dot_dimension_numbers<[1], [0], [0], [1], [0, 0, 1, 1], [], []>} : vector<4x8xf32>, vector<8x8xf32>, vector<4x8xf32> -> vector<4x8xf32>
    %cst_105 = arith.constant 1.000000e-30 : f32
    %336 = vector.broadcast %cst_105 : f32 to vector<4x1xf32>
    %337 = arith.maximumf %334, %336 : vector<4x1xf32>
    %338 = tpu.reciprocal %337 {approx = true} : vector<4x1xf32> -> vector<4x1xf32>
    %339 = vector.broadcast %338 : vector<4x1xf32> to vector<4x8xf32>
    %340 = arith.mulf %335, %339 : vector<4x8xf32>
    %341 = vector.extract_strided_slice %301 {offsets = [0, 8], sizes = [8, 8], strides = [1, 1]} : vector<8x32xf32> to vector<8x8xf32>
    %342 = vector.extract_strided_slice %307 {offsets = [0, 8], sizes = [4, 8], strides = [1, 1]} : vector<4x32xf32> to vector<4x8xf32>
    %343 = vector.extract_strided_slice %302 {offsets = [0, 8], sizes = [1, 8], strides = [1, 1]} : vector<1x32xf32> to vector<1x8xf32>
    %cst_106 = arith.constant dense<0.000000e+00> : vector<1x8xf32>
    %344 = tpu.matmul %343, %341, %cst_106 {dimension_numbers = #tpu.dot_dimension_numbers<[1], [1], [0], [0], [0, 0, 1, 0], [], []>} : vector<1x8xf32>, vector<8x8xf32>, vector<1x8xf32> -> vector<1x8xf32>
    %345 = vector.extract_strided_slice %303 {offsets = [0, 8], sizes = [1, 8], strides = [1, 1]} : vector<1x32xf32> to vector<1x8xf32>
    %cst_107 = arith.constant dense<0.000000e+00> : vector<4x1xf32>
    %346 = tpu.matmul %342, %345, %cst_107 {dimension_numbers = #tpu.dot_dimension_numbers<[1], [1], [0], [0], [0, 0, 1, 0], [], []>} : vector<4x8xf32>, vector<1x8xf32>, vector<4x1xf32> -> vector<4x1xf32>
    %347 = vector.broadcast %346 : vector<4x1xf32> to vector<4x8xf32>
    %348 = vector.broadcast %344 : vector<1x8xf32> to vector<4x8xf32>
    %349 = arith.addf %347, %348 : vector<4x8xf32>
    %cst_108 = arith.constant 0.000000e+00 : f32
    %350 = vector.broadcast %cst_108 : f32 to vector<4x8xf32>
    %351 = arith.cmpf ogt, %349, %350 : vector<4x8xf32>
    %cst_109 = arith.constant 2.000000e-01 : f32
    %352 = vector.broadcast %cst_109 : f32 to vector<4x8xf32>
    %353 = arith.mulf %352, %349 : vector<4x8xf32>
    %354 = arith.select %351, %349, %353 : vector<4x8xi1>, vector<4x8xf32>
    %355 = arith.addf %354, %311 : vector<4x8xf32>
    %cst_110 = arith.constant dense<0xFF800000> : vector<4xf32>
    %356 = vector.multi_reduction <maximumf>, %355, %cst_110 [1] : vector<4x8xf32> to vector<4xf32>
    %357 = vector.shape_cast %356 : vector<4xf32> to vector<4x1xf32>
    %358 = vector.broadcast %357 : vector<4x1xf32> to vector<4x8xf32>
    %359 = arith.subf %355, %358 : vector<4x8xf32>
    %360 = math.exp %359 : vector<4x8xf32>
    %361 = arith.mulf %360, %306 : vector<4x8xf32>
    %cst_111 = arith.constant dense<0.000000e+00> : vector<4xf32>
    %362 = vector.multi_reduction <add>, %361, %cst_111 [1] : vector<4x8xf32> to vector<4xf32>
    %363 = vector.shape_cast %362 : vector<4xf32> to vector<4x1xf32>
    %cst_112 = arith.constant dense<0.000000e+00> : vector<4x8xf32>
    %364 = tpu.matmul %361, %341, %cst_112 {dimension_numbers = #tpu.dot_dimension_numbers<[1], [0], [0], [1], [0, 0, 1, 1], [], []>} : vector<4x8xf32>, vector<8x8xf32>, vector<4x8xf32> -> vector<4x8xf32>
    %cst_113 = arith.constant 1.000000e-30 : f32
    %365 = vector.broadcast %cst_113 : f32 to vector<4x1xf32>
    %366 = arith.maximumf %363, %365 : vector<4x1xf32>
    %367 = tpu.reciprocal %366 {approx = true} : vector<4x1xf32> -> vector<4x1xf32>
    %368 = vector.broadcast %367 : vector<4x1xf32> to vector<4x8xf32>
    %369 = arith.mulf %364, %368 : vector<4x8xf32>
    %370 = vector.extract_strided_slice %301 {offsets = [0, 16], sizes = [8, 8], strides = [1, 1]} : vector<8x32xf32> to vector<8x8xf32>
    %371 = vector.extract_strided_slice %307 {offsets = [0, 16], sizes = [4, 8], strides = [1, 1]} : vector<4x32xf32> to vector<4x8xf32>
    %372 = vector.extract_strided_slice %302 {offsets = [0, 16], sizes = [1, 8], strides = [1, 1]} : vector<1x32xf32> to vector<1x8xf32>
    %cst_114 = arith.constant dense<0.000000e+00> : vector<1x8xf32>
    %373 = tpu.matmul %372, %370, %cst_114 {dimension_numbers = #tpu.dot_dimension_numbers<[1], [1], [0], [0], [0, 0, 1, 0], [], []>} : vector<1x8xf32>, vector<8x8xf32>, vector<1x8xf32> -> vector<1x8xf32>
    %374 = vector.extract_strided_slice %303 {offsets = [0, 16], sizes = [1, 8], strides = [1, 1]} : vector<1x32xf32> to vector<1x8xf32>
    %cst_115 = arith.constant dense<0.000000e+00> : vector<4x1xf32>
    %375 = tpu.matmul %371, %374, %cst_115 {dimension_numbers = #tpu.dot_dimension_numbers<[1], [1], [0], [0], [0, 0, 1, 0], [], []>} : vector<4x8xf32>, vector<1x8xf32>, vector<4x1xf32> -> vector<4x1xf32>
    %376 = vector.broadcast %375 : vector<4x1xf32> to vector<4x8xf32>
    %377 = vector.broadcast %373 : vector<1x8xf32> to vector<4x8xf32>
    %378 = arith.addf %376, %377 : vector<4x8xf32>
    %cst_116 = arith.constant 0.000000e+00 : f32
    %379 = vector.broadcast %cst_116 : f32 to vector<4x8xf32>
    %380 = arith.cmpf ogt, %378, %379 : vector<4x8xf32>
    %cst_117 = arith.constant 2.000000e-01 : f32
    %381 = vector.broadcast %cst_117 : f32 to vector<4x8xf32>
    %382 = arith.mulf %381, %378 : vector<4x8xf32>
    %383 = arith.select %380, %378, %382 : vector<4x8xi1>, vector<4x8xf32>
    %384 = arith.addf %383, %311 : vector<4x8xf32>
    %cst_118 = arith.constant dense<0xFF800000> : vector<4xf32>
    %385 = vector.multi_reduction <maximumf>, %384, %cst_118 [1] : vector<4x8xf32> to vector<4xf32>
    %386 = vector.shape_cast %385 : vector<4xf32> to vector<4x1xf32>
    %387 = vector.broadcast %386 : vector<4x1xf32> to vector<4x8xf32>
    %388 = arith.subf %384, %387 : vector<4x8xf32>
    %389 = math.exp %388 : vector<4x8xf32>
    %390 = arith.mulf %389, %306 : vector<4x8xf32>
    %cst_119 = arith.constant dense<0.000000e+00> : vector<4xf32>
    %391 = vector.multi_reduction <add>, %390, %cst_119 [1] : vector<4x8xf32> to vector<4xf32>
    %392 = vector.shape_cast %391 : vector<4xf32> to vector<4x1xf32>
    %cst_120 = arith.constant dense<0.000000e+00> : vector<4x8xf32>
    %393 = tpu.matmul %390, %370, %cst_120 {dimension_numbers = #tpu.dot_dimension_numbers<[1], [0], [0], [1], [0, 0, 1, 1], [], []>} : vector<4x8xf32>, vector<8x8xf32>, vector<4x8xf32> -> vector<4x8xf32>
    %cst_121 = arith.constant 1.000000e-30 : f32
    %394 = vector.broadcast %cst_121 : f32 to vector<4x1xf32>
    %395 = arith.maximumf %392, %394 : vector<4x1xf32>
    %396 = tpu.reciprocal %395 {approx = true} : vector<4x1xf32> -> vector<4x1xf32>
    %397 = vector.broadcast %396 : vector<4x1xf32> to vector<4x8xf32>
    %398 = arith.mulf %393, %397 : vector<4x8xf32>
    %399 = vector.extract_strided_slice %301 {offsets = [0, 24], sizes = [8, 8], strides = [1, 1]} : vector<8x32xf32> to vector<8x8xf32>
    %400 = vector.extract_strided_slice %307 {offsets = [0, 24], sizes = [4, 8], strides = [1, 1]} : vector<4x32xf32> to vector<4x8xf32>
    %401 = vector.extract_strided_slice %302 {offsets = [0, 24], sizes = [1, 8], strides = [1, 1]} : vector<1x32xf32> to vector<1x8xf32>
    %cst_122 = arith.constant dense<0.000000e+00> : vector<1x8xf32>
    %402 = tpu.matmul %401, %399, %cst_122 {dimension_numbers = #tpu.dot_dimension_numbers<[1], [1], [0], [0], [0, 0, 1, 0], [], []>} : vector<1x8xf32>, vector<8x8xf32>, vector<1x8xf32> -> vector<1x8xf32>
    %403 = vector.extract_strided_slice %303 {offsets = [0, 24], sizes = [1, 8], strides = [1, 1]} : vector<1x32xf32> to vector<1x8xf32>
    %cst_123 = arith.constant dense<0.000000e+00> : vector<4x1xf32>
    %404 = tpu.matmul %400, %403, %cst_123 {dimension_numbers = #tpu.dot_dimension_numbers<[1], [1], [0], [0], [0, 0, 1, 0], [], []>} : vector<4x8xf32>, vector<1x8xf32>, vector<4x1xf32> -> vector<4x1xf32>
    %405 = vector.broadcast %404 : vector<4x1xf32> to vector<4x8xf32>
    %406 = vector.broadcast %402 : vector<1x8xf32> to vector<4x8xf32>
    %407 = arith.addf %405, %406 : vector<4x8xf32>
    %cst_124 = arith.constant 0.000000e+00 : f32
    %408 = vector.broadcast %cst_124 : f32 to vector<4x8xf32>
    %409 = arith.cmpf ogt, %407, %408 : vector<4x8xf32>
    %cst_125 = arith.constant 2.000000e-01 : f32
    %410 = vector.broadcast %cst_125 : f32 to vector<4x8xf32>
    %411 = arith.mulf %410, %407 : vector<4x8xf32>
    %412 = arith.select %409, %407, %411 : vector<4x8xi1>, vector<4x8xf32>
    %413 = arith.addf %412, %311 : vector<4x8xf32>
    %cst_126 = arith.constant dense<0xFF800000> : vector<4xf32>
    %414 = vector.multi_reduction <maximumf>, %413, %cst_126 [1] : vector<4x8xf32> to vector<4xf32>
    %415 = vector.shape_cast %414 : vector<4xf32> to vector<4x1xf32>
    %416 = vector.broadcast %415 : vector<4x1xf32> to vector<4x8xf32>
    %417 = arith.subf %413, %416 : vector<4x8xf32>
    %418 = math.exp %417 : vector<4x8xf32>
    %419 = arith.mulf %418, %306 : vector<4x8xf32>
    %cst_127 = arith.constant dense<0.000000e+00> : vector<4xf32>
    %420 = vector.multi_reduction <add>, %419, %cst_127 [1] : vector<4x8xf32> to vector<4xf32>
    %421 = vector.shape_cast %420 : vector<4xf32> to vector<4x1xf32>
    %cst_128 = arith.constant dense<0.000000e+00> : vector<4x8xf32>
    %422 = tpu.matmul %419, %399, %cst_128 {dimension_numbers = #tpu.dot_dimension_numbers<[1], [0], [0], [1], [0, 0, 1, 1], [], []>} : vector<4x8xf32>, vector<8x8xf32>, vector<4x8xf32> -> vector<4x8xf32>
    %cst_129 = arith.constant 1.000000e-30 : f32
    %423 = vector.broadcast %cst_129 : f32 to vector<4x1xf32>
    %424 = arith.maximumf %421, %423 : vector<4x1xf32>
    %425 = tpu.reciprocal %424 {approx = true} : vector<4x1xf32> -> vector<4x1xf32>
    %426 = vector.broadcast %425 : vector<4x1xf32> to vector<4x8xf32>
    %427 = arith.mulf %422, %426 : vector<4x8xf32>
    %428 = tpu.concatenate %340, %369, %398, %427 in 1 : vector<4x8xf32>, vector<4x8xf32>, vector<4x8xf32>, vector<4x8xf32> -> vector<4x32xf32>
    %429 = arith.addf %299, %428 : vector<4x32xf32>
    %430 = vector.broadcast %304 : vector<1x32xf32> to vector<4x32xf32>
    %431 = arith.addf %429, %430 : vector<4x32xf32>
    %432 = vector.extract_strided_slice %295 {offsets = [0, 64], sizes = [8, 32], strides = [1, 1]} : vector<8x96xf32> to vector<8x32xf32>
    %433 = vector.extract_strided_slice %300 {offsets = [3, 0], sizes = [1, 32], strides = [1, 1]} : vector<6x32xf32> to vector<1x32xf32>
    %434 = vector.extract_strided_slice %300 {offsets = [4, 0], sizes = [1, 32], strides = [1, 1]} : vector<6x32xf32> to vector<1x32xf32>
    %435 = vector.extract_strided_slice %300 {offsets = [5, 0], sizes = [1, 32], strides = [1, 1]} : vector<6x32xf32> to vector<1x32xf32>
    %c1_130 = arith.constant 1 : index
    %c0_131 = arith.constant 0 : index
    %c0_132 = arith.constant 0 : index
    %436 = vector.load %arg9[%c1_130, %c0_131, %c0_132] : memref<2x4x8xf32, #tpu.memory_space<vmem>>, vector<1x4x8xf32>
    %437 = vector.shape_cast %436 : vector<1x4x8xf32> to vector<4x8xf32>
    %438 = vector.extract_strided_slice %432 {offsets = [0, 0], sizes = [4, 32], strides = [1, 1]} : vector<8x32xf32> to vector<4x32xf32>
    %cst_133 = arith.constant 1.000000e+00 : f32
    %439 = vector.broadcast %cst_133 : f32 to vector<4x8xf32>
    %440 = arith.subf %439, %437 : vector<4x8xf32>
    %cst_134 = arith.constant -1.000000e+30 : f32
    %441 = vector.broadcast %cst_134 : f32 to vector<4x8xf32>
    %442 = arith.mulf %440, %441 : vector<4x8xf32>
    %443 = vector.extract_strided_slice %432 {offsets = [0, 0], sizes = [8, 8], strides = [1, 1]} : vector<8x32xf32> to vector<8x8xf32>
    %444 = vector.extract_strided_slice %438 {offsets = [0, 0], sizes = [4, 8], strides = [1, 1]} : vector<4x32xf32> to vector<4x8xf32>
    %445 = vector.extract_strided_slice %433 {offsets = [0, 0], sizes = [1, 8], strides = [1, 1]} : vector<1x32xf32> to vector<1x8xf32>
    %cst_135 = arith.constant dense<0.000000e+00> : vector<1x8xf32>
    %446 = tpu.matmul %445, %443, %cst_135 {dimension_numbers = #tpu.dot_dimension_numbers<[1], [1], [0], [0], [0, 0, 1, 0], [], []>} : vector<1x8xf32>, vector<8x8xf32>, vector<1x8xf32> -> vector<1x8xf32>
    %447 = vector.extract_strided_slice %434 {offsets = [0, 0], sizes = [1, 8], strides = [1, 1]} : vector<1x32xf32> to vector<1x8xf32>
    %cst_136 = arith.constant dense<0.000000e+00> : vector<4x1xf32>
    %448 = tpu.matmul %444, %447, %cst_136 {dimension_numbers = #tpu.dot_dimension_numbers<[1], [1], [0], [0], [0, 0, 1, 0], [], []>} : vector<4x8xf32>, vector<1x8xf32>, vector<4x1xf32> -> vector<4x1xf32>
    %449 = vector.broadcast %448 : vector<4x1xf32> to vector<4x8xf32>
    %450 = vector.broadcast %446 : vector<1x8xf32> to vector<4x8xf32>
    %451 = arith.addf %449, %450 : vector<4x8xf32>
    %cst_137 = arith.constant 0.000000e+00 : f32
    %452 = vector.broadcast %cst_137 : f32 to vector<4x8xf32>
    %453 = arith.cmpf ogt, %451, %452 : vector<4x8xf32>
    %cst_138 = arith.constant 2.000000e-01 : f32
    %454 = vector.broadcast %cst_138 : f32 to vector<4x8xf32>
    %455 = arith.mulf %454, %451 : vector<4x8xf32>
    %456 = arith.select %453, %451, %455 : vector<4x8xi1>, vector<4x8xf32>
    %457 = arith.addf %456, %442 : vector<4x8xf32>
    %cst_139 = arith.constant dense<0xFF800000> : vector<4xf32>
    %458 = vector.multi_reduction <maximumf>, %457, %cst_139 [1] : vector<4x8xf32> to vector<4xf32>
    %459 = vector.shape_cast %458 : vector<4xf32> to vector<4x1xf32>
    %460 = vector.broadcast %459 : vector<4x1xf32> to vector<4x8xf32>
    %461 = arith.subf %457, %460 : vector<4x8xf32>
    %462 = math.exp %461 : vector<4x8xf32>
    %463 = arith.mulf %462, %437 : vector<4x8xf32>
    %cst_140 = arith.constant dense<0.000000e+00> : vector<4xf32>
    %464 = vector.multi_reduction <add>, %463, %cst_140 [1] : vector<4x8xf32> to vector<4xf32>
    %465 = vector.shape_cast %464 : vector<4xf32> to vector<4x1xf32>
    %cst_141 = arith.constant dense<0.000000e+00> : vector<4x8xf32>
    %466 = tpu.matmul %463, %443, %cst_141 {dimension_numbers = #tpu.dot_dimension_numbers<[1], [0], [0], [1], [0, 0, 1, 1], [], []>} : vector<4x8xf32>, vector<8x8xf32>, vector<4x8xf32> -> vector<4x8xf32>
    %cst_142 = arith.constant 1.000000e-30 : f32
    %467 = vector.broadcast %cst_142 : f32 to vector<4x1xf32>
    %468 = arith.maximumf %465, %467 : vector<4x1xf32>
    %469 = tpu.reciprocal %468 {approx = true} : vector<4x1xf32> -> vector<4x1xf32>
    %470 = vector.broadcast %469 : vector<4x1xf32> to vector<4x8xf32>
    %471 = arith.mulf %466, %470 : vector<4x8xf32>
    %472 = vector.extract_strided_slice %432 {offsets = [0, 8], sizes = [8, 8], strides = [1, 1]} : vector<8x32xf32> to vector<8x8xf32>
    %473 = vector.extract_strided_slice %438 {offsets = [0, 8], sizes = [4, 8], strides = [1, 1]} : vector<4x32xf32> to vector<4x8xf32>
    %474 = vector.extract_strided_slice %433 {offsets = [0, 8], sizes = [1, 8], strides = [1, 1]} : vector<1x32xf32> to vector<1x8xf32>
    %cst_143 = arith.constant dense<0.000000e+00> : vector<1x8xf32>
    %475 = tpu.matmul %474, %472, %cst_143 {dimension_numbers = #tpu.dot_dimension_numbers<[1], [1], [0], [0], [0, 0, 1, 0], [], []>} : vector<1x8xf32>, vector<8x8xf32>, vector<1x8xf32> -> vector<1x8xf32>
    %476 = vector.extract_strided_slice %434 {offsets = [0, 8], sizes = [1, 8], strides = [1, 1]} : vector<1x32xf32> to vector<1x8xf32>
    %cst_144 = arith.constant dense<0.000000e+00> : vector<4x1xf32>
    %477 = tpu.matmul %473, %476, %cst_144 {dimension_numbers = #tpu.dot_dimension_numbers<[1], [1], [0], [0], [0, 0, 1, 0], [], []>} : vector<4x8xf32>, vector<1x8xf32>, vector<4x1xf32> -> vector<4x1xf32>
    %478 = vector.broadcast %477 : vector<4x1xf32> to vector<4x8xf32>
    %479 = vector.broadcast %475 : vector<1x8xf32> to vector<4x8xf32>
    %480 = arith.addf %478, %479 : vector<4x8xf32>
    %cst_145 = arith.constant 0.000000e+00 : f32
    %481 = vector.broadcast %cst_145 : f32 to vector<4x8xf32>
    %482 = arith.cmpf ogt, %480, %481 : vector<4x8xf32>
    %cst_146 = arith.constant 2.000000e-01 : f32
    %483 = vector.broadcast %cst_146 : f32 to vector<4x8xf32>
    %484 = arith.mulf %483, %480 : vector<4x8xf32>
    %485 = arith.select %482, %480, %484 : vector<4x8xi1>, vector<4x8xf32>
    %486 = arith.addf %485, %442 : vector<4x8xf32>
    %cst_147 = arith.constant dense<0xFF800000> : vector<4xf32>
    %487 = vector.multi_reduction <maximumf>, %486, %cst_147 [1] : vector<4x8xf32> to vector<4xf32>
    %488 = vector.shape_cast %487 : vector<4xf32> to vector<4x1xf32>
    %489 = vector.broadcast %488 : vector<4x1xf32> to vector<4x8xf32>
    %490 = arith.subf %486, %489 : vector<4x8xf32>
    %491 = math.exp %490 : vector<4x8xf32>
    %492 = arith.mulf %491, %437 : vector<4x8xf32>
    %cst_148 = arith.constant dense<0.000000e+00> : vector<4xf32>
    %493 = vector.multi_reduction <add>, %492, %cst_148 [1] : vector<4x8xf32> to vector<4xf32>
    %494 = vector.shape_cast %493 : vector<4xf32> to vector<4x1xf32>
    %cst_149 = arith.constant dense<0.000000e+00> : vector<4x8xf32>
    %495 = tpu.matmul %492, %472, %cst_149 {dimension_numbers = #tpu.dot_dimension_numbers<[1], [0], [0], [1], [0, 0, 1, 1], [], []>} : vector<4x8xf32>, vector<8x8xf32>, vector<4x8xf32> -> vector<4x8xf32>
    %cst_150 = arith.constant 1.000000e-30 : f32
    %496 = vector.broadcast %cst_150 : f32 to vector<4x1xf32>
    %497 = arith.maximumf %494, %496 : vector<4x1xf32>
    %498 = tpu.reciprocal %497 {approx = true} : vector<4x1xf32> -> vector<4x1xf32>
    %499 = vector.broadcast %498 : vector<4x1xf32> to vector<4x8xf32>
    %500 = arith.mulf %495, %499 : vector<4x8xf32>
    %501 = vector.extract_strided_slice %432 {offsets = [0, 16], sizes = [8, 8], strides = [1, 1]} : vector<8x32xf32> to vector<8x8xf32>
    %502 = vector.extract_strided_slice %438 {offsets = [0, 16], sizes = [4, 8], strides = [1, 1]} : vector<4x32xf32> to vector<4x8xf32>
    %503 = vector.extract_strided_slice %433 {offsets = [0, 16], sizes = [1, 8], strides = [1, 1]} : vector<1x32xf32> to vector<1x8xf32>
    %cst_151 = arith.constant dense<0.000000e+00> : vector<1x8xf32>
    %504 = tpu.matmul %503, %501, %cst_151 {dimension_numbers = #tpu.dot_dimension_numbers<[1], [1], [0], [0], [0, 0, 1, 0], [], []>} : vector<1x8xf32>, vector<8x8xf32>, vector<1x8xf32> -> vector<1x8xf32>
    %505 = vector.extract_strided_slice %434 {offsets = [0, 16], sizes = [1, 8], strides = [1, 1]} : vector<1x32xf32> to vector<1x8xf32>
    %cst_152 = arith.constant dense<0.000000e+00> : vector<4x1xf32>
    %506 = tpu.matmul %502, %505, %cst_152 {dimension_numbers = #tpu.dot_dimension_numbers<[1], [1], [0], [0], [0, 0, 1, 0], [], []>} : vector<4x8xf32>, vector<1x8xf32>, vector<4x1xf32> -> vector<4x1xf32>
    %507 = vector.broadcast %506 : vector<4x1xf32> to vector<4x8xf32>
    %508 = vector.broadcast %504 : vector<1x8xf32> to vector<4x8xf32>
    %509 = arith.addf %507, %508 : vector<4x8xf32>
    %cst_153 = arith.constant 0.000000e+00 : f32
    %510 = vector.broadcast %cst_153 : f32 to vector<4x8xf32>
    %511 = arith.cmpf ogt, %509, %510 : vector<4x8xf32>
    %cst_154 = arith.constant 2.000000e-01 : f32
    %512 = vector.broadcast %cst_154 : f32 to vector<4x8xf32>
    %513 = arith.mulf %512, %509 : vector<4x8xf32>
    %514 = arith.select %511, %509, %513 : vector<4x8xi1>, vector<4x8xf32>
    %515 = arith.addf %514, %442 : vector<4x8xf32>
    %cst_155 = arith.constant dense<0xFF800000> : vector<4xf32>
    %516 = vector.multi_reduction <maximumf>, %515, %cst_155 [1] : vector<4x8xf32> to vector<4xf32>
    %517 = vector.shape_cast %516 : vector<4xf32> to vector<4x1xf32>
    %518 = vector.broadcast %517 : vector<4x1xf32> to vector<4x8xf32>
    %519 = arith.subf %515, %518 : vector<4x8xf32>
    %520 = math.exp %519 : vector<4x8xf32>
    %521 = arith.mulf %520, %437 : vector<4x8xf32>
    %cst_156 = arith.constant dense<0.000000e+00> : vector<4xf32>
    %522 = vector.multi_reduction <add>, %521, %cst_156 [1] : vector<4x8xf32> to vector<4xf32>
    %523 = vector.shape_cast %522 : vector<4xf32> to vector<4x1xf32>
    %cst_157 = arith.constant dense<0.000000e+00> : vector<4x8xf32>
    %524 = tpu.matmul %521, %501, %cst_157 {dimension_numbers = #tpu.dot_dimension_numbers<[1], [0], [0], [1], [0, 0, 1, 1], [], []>} : vector<4x8xf32>, vector<8x8xf32>, vector<4x8xf32> -> vector<4x8xf32>
    %cst_158 = arith.constant 1.000000e-30 : f32
    %525 = vector.broadcast %cst_158 : f32 to vector<4x1xf32>
    %526 = arith.maximumf %523, %525 : vector<4x1xf32>
    %527 = tpu.reciprocal %526 {approx = true} : vector<4x1xf32> -> vector<4x1xf32>
    %528 = vector.broadcast %527 : vector<4x1xf32> to vector<4x8xf32>
    %529 = arith.mulf %524, %528 : vector<4x8xf32>
    %530 = vector.extract_strided_slice %432 {offsets = [0, 24], sizes = [8, 8], strides = [1, 1]} : vector<8x32xf32> to vector<8x8xf32>
    %531 = vector.extract_strided_slice %438 {offsets = [0, 24], sizes = [4, 8], strides = [1, 1]} : vector<4x32xf32> to vector<4x8xf32>
    %532 = vector.extract_strided_slice %433 {offsets = [0, 24], sizes = [1, 8], strides = [1, 1]} : vector<1x32xf32> to vector<1x8xf32>
    %cst_159 = arith.constant dense<0.000000e+00> : vector<1x8xf32>
    %533 = tpu.matmul %532, %530, %cst_159 {dimension_numbers = #tpu.dot_dimension_numbers<[1], [1], [0], [0], [0, 0, 1, 0], [], []>} : vector<1x8xf32>, vector<8x8xf32>, vector<1x8xf32> -> vector<1x8xf32>
    %534 = vector.extract_strided_slice %434 {offsets = [0, 24], sizes = [1, 8], strides = [1, 1]} : vector<1x32xf32> to vector<1x8xf32>
    %cst_160 = arith.constant dense<0.000000e+00> : vector<4x1xf32>
    %535 = tpu.matmul %531, %534, %cst_160 {dimension_numbers = #tpu.dot_dimension_numbers<[1], [1], [0], [0], [0, 0, 1, 0], [], []>} : vector<4x8xf32>, vector<1x8xf32>, vector<4x1xf32> -> vector<4x1xf32>
    %536 = vector.broadcast %535 : vector<4x1xf32> to vector<4x8xf32>
    %537 = vector.broadcast %533 : vector<1x8xf32> to vector<4x8xf32>
    %538 = arith.addf %536, %537 : vector<4x8xf32>
    %cst_161 = arith.constant 0.000000e+00 : f32
    %539 = vector.broadcast %cst_161 : f32 to vector<4x8xf32>
    %540 = arith.cmpf ogt, %538, %539 : vector<4x8xf32>
    %cst_162 = arith.constant 2.000000e-01 : f32
    %541 = vector.broadcast %cst_162 : f32 to vector<4x8xf32>
    %542 = arith.mulf %541, %538 : vector<4x8xf32>
    %543 = arith.select %540, %538, %542 : vector<4x8xi1>, vector<4x8xf32>
    %544 = arith.addf %543, %442 : vector<4x8xf32>
    %cst_163 = arith.constant dense<0xFF800000> : vector<4xf32>
    %545 = vector.multi_reduction <maximumf>, %544, %cst_163 [1] : vector<4x8xf32> to vector<4xf32>
    %546 = vector.shape_cast %545 : vector<4xf32> to vector<4x1xf32>
    %547 = vector.broadcast %546 : vector<4x1xf32> to vector<4x8xf32>
    %548 = arith.subf %544, %547 : vector<4x8xf32>
    %549 = math.exp %548 : vector<4x8xf32>
    %550 = arith.mulf %549, %437 : vector<4x8xf32>
    %cst_164 = arith.constant dense<0.000000e+00> : vector<4xf32>
    %551 = vector.multi_reduction <add>, %550, %cst_164 [1] : vector<4x8xf32> to vector<4xf32>
    %552 = vector.shape_cast %551 : vector<4xf32> to vector<4x1xf32>
    %cst_165 = arith.constant dense<0.000000e+00> : vector<4x8xf32>
    %553 = tpu.matmul %550, %530, %cst_165 {dimension_numbers = #tpu.dot_dimension_numbers<[1], [0], [0], [1], [0, 0, 1, 1], [], []>} : vector<4x8xf32>, vector<8x8xf32>, vector<4x8xf32> -> vector<4x8xf32>
    %cst_166 = arith.constant 1.000000e-30 : f32
    %554 = vector.broadcast %cst_166 : f32 to vector<4x1xf32>
    %555 = arith.maximumf %552, %554 : vector<4x1xf32>
    %556 = tpu.reciprocal %555 {approx = true} : vector<4x1xf32> -> vector<4x1xf32>
    %557 = vector.broadcast %556 : vector<4x1xf32> to vector<4x8xf32>
    %558 = arith.mulf %553, %557 : vector<4x8xf32>
    %559 = tpu.concatenate %471, %500, %529, %558 in 1 : vector<4x8xf32>, vector<4x8xf32>, vector<4x8xf32>, vector<4x8xf32> -> vector<4x32xf32>
    %560 = arith.addf %431, %559 : vector<4x32xf32>
    %561 = vector.broadcast %435 : vector<1x32xf32> to vector<4x32xf32>
    %562 = arith.addf %560, %561 : vector<4x32xf32>
    %c0_167 = arith.constant 0 : index
    %c0_168 = arith.constant 0 : index
    %563 = vector.load %arg10[%c0_167, %c0_168] : memref<4x32xf32, #tpu.memory_space<vmem>>, vector<4x32xf32>
    %564 = vector.extract_strided_slice %563 {offsets = [2, 0], sizes = [1, 32], strides = [1, 1]} : vector<4x32xf32> to vector<1x32xf32>
    %565 = vector.broadcast %564 : vector<1x32xf32> to vector<4x32xf32>
    %566 = arith.subf %562, %565 : vector<4x32xf32>
    %567 = vector.extract_strided_slice %563 {offsets = [3, 0], sizes = [1, 32], strides = [1, 1]} : vector<4x32xf32> to vector<1x32xf32>
    %cst_169 = arith.constant 9.99999974E-6 : f32
    %568 = vector.broadcast %cst_169 : f32 to vector<1x32xf32>
    %569 = arith.addf %567, %568 : vector<1x32xf32>
    %570 = math.rsqrt %569 : vector<1x32xf32>
    %571 = vector.broadcast %570 : vector<1x32xf32> to vector<4x32xf32>
    %572 = arith.mulf %566, %571 : vector<4x32xf32>
    %573 = vector.extract_strided_slice %563 {offsets = [0, 0], sizes = [1, 32], strides = [1, 1]} : vector<4x32xf32> to vector<1x32xf32>
    %574 = vector.broadcast %573 : vector<1x32xf32> to vector<4x32xf32>
    %575 = arith.mulf %572, %574 : vector<4x32xf32>
    %576 = vector.extract_strided_slice %563 {offsets = [1, 0], sizes = [1, 32], strides = [1, 1]} : vector<4x32xf32> to vector<1x32xf32>
    %577 = vector.broadcast %576 : vector<1x32xf32> to vector<4x32xf32>
    %578 = arith.addf %575, %577 : vector<4x32xf32>
    %cst_170 = arith.constant 0.000000e+00 : f32
    %579 = vector.broadcast %cst_170 : f32 to vector<4x32xf32>
    %580 = arith.cmpf ogt, %578, %579 : vector<4x32xf32>
    %cst_171 = arith.constant 0.000000e+00 : f32
    %581 = vector.broadcast %cst_171 : f32 to vector<4x32xf32>
    %582 = arith.minimumf %578, %581 : vector<4x32xf32>
    %583 = math.exp %582 : vector<4x32xf32>
    %cst_172 = arith.constant 1.000000e+00 : f32
    %584 = vector.broadcast %cst_172 : f32 to vector<4x32xf32>
    %585 = arith.subf %583, %584 : vector<4x32xf32>
    %586 = arith.select %580, %578, %585 : vector<4x32xi1>, vector<4x32xf32>
    %c0_173 = arith.constant 0 : index
    %c0_174 = arith.constant 0 : index
    %587 = vector.load %arg11[%c0_173, %c0_174] : memref<32x32xf32, #tpu.memory_space<vmem>>, vector<32x32xf32>
    %cst_175 = arith.constant dense<0.000000e+00> : vector<4x32xf32>
    %588 = tpu.matmul %586, %587, %cst_175 {dimension_numbers = #tpu.dot_dimension_numbers<[1], [0], [0], [1], [0, 0, 1, 1], [], []>} : vector<4x32xf32>, vector<32x32xf32>, vector<4x32xf32> -> vector<4x32xf32>
    %c0_176 = arith.constant 0 : index
    %c0_177 = arith.constant 0 : index
    %589 = vector.load %arg12[%c0_176, %c0_177] : memref<1x32xf32, #tpu.memory_space<vmem>>, vector<1x32xf32>
    %590 = vector.broadcast %589 : vector<1x32xf32> to vector<4x32xf32>
    %591 = arith.addf %588, %590 : vector<4x32xf32>
    %c0_178 = arith.constant 0 : index
    %c0_179 = arith.constant 0 : index
    %592 = vector.load %arg13[%c0_178, %c0_179] : memref<4x32xf32, #tpu.memory_space<vmem>>, vector<4x32xf32>
    %593 = vector.extract_strided_slice %592 {offsets = [2, 0], sizes = [1, 32], strides = [1, 1]} : vector<4x32xf32> to vector<1x32xf32>
    %594 = vector.broadcast %593 : vector<1x32xf32> to vector<4x32xf32>
    %595 = arith.subf %591, %594 : vector<4x32xf32>
    %596 = vector.extract_strided_slice %592 {offsets = [3, 0], sizes = [1, 32], strides = [1, 1]} : vector<4x32xf32> to vector<1x32xf32>
    %cst_180 = arith.constant 9.99999974E-6 : f32
    %597 = vector.broadcast %cst_180 : f32 to vector<1x32xf32>
    %598 = arith.addf %596, %597 : vector<1x32xf32>
    %599 = math.rsqrt %598 : vector<1x32xf32>
    %600 = vector.broadcast %599 : vector<1x32xf32> to vector<4x32xf32>
    %601 = arith.mulf %595, %600 : vector<4x32xf32>
    %602 = vector.extract_strided_slice %592 {offsets = [0, 0], sizes = [1, 32], strides = [1, 1]} : vector<4x32xf32> to vector<1x32xf32>
    %603 = vector.broadcast %602 : vector<1x32xf32> to vector<4x32xf32>
    %604 = arith.mulf %601, %603 : vector<4x32xf32>
    %605 = vector.extract_strided_slice %592 {offsets = [1, 0], sizes = [1, 32], strides = [1, 1]} : vector<4x32xf32> to vector<1x32xf32>
    %606 = vector.broadcast %605 : vector<1x32xf32> to vector<4x32xf32>
    %607 = arith.addf %604, %606 : vector<4x32xf32>
    %cst_181 = arith.constant 0.000000e+00 : f32
    %608 = vector.broadcast %cst_181 : f32 to vector<4x32xf32>
    %609 = arith.maximumf %607, %608 : vector<4x32xf32>
    %c0_182 = arith.constant 0 : index
    %c0_183 = arith.constant 0 : index
    %610 = vector.load %arg14[%c0_182, %c0_183] : memref<32x8xf32, #tpu.memory_space<vmem>>, vector<32x8xf32>
    %cst_184 = arith.constant dense<0.000000e+00> : vector<4x8xf32>
    %611 = tpu.matmul %609, %610, %cst_184 {dimension_numbers = #tpu.dot_dimension_numbers<[1], [0], [0], [1], [0, 0, 1, 1], [], []>} : vector<4x32xf32>, vector<32x8xf32>, vector<4x8xf32> -> vector<4x8xf32>
    %c0_185 = arith.constant 0 : index
    %c0_186 = arith.constant 0 : index
    %612 = vector.load %arg15[%c0_185, %c0_186] : memref<1x8xf32, #tpu.memory_space<vmem>>, vector<1x8xf32>
    %613 = vector.broadcast %612 : vector<1x8xf32> to vector<4x8xf32>
    %614 = arith.addf %611, %613 : vector<4x8xf32>
    %c0_187 = arith.constant 0 : index
    %c0_188 = arith.constant 0 : index
    %615 = vector.load %arg16[%c0_187, %c0_188] : memref<4x8xf32, #tpu.memory_space<vmem>>, vector<4x8xf32>
    tpu.vector_store %arg16[%c0_187, %c0_188], %614 {strides = array<i32>} : memref<4x8xf32, #tpu.memory_space<vmem>>, vector<4x8xf32>,
    return
  }
}

</mosaic_0001>

<llo_original>
// kernel: tpu_custom_call.1
$region0: #{tpu_custom_call.1}
  #allocation0 [shape = 'u32[]', space=smem, size = 0x4, offset = 0x4, fixed_abs, tag = 'smem constant byte address 0x4 - core index']
  #allocation1 [shape = 'u32[144,128]{1,0:T(1,128)}', space=vmem, size = 0x12000, scoped, tag = 'internal scratch']
  %s0 = inlined_call_operand.vmem [shape: f32[12,16], index: 0, kind: input, shape index: {}]
  %s1 = inlined_call_operand.hbm [shape: f32[16,96], index: 1, kind: input, shape index: {}]
  %s2 = inlined_call_operand.hbm [shape: f32[1,32], index: 2, kind: input, shape index: {}]
  %s3 = inlined_call_operand.hbm [shape: f32[6,32], index: 3, kind: input, shape index: {}]
  %s4 = inlined_call_operand.hbm [shape: f32[2,8,12], index: 4, kind: input, shape index: {}]
  %s5 = inlined_call_operand.hbm [shape: f32[4,32], index: 5, kind: input, shape index: {}]
  %s6 = inlined_call_operand.vmem [shape: f32[32,96], index: 6, kind: input, shape index: {}]
  %s7 = inlined_call_operand.hbm [shape: f32[1,32], index: 7, kind: input, shape index: {}]
  %s8 = inlined_call_operand.hbm [shape: f32[6,32], index: 8, kind: input, shape index: {}]
  %s9 = inlined_call_operand.hbm [shape: f32[2,4,8], index: 9, kind: input, shape index: {}]
  %s10 = inlined_call_operand.hbm [shape: f32[4,32], index: 10, kind: input, shape index: {}]
  %s11 = inlined_call_operand.hbm [shape: f32[32,32], index: 11, kind: input, shape index: {}]
  %s12 = inlined_call_operand.vmem [shape: f32[1,32], index: 12, kind: input, shape index: {}]
  %s13 = inlined_call_operand.vmem [shape: f32[4,32], index: 13, kind: input, shape index: {}]
  %s14 = inlined_call_operand.vmem [shape: f32[32,8], index: 14, kind: input, shape index: {}]
  %s15 = inlined_call_operand.vmem [shape: f32[1,8], index: 15, kind: input, shape index: {}]
  %s16 = inlined_call_operand.hbm [shape: f32[4,8], index: 16, kind: output, shape index: {}]
  %s17 = sld [smem:[#allocation0]]
  $region114: #{tpu_custom_call.1} parent=0
    _
  %s19 = ssub.s32 1, %s17
  %s20 = scalar_select 0, %s19, %s17
  $region1: #{tpu_custom_call.1} parent=0
    #allocation2 [shape = 'u8[8192]{0}', space=vmem, size = 0x2000, scoped, tag = 'input window, operand 1, single buffered']
    #allocation3 [shape = 's32[1]{0}', space=sflag, size = 0x4, scoped, tag = 'scoped memory for tpu_custom_call.1']
    #allocation4 [shape = 's32[1]{0}', space=sflag, size = 0x4, scoped, tag = 'scoped memory for tpu_custom_call.1']
    #allocation5 [shape = 'u8[512]{0}', space=vmem, size = 0x400, scoped, tag = 'input window, operand 2, single buffered']
    #allocation6 [shape = 's32[1]{0}', space=sflag, size = 0x4, scoped, tag = 'scoped memory for tpu_custom_call.1']
    #allocation7 [shape = 'u8[4096]{0}', space=vmem, size = 0x1000, scoped, tag = 'input window, operand 3, single buffered']
    #allocation8 [shape = 'u8[8192]{0}', space=vmem, size = 0x2000, scoped, tag = 'input window, operand 4, single buffered']
    #allocation9 [shape = 's32[1]{0}', space=sflag, size = 0x4, scoped, tag = 'scoped memory for tpu_custom_call.1']
    #allocation10 [shape = 'u8[2048]{0}', space=vmem, size = 0x800, scoped, tag = 'input window, operand 5, single buffered']
    #allocation11 [shape = 'u8[512]{0}', space=vmem, size = 0x400, scoped, tag = 'input window, operand 7, single buffered']
    #allocation12 [shape = 's32[1]{0}', space=sflag, size = 0x4, scoped, tag = 'scoped memory for tpu_custom_call.1']
    #allocation13 [shape = 'u8[4096]{0}', space=vmem, size = 0x1000, scoped, tag = 'input window, operand 8, single buffered']
    #allocation14 [shape = 'u8[4096]{0}', space=vmem, size = 0x1000, scoped, tag = 'input window, operand 9, single buffered']
    #allocation15 [shape = 's32[1]{0}', space=sflag, size = 0x4, scoped, tag = 'scoped memory for tpu_custom_call.1']
    #allocation16 [shape = 'u8[2048]{0}', space=vmem, size = 0x800, scoped, tag = 'input window, operand 10, single buffered']
    #allocation17 [shape = 'u8[16384]{0}', space=vmem, size = 0x4000, scoped, tag = 'input window, operand 11, single buffered']
    #allocation18 [shape = 's32[1]{0}', space=sflag, size = 0x4, scoped, tag = 'scoped memory for tpu_custom_call.1']
    #allocation19 [shape = 'u8[2048]{0}', space=vmem, size = 0x800, scoped, tag = 'output window, operand 0, single buffered']
    %21 = vsyncpa [#allocation3], 0
    %22 = vsyncpa [#allocation6], 0
    %23 = vsyncpa [#allocation9], 0
    %24 = vsyncpa [#allocation12], 0
    %25 = vsyncpa [#allocation15], 0
    %26 = vsyncpa [#allocation18], 0
    %27 = vsyncpa [#allocation4], 0
    // Predicated region
    $region2: #{tpu_custom_call.1} parent=1 // pred_check
      _
    $region3: #{tpu_custom_call.1} parent=1 // pred_check_branch
      %29 = sbr.rel (0) target = $region5
    $region4: #{tpu_custom_call.1} parent=1 // pred_region
      _
    $region5: #{tpu_custom_call.1} parent=1 // pred_fallthru
      _
    // Predicated region
    $region6: #{tpu_custom_call.1} parent=1 // pred_check
      _
    $region7: #{tpu_custom_call.1} parent=1 // pred_check_branch
      %31 = sbr.rel (0) target = $region9
    $region8: #{tpu_custom_call.1} parent=1 // pred_region
      %s33 = ssub.s32 256, 256
      %34 = vsyncadd [#allocation3], %s33
      %s35 = sshll.u32 [#allocation2], 4
      %s36 = int_to_ptr.vmem [resolvable:$true] %s35
      %41 = dma.hbm_to_vmem [thread:$0]  %s1, 256, %s36, [#allocation3], 128, 128, 8
    $region9: #{tpu_custom_call.1} parent=1 // pred_fallthru
      _
    // Predicated region
    $region10: #{tpu_custom_call.1} parent=1 // pred_check
      _
    $region11: #{tpu_custom_call.1} parent=1 // pred_check_branch
      %43 = sbr.rel (0) target = $region13
    $region12: #{tpu_custom_call.1} parent=1 // pred_region
      %s45 = ssub.s32 16, 16
      %46 = vsyncadd [#allocation6], %s45
      %s48 = sshll.u32 [#allocation5], 4
      %s49 = int_to_ptr.vmem [resolvable:$true] %s48
      %51 = dma.hbm_to_vmem [thread:$0]  %s2, 16, %s49, [#allocation6]
    $region13: #{tpu_custom_call.1} parent=1 // pred_fallthru
      _
    // Predicated region
    $region14: #{tpu_custom_call.1} parent=1 // pred_check
      _
    $region15: #{tpu_custom_call.1} parent=1 // pred_check_branch
      %53 = sbr.rel (0) target = $region17
    $region16: #{tpu_custom_call.1} parent=1 // pred_region
      %s55 = ssub.s32 128, 128
      %56 = vsyncadd [#allocation6], %s55
      %s58 = sshll.u32 [#allocation7], 4
      %s59 = int_to_ptr.vmem [resolvable:$true] %s58
      %61 = dma.hbm_to_vmem [thread:$0]  %s3, 128, %s59, [#allocation6]
    $region17: #{tpu_custom_call.1} parent=1 // pred_fallthru
      _
    // Predicated region
    $region18: #{tpu_custom_call.1} parent=1 // pred_check
      _
    $region19: #{tpu_custom_call.1} parent=1 // pred_check_branch
      %63 = sbr.rel (0) target = $region21
    $region20: #{tpu_custom_call.1} parent=1 // pred_region
      %s65 = ssub.s32 256, 256
      %66 = vsyncadd [#allocation9], %s65
      %s67 = sshll.u32 [#allocation8], 4
      %s68 = int_to_ptr.vmem [resolvable:$true] %s67
      %73 = dma.hbm_to_vmem [thread:$0]  %s4, 256, %s68, [#allocation9], 128, 128, 8
    $region21: #{tpu_custom_call.1} parent=1 // pred_fallthru
      _
    // Predicated region
    $region22: #{tpu_custom_call.1} parent=1 // pred_check
      _
    $region23: #{tpu_custom_call.1} parent=1 // pred_check_branch
      %75 = sbr.rel (0) target = $region25
    $region24: #{tpu_custom_call.1} parent=1 // pred_region
      %s77 = ssub.s32 64, 64
      %78 = vsyncadd [#allocation9], %s77
      %s80 = sshll.u32 [#allocation10], 4
      %s81 = int_to_ptr.vmem [resolvable:$true] %s80
      %83 = dma.hbm_to_vmem [thread:$0]  %s5, 64, %s81, [#allocation9]
    $region25: #{tpu_custom_call.1} parent=1 // pred_fallthru
      _
    // Predicated region
    $region26: #{tpu_custom_call.1} parent=1 // pred_check
      _
    $region27: #{tpu_custom_call.1} parent=1 // pred_check_branch
      %85 = sbr.rel (0) target = $region29
    $region28: #{tpu_custom_call.1} parent=1 // pred_region
      _
    $region29: #{tpu_custom_call.1} parent=1 // pred_fallthru
      _
    // Predicated region
    $region30: #{tpu_custom_call.1} parent=1 // pred_check
      _
    $region31: #{tpu_custom_call.1} parent=1 // pred_check_branch
      %87 = sbr.rel (0) target = $region33
    $region32: #{tpu_custom_call.1} parent=1 // pred_region
      %s89 = ssub.s32 16, 16
      %90 = vsyncadd [#allocation12], %s89
      %s92 = sshll.u32 [#allocation11], 4
      %s93 = int_to_ptr.vmem [resolvable:$true] %s92
      %95 = dma.hbm_to_vmem [thread:$0]  %s7, 16, %s93, [#allocation12]
    $region33: #{tpu_custom_call.1} parent=1 // pred_fallthru
      _
    // Predicated region
    $region34: #{tpu_custom_call.1} parent=1 // pred_check
      _
    $region35: #{tpu_custom_call.1} parent=1 // pred_check_branch
      %97 = sbr.rel (0) target = $region37
    $region36: #{tpu_custom_call.1} parent=1 // pred_region
      %s99 = ssub.s32 128, 128
      %100 = vsyncadd [#allocation12], %s99
      %s102 = sshll.u32 [#allocation13], 4
      %s103 = int_to_ptr.vmem [resolvable:$true] %s102
      %105 = dma.hbm_to_vmem [thread:$0]  %s8, 128, %s103, [#allocation12]
    $region37: #{tpu_custom_call.1} parent=1 // pred_fallthru
      _
    // Predicated region
    $region38: #{tpu_custom_call.1} parent=1 // pred_check
      _
    $region39: #{tpu_custom_call.1} parent=1 // pred_check_branch
      %107 = sbr.rel (0) target = $region41
    $region40: #{tpu_custom_call.1} parent=1 // pred_region
      %s109 = ssub.s32 128, 128
      %110 = vsyncadd [#allocation15], %s109
      %s111 = sshll.u32 [#allocation14], 4
      %s112 = int_to_ptr.vmem [resolvable:$true] %s111
      %117 = dma.hbm_to_vmem [thread:$0]  %s9, 128, %s112, [#allocation15], 64, 64, 4
    $region41: #{tpu_custom_call.1} parent=1 // pred_fallthru
      _
    // Predicated region
    $region42: #{tpu_custom_call.1} parent=1 // pred_check
      _
    $region43: #{tpu_custom_call.1} parent=1 // pred_check_branch
      %119 = sbr.rel (0) target = $region45
    $region44: #{tpu_custom_call.1} parent=1 // pred_region
      %s121 = ssub.s32 64, 64
      %122 = vsyncadd [#allocation15], %s121
      %s124 = sshll.u32 [#allocation16], 4
      %s125 = int_to_ptr.vmem [resolvable:$true] %s124
      %127 = dma.hbm_to_vmem [thread:$0]  %s10, 64, %s125, [#allocation15]
    $region45: #{tpu_custom_call.1} parent=1 // pred_fallthru
      _
    // Predicated region
    $region46: #{tpu_custom_call.1} parent=1 // pred_check
      _
    $region47: #{tpu_custom_call.1} parent=1 // pred_check_branch
      %129 = sbr.rel (0) target = $region49
    $region48: #{tpu_custom_call.1} parent=1 // pred_region
      %s131 = ssub.s32 512, 512
      %132 = vsyncadd [#allocation18], %s131
      %s133 = sshll.u32 [#allocation17], 4
      %s134 = int_to_ptr.vmem [resolvable:$true] %s133
      %139 = dma.hbm_to_vmem [thread:$0]  %s11, 512, %s134, [#allocation18], 128, 128, 8
    $region49: #{tpu_custom_call.1} parent=1 // pred_fallthru
      _
    // Predicated region
    $region50: #{tpu_custom_call.1} parent=1 // pred_check
      _
    $region51: #{tpu_custom_call.1} parent=1 // pred_check_branch
      %141 = sbr.rel (0) target = $region53
    $region52: #{tpu_custom_call.1} parent=1 // pred_region
      _
    $region53: #{tpu_custom_call.1} parent=1 // pred_fallthru
      _
    // Predicated region
    $region54: #{tpu_custom_call.1} parent=1 // pred_check
      _
    $region55: #{tpu_custom_call.1} parent=1 // pred_check_branch
      %143 = sbr.rel (0) target = $region57
    $region56: #{tpu_custom_call.1} parent=1 // pred_region
      _
    $region57: #{tpu_custom_call.1} parent=1 // pred_fallthru
      _
    // Predicated region
    $region58: #{tpu_custom_call.1} parent=1 // pred_check
      _
    $region59: #{tpu_custom_call.1} parent=1 // pred_check_branch
      %145 = sbr.rel (0) target = $region61
    $region60: #{tpu_custom_call.1} parent=1 // pred_region
      _
    $region61: #{tpu_custom_call.1} parent=1 // pred_fallthru
      _
    // Predicated region
    $region62: #{tpu_custom_call.1} parent=1 // pred_check
      _
    $region63: #{tpu_custom_call.1} parent=1 // pred_check_branch
      %147 = sbr.rel (0) target = $region65
    $region64: #{tpu_custom_call.1} parent=1 // pred_region
      _
    $region65: #{tpu_custom_call.1} parent=1 // pred_fallthru
      _
    // Predicated region
    $region66: #{tpu_custom_call.1} parent=1 // pred_check
      _
    $region67: #{tpu_custom_call.1} parent=1 // pred_check_branch
      %149 = sbr.rel (0) target = $region69
    $region68: #{tpu_custom_call.1} parent=1 // pred_region
      %150 = dma.done [#allocation3], 256
    $region69: #{tpu_custom_call.1} parent=1 // pred_fallthru
      _
    // Predicated region
    $region70: #{tpu_custom_call.1} parent=1 // pred_check
      _
    $region71: #{tpu_custom_call.1} parent=1 // pred_check_branch
      %152 = sbr.rel (0) target = $region73
    $region72: #{tpu_custom_call.1} parent=1 // pred_region
      %153 = dma.done [#allocation6], 16
    $region73: #{tpu_custom_call.1} parent=1 // pred_fallthru
      _
    // Predicated region
    $region74: #{tpu_custom_call.1} parent=1 // pred_check
      _
    $region75: #{tpu_custom_call.1} parent=1 // pred_check_branch
      %155 = sbr.rel (0) target = $region77
    $region76: #{tpu_custom_call.1} parent=1 // pred_region
      %156 = dma.done [#allocation6], 128
    $region77: #{tpu_custom_call.1} parent=1 // pred_fallthru
      _
    // Predicated region
    $region78: #{tpu_custom_call.1} parent=1 // pred_check
      _
    $region79: #{tpu_custom_call.1} parent=1 // pred_check_branch
      %158 = sbr.rel (0) target = $region81
    $region80: #{tpu_custom_call.1} parent=1 // pred_region
      %159 = dma.done [#allocation9], 256
    $region81: #{tpu_custom_call.1} parent=1 // pred_fallthru
      _
    // Predicated region
    $region82: #{tpu_custom_call.1} parent=1 // pred_check
      _
    $region83: #{tpu_custom_call.1} parent=1 // pred_check_branch
      %161 = sbr.rel (0) target = $region85
    $region84: #{tpu_custom_call.1} parent=1 // pred_region
      %162 = dma.done [#allocation9], 64
    $region85: #{tpu_custom_call.1} parent=1 // pred_fallthru
      _
    // Predicated region
    $region86: #{tpu_custom_call.1} parent=1 // pred_check
      _
    $region87: #{tpu_custom_call.1} parent=1 // pred_check_branch
      %164 = sbr.rel (0) target = $region89
    $region88: #{tpu_custom_call.1} parent=1 // pred_region
      %165 = dma.done [#allocation12], 16
    $region89: #{tpu_custom_call.1} parent=1 // pred_fallthru
      _
    // Predicated region
    $region90: #{tpu_custom_call.1} parent=1 // pred_check
      _
    $region91: #{tpu_custom_call.1} parent=1 // pred_check_branch
      %167 = sbr.rel (0) target = $region93
    $region92: #{tpu_custom_call.1} parent=1 // pred_region
      %168 = dma.done [#allocation12], 128
    $region93: #{tpu_custom_call.1} parent=1 // pred_fallthru
      _
    // Predicated region
    $region94: #{tpu_custom_call.1} parent=1 // pred_check
      _
    $region95: #{tpu_custom_call.1} parent=1 // pred_check_branch
      %170 = sbr.rel (0) target = $region97
    $region96: #{tpu_custom_call.1} parent=1 // pred_region
      %171 = dma.done [#allocation15], 128
    $region97: #{tpu_custom_call.1} parent=1 // pred_fallthru
      _
    // Predicated region
    $region98: #{tpu_custom_call.1} parent=1 // pred_check
      _
    $region99: #{tpu_custom_call.1} parent=1 // pred_check_branch
      %173 = sbr.rel (0) target = $region101
    $region100: #{tpu_custom_call.1} parent=1 // pred_region
      %174 = dma.done [#allocation15], 64
    $region101: #{tpu_custom_call.1} parent=1 // pred_fallthru
      _
    // Predicated region
    $region102: #{tpu_custom_call.1} parent=1 // pred_check
      _
    $region103: #{tpu_custom_call.1} parent=1 // pred_check_branch
      %176 = sbr.rel (0) target = $region105
    $region104: #{tpu_custom_call.1} parent=1 // pred_region
      %177 = dma.done [#allocation18], 512
    $region105: #{tpu_custom_call.1} parent=1 // pred_fallthru
      _
    %v178 = vld [vmem:[%s0] sm:$0xff]
    %v179 = vld [vmem:[%s0 + $0x8] sm:$0xf]
    %v180 = vld [vmem:[#allocation2] sm:$0xff]
    %v181 = vld [vmem:[#allocation2 + $0x8] sm:$0xff]
    %vm182 = vcmask 130048
    %v184 = vsel %vm182, %v178, 0
    %v187 = vsel %vm182, %v179, 0
    %189 = vmatprep.subr.mxu0 0.0
    %190 = vmatpush1.msra.mxu0 0.0
    %191 = vmatprep.subr.mxu0 0.0
    %192 = vmatpush1.msra.mxu0 0.0
    %193 = vmatprep.subr.mxu0 0.0
    %194 = vmatpush1.msra.mxu0 0.0
    %195 = vmatprep.subr.mxu0 0.0
    %196 = vmatpush1.msra.mxu0 0.0
    %197 = vmatprep.subr.mxu0 0.0
    %198 = vmatpush1.msra.mxu0 0.0
    %199 = vmatprep.subr.mxu0 0.0
    %200 = vmatpush1.msra.mxu0 0.0
    %201 = vmatprep.subr.mxu0 0.0
    %202 = vmatpush1.msra.mxu0 0.0
    %203 = vmatprep.subr.mxu0 0.0
    %204 = vmatpush1.msra.mxu0 0.0
    %205 = vmatprep.subr.mxu0 0.0
    %206 = vmatpush1.msra.mxu0 0.0
    %207 = vmatprep.subr.mxu0 0.0
    %208 = vmatpush1.msra.mxu0 0.0
    %209 = vmatprep.subr.mxu0 0.0
    %210 = vmatpush1.msra.mxu0 0.0
    %211 = vmatprep.subr.mxu0 0.0
    %212 = vmatpush1.msra.mxu0 0.0
    %213 = vmatprep.subr.mxu0 0.0
    %214 = vmatpush1.msra.mxu0 0.0
    %215 = vmatprep.subr.mxu0 0.0
    %216 = vmatpush1.msra.mxu0 0.0
    %217 = vmatprep.subr.mxu0 0.0
    %218 = vmatpush1.msra.mxu0 %v181
    %219 = vmatprep.subr.mxu0 0.0
    %220 = vmatpush1.msra.mxu0 %v180
    %221 = vmatprep.subr.mxu0 0.0
    %222 = vmatpush2.msra.mxu0 0.0
    %223 = vmatprep.subr.mxu0 0.0
    %224 = vmatpush2.msra.mxu0 0.0
    %225 = vmatprep.subr.mxu0 0.0
    %226 = vmatpush2.msra.mxu0 0.0
    %227 = vmatprep.subr.mxu0 0.0
    %228 = vmatpush2.msra.mxu0 0.0
    %229 = vmatprep.subr.mxu0 0.0
    %230 = vmatpush2.msra.mxu0 0.0
    %231 = vmatprep.subr.mxu0 0.0
    %232 = vmatpush2.msra.mxu0 0.0
    %233 = vmatprep.subr.mxu0 0.0
    %234 = vmatpush2.msra.mxu0 0.0
    %235 = vmatprep.subr.mxu0 0.0
    %236 = vmatpush2.msra.mxu0 0.0
    %237 = vmatprep.subr.mxu0 0.0
    %238 = vmatpush2.msra.mxu0 0.0
    %239 = vmatprep.subr.mxu0 0.0
    %240 = vmatpush2.msra.mxu0 0.0
    %241 = vmatprep.subr.mxu0 0.0
    %242 = vmatpush2.msra.mxu0 0.0
    %243 = vmatprep.subr.mxu0 0.0
    %244 = vmatpush2.msra.mxu0 0.0
    %245 = vmatprep.subr.mxu0 0.0
    %246 = vmatpush2.msra.mxu0 0.0
    %247 = vmatprep.subr.mxu0 0.0
    %248 = vmatpush2.msra.mxu0 0.0
    %249 = vmatprep.subr.mxu0 0.0
    %250 = vmatpush2.msra.mxu0 0.0
    %251 = vmatprep.subr.mxu0 0.0
    %252 = vmatpush2.msra.mxu0 0.0
    %253 = vmatprep.mubr.f32.mxu0 0.0
    %254 = vmatmul.mubr.f32.gmra.mxu0 %v184
    %v255 = vpop.f32.mrf.mxu0
    %v256 = vadd.f32 0.0, %v255
    %v257 = vpop.f32.mrf.mxu0
    %258 = vmatprep.mubr.f32.mxu0 0.0
    %259 = vmatmul.mubr.f32.gmra.mxu0 %v187
    %v260 = vpop.f32.mrf.mxu0
    %v261 = vadd.f32 0.0, %v260
    %v262 = vpop.f32.mrf.mxu0
    %263 = vdwg.mxu0
    %v264 = vld [vmem:[#allocation5] sm:$0x1]
    %v266 = vlaneseq
    %v267 = vshrl.u32 %v266, 7
    %v268 = vsub.s32 0, %v267
    %v269 = vrot.slane %v264, %v268
    %v271 = vadd.f32 %v256, %v269
    %v272 = vld [vmem:[#allocation7] sm:$0x3f]
    %v273 = vld [vmem:[#allocation8] sm:$0xff]
    %v274 = vsub.f32 1.0, %v273
    %v275 = vmul.f32 %v274, -1e+30
    %278 = vrot.lane.b32.xlu0 %v256, 96
    %v279 = vpop.permute.xlu0 %278
    %280 = vrot.lane.b32.xlu0 %v261, 96
    %v281 = vpop.permute.xlu0 %280
    %vm282 = vcmask 64512
    %v284 = vsel %vm282, %v272, 0
    %v286 = vsel %vm282, %v279, 0
    %v288 = vsel %vm282, %v281, 0
    %290 = vmatprep.subr.mxu0 0.0
    %291 = vmatpush1.xpose.msra.mxu0 0.0
    %292 = vmatprep.subr.mxu0 0.0
    %293 = vmatpush1.xpose.msra.mxu0 0.0
    %294 = vmatprep.subr.mxu0 0.0
    %295 = vmatpush1.xpose.msra.mxu0 0.0
    %296 = vmatprep.subr.mxu0 0.0
    %297 = vmatpush1.xpose.msra.mxu0 0.0
    %298 = vmatprep.subr.mxu0 0.0
    %299 = vmatpush1.xpose.msra.mxu0 0.0
    %300 = vmatprep.subr.mxu0 0.0
    %301 = vmatpush1.xpose.msra.mxu0 0.0
    %302 = vmatprep.subr.mxu0 0.0
    %303 = vmatpush1.xpose.msra.mxu0 0.0
    %304 = vmatprep.subr.mxu0 0.0
    %305 = vmatpush1.xpose.msra.mxu0 0.0
    %306 = vmatprep.subr.mxu0 0.0
    %307 = vmatpush1.xpose.msra.mxu0 0.0
    %308 = vmatprep.subr.mxu0 0.0
    %309 = vmatpush1.xpose.msra.mxu0 0.0
    %310 = vmatprep.subr.mxu0 0.0
    %311 = vmatpush1.xpose.msra.mxu0 0.0
    %312 = vmatprep.subr.mxu0 0.0
    %313 = vmatpush1.xpose.msra.mxu0 0.0
    %314 = vmatprep.subr.mxu0 0.0
    %315 = vmatpush1.xpose.msra.mxu0 0.0
    %316 = vmatprep.subr.mxu0 0.0
    %317 = vmatpush1.xpose.msra.mxu0 0.0
    %318 = vmatprep.subr.mxu0 0.0
    %319 = vmatpush1.xpose.msra.mxu0 %v288
    %320 = vmatprep.subr.mxu0 0.0
    %321 = vmatpush1.xpose.msra.mxu0 %v286
    %322 = vmatprep.subr.mxu0 0.0
    %323 = vmatpush2.xpose.msra.mxu0 0.0
    %324 = vmatprep.subr.mxu0 0.0
    %325 = vmatpush2.xpose.msra.mxu0 0.0
    %326 = vmatprep.subr.mxu0 0.0
    %327 = vmatpush2.xpose.msra.mxu0 0.0
    %328 = vmatprep.subr.mxu0 0.0
    %329 = vmatpush2.xpose.msra.mxu0 0.0
    %330 = vmatprep.subr.mxu0 0.0
    %331 = vmatpush2.xpose.msra.mxu0 0.0
    %332 = vmatprep.subr.mxu0 0.0
    %333 = vmatpush2.xpose.msra.mxu0 0.0
    %334 = vmatprep.subr.mxu0 0.0
    %335 = vmatpush2.xpose.msra.mxu0 0.0
    %336 = vmatprep.subr.mxu0 0.0
    %337 = vmatpush2.xpose.msra.mxu0 0.0
    %338 = vmatprep.subr.mxu0 0.0
    %339 = vmatpush2.xpose.msra.mxu0 0.0
    %340 = vmatprep.subr.mxu0 0.0
    %341 = vmatpush2.xpose.msra.mxu0 0.0
    %342 = vmatprep.subr.mxu0 0.0
    %343 = vmatpush2.xpose.msra.mxu0 0.0
    %344 = vmatprep.subr.mxu0 0.0
    %345 = vmatpush2.xpose.msra.mxu0 0.0
    %346 = vmatprep.subr.mxu0 0.0
    %347 = vmatpush2.xpose.msra.mxu0 0.0
    %348 = vmatprep.subr.mxu0 0.0
    %349 = vmatpush2.xpose.msra.mxu0 0.0
    %350 = vmatprep.subr.mxu0 0.0
    %351 = vmatpush2.xpose.msra.mxu0 0.0
    %352 = vmatprep.subr.mxu0 0.0
    %353 = vmatpush2.xpose.msra.mxu0 0.0
    %354 = vmatprep.mubr.f32.mxu0 0.0
    %355 = vmatmul.mubr.f32.gmra.mxu0 %v284
    %v356 = vpop.f32.mrf.mxu0
    %v357 = vadd.f32 0.0, %v356
    %v358 = vpop.f32.mrf.mxu0
    %359 = vdwg.mxu0
    %v360 = vlaneseq
    %v361 = vshrl.u32 %v360, 7
    %v362 = vsub.s32 1, %v361
    %v363 = vrot.slane %v272, %v362
    %365 = vrot.lane.b32.xlu0 %v363, 32
    %v366 = vpop.permute.xlu0 %365
    %v368 = vmul.f32 %v256, %v366
    %370 = vrot.lane.b32.xlu0 %v368, 96
    %v371 = vpop.permute.xlu0 %370
    %v373 = vsel %vm282, %v371, 0.0
    %374 = vadd.xlane.f32.xlu0 %v373
    %v375 = vpop.xlane.xlu0 %374
    %v376 = vlaneseq
    %v377 = vshrl.u32 %v376, 7
    %v378 = vsub.s32 0, %v377
    %v379 = vrot.slane %v357, %v378
    %v380 = vadd.f32 %v375, %v379
    %vm381 = vcmp.gt.f32.partialorder %v380, 0.0
    %v382 = vmul.f32 %v380, 0.2
    %v383 = vsel %vm381, %v380, %v382
    %v384 = vadd.f32 %v383, %v275
    %vm385 = vcmask 97280
    %v386 = vsel %vm385, %v384, -inf
    %387 = vmax.xlane.f32.xlu0 %v386
    %v388 = vpop.xlane.xlu0 %387
    %v389 = vsub.f32 %v384, %v388
    %v390 = vmul.f32 %v389, 1.442695
    %v391 = vpow.pop %v390
    %v392 = vmul.f32 %v391, %v273
    %v393 = vsel %vm385, %v392, 0.0
    %394 = vadd.xlane.f32.xlu0 %v393
    %v395 = vpop.xlane.xlu0 %394
    %v398 = vsel %vm385, %v392, 0
    %vm400 = vcmask 1043456
    %v401 = vsel %vm400, %v281, 0
    %403 = vmatprep.subr.mxu0 0.0
    %404 = vmatpush1.msra.mxu0 0.0
    %405 = vmatprep.subr.mxu0 0.0
    %406 = vmatpush1.msra.mxu0 0.0
    %407 = vmatprep.subr.mxu0 0.0
    %408 = vmatpush1.msra.mxu0 0.0
    %409 = vmatprep.subr.mxu0 0.0
    %410 = vmatpush1.msra.mxu0 0.0
    %411 = vmatprep.subr.mxu0 0.0
    %412 = vmatpush1.msra.mxu0 0.0
    %413 = vmatprep.subr.mxu0 0.0
    %414 = vmatpush1.msra.mxu0 0.0
    %415 = vmatprep.subr.mxu0 0.0
    %416 = vmatpush1.msra.mxu0 0.0
    %417 = vmatprep.subr.mxu0 0.0
    %418 = vmatpush1.msra.mxu0 0.0
    %419 = vmatprep.subr.mxu0 0.0
    %420 = vmatpush1.msra.mxu0 0.0
    %421 = vmatprep.subr.mxu0 0.0
    %422 = vmatpush1.msra.mxu0 0.0
    %423 = vmatprep.subr.mxu0 0.0
    %424 = vmatpush1.msra.mxu0 0.0
    %425 = vmatprep.subr.mxu0 0.0
    %426 = vmatpush1.msra.mxu0 0.0
    %427 = vmatprep.subr.mxu0 0.0
    %428 = vmatpush1.msra.mxu0 0.0
    %429 = vmatprep.subr.mxu0 0.0
    %430 = vmatpush1.msra.mxu0 0.0
    %431 = vmatprep.subr.mxu0 0.0
    %432 = vmatpush1.msra.mxu0 %v401
    %433 = vmatprep.subr.mxu0 0.0
    %434 = vmatpush1.msra.mxu0 %v279
    %435 = vmatprep.subr.mxu0 0.0
    %436 = vmatpush2.msra.mxu0 0.0
    %437 = vmatprep.subr.mxu0 0.0
    %438 = vmatpush2.msra.mxu0 0.0
    %439 = vmatprep.subr.mxu0 0.0
    %440 = vmatpush2.msra.mxu0 0.0
    %441 = vmatprep.subr.mxu0 0.0
    %442 = vmatpush2.msra.mxu0 0.0
    %443 = vmatprep.subr.mxu0 0.0
    %444 = vmatpush2.msra.mxu0 0.0
    %445 = vmatprep.subr.mxu0 0.0
    %446 = vmatpush2.msra.mxu0 0.0
    %447 = vmatprep.subr.mxu0 0.0
    %448 = vmatpush2.msra.mxu0 0.0
    %449 = vmatprep.subr.mxu0 0.0
    %450 = vmatpush2.msra.mxu0 0.0
    %451 = vmatprep.subr.mxu0 0.0
    %452 = vmatpush2.msra.mxu0 0.0
    %453 = vmatprep.subr.mxu0 0.0
    %454 = vmatpush2.msra.mxu0 0.0
    %455 = vmatprep.subr.mxu0 0.0
    %456 = vmatpush2.msra.mxu0 0.0
    %457 = vmatprep.subr.mxu0 0.0
    %458 = vmatpush2.msra.mxu0 0.0
    %459 = vmatprep.subr.mxu0 0.0
    %460 = vmatpush2.msra.mxu0 0.0
    %461 = vmatprep.subr.mxu0 0.0
    %462 = vmatpush2.msra.mxu0 0.0
    %463 = vmatprep.subr.mxu0 0.0
    %464 = vmatpush2.msra.mxu0 0.0
    %465 = vmatprep.subr.mxu0 0.0
    %466 = vmatpush2.msra.mxu0 0.0
    %467 = vmatprep.mubr.f32.mxu0 0.0
    %468 = vmatmul.mubr.f32.gmra.mxu0 %v398
    %v469 = vpop.f32.mrf.mxu0
    %v470 = vadd.f32 0.0, %v469
    %v471 = vpop.f32.mrf.mxu0
    %472 = vdwg.mxu0
    %v473 = vmax.f32 %v395, 1e-30
    %v474 = vrcp.pop %v473
    %v475 = vmul.f32 %v470, %v474
    %476 = vrot.lane.b32.xlu0 %v272, 120
    %v477 = vpop.permute.xlu0 %476
    %478 = vrot.lane.b32.xlu0 %v256, 88
    %v479 = vpop.permute.xlu0 %478
    %480 = vrot.lane.b32.xlu0 %v261, 88
    %v481 = vpop.permute.xlu0 %480
    %v482 = vsel %vm282, %v477, 0
    %v484 = vsel %vm282, %v479, 0
    %v486 = vsel %vm282, %v481, 0
    %488 = vmatprep.subr.mxu0 0.0
    %489 = vmatpush1.xpose.msra.mxu0 0.0
    %490 = vmatprep.subr.mxu0 0.0
    %491 = vmatpush1.xpose.msra.mxu0 0.0
    %492 = vmatprep.subr.mxu0 0.0
    %493 = vmatpush1.xpose.msra.mxu0 0.0
    %494 = vmatprep.subr.mxu0 0.0
    %495 = vmatpush1.xpose.msra.mxu0 0.0
    %496 = vmatprep.subr.mxu0 0.0
    %497 = vmatpush1.xpose.msra.mxu0 0.0
    %498 = vmatprep.subr.mxu0 0.0
    %499 = vmatpush1.xpose.msra.mxu0 0.0
    %500 = vmatprep.subr.mxu0 0.0
    %501 = vmatpush1.xpose.msra.mxu0 0.0
    %502 = vmatprep.subr.mxu0 0.0
    %503 = vmatpush1.xpose.msra.mxu0 0.0
    %504 = vmatprep.subr.mxu0 0.0
    %505 = vmatpush1.xpose.msra.mxu0 0.0
    %506 = vmatprep.subr.mxu0 0.0
    %507 = vmatpush1.xpose.msra.mxu0 0.0
    %508 = vmatprep.subr.mxu0 0.0
    %509 = vmatpush1.xpose.msra.mxu0 0.0
    %510 = vmatprep.subr.mxu0 0.0
    %511 = vmatpush1.xpose.msra.mxu0 0.0
    %512 = vmatprep.subr.mxu0 0.0
    %513 = vmatpush1.xpose.msra.mxu0 0.0
    %514 = vmatprep.subr.mxu0 0.0
    %515 = vmatpush1.xpose.msra.mxu0 0.0
    %516 = vmatprep.subr.mxu0 0.0
    %517 = vmatpush1.xpose.msra.mxu0 %v486
    %518 = vmatprep.subr.mxu0 0.0
    %519 = vmatpush1.xpose.msra.mxu0 %v484
    %520 = vmatprep.subr.mxu0 0.0
    %521 = vmatpush2.xpose.msra.mxu0 0.0
    %522 = vmatprep.subr.mxu0 0.0
    %523 = vmatpush2.xpose.msra.mxu0 0.0
    %524 = vmatprep.subr.mxu0 0.0
    %525 = vmatpush2.xpose.msra.mxu0 0.0
    %526 = vmatprep.subr.mxu0 0.0
    %527 = vmatpush2.xpose.msra.mxu0 0.0
    %528 = vmatprep.subr.mxu0 0.0
    %529 = vmatpush2.xpose.msra.mxu0 0.0
    %530 = vmatprep.subr.mxu0 0.0
    %531 = vmatpush2.xpose.msra.mxu0 0.0
    %532 = vmatprep.subr.mxu0 0.0
    %533 = vmatpush2.xpose.msra.mxu0 0.0
    %534 = vmatprep.subr.mxu0 0.0
    %535 = vmatpush2.xpose.msra.mxu0 0.0
    %536 = vmatprep.subr.mxu0 0.0
    %537 = vmatpush2.xpose.msra.mxu0 0.0
    %538 = vmatprep.subr.mxu0 0.0
    %539 = vmatpush2.xpose.msra.mxu0 0.0
    %540 = vmatprep.subr.mxu0 0.0
    %541 = vmatpush2.xpose.msra.mxu0 0.0
    %542 = vmatprep.subr.mxu0 0.0
    %543 = vmatpush2.xpose.msra.mxu0 0.0
    %544 = vmatprep.subr.mxu0 0.0
    %545 = vmatpush2.xpose.msra.mxu0 0.0
    %546 = vmatprep.subr.mxu0 0.0
    %547 = vmatpush2.xpose.msra.mxu0 0.0
    %548 = vmatprep.subr.mxu0 0.0
    %549 = vmatpush2.xpose.msra.mxu0 0.0
    %550 = vmatprep.subr.mxu0 0.0
    %551 = vmatpush2.xpose.msra.mxu0 0.0
    %552 = vmatprep.mubr.f32.mxu0 0.0
    %553 = vmatmul.mubr.f32.gmra.mxu0 %v482
    %v554 = vpop.f32.mrf.mxu0
    %v555 = vadd.f32 0.0, %v554
    %v556 = vpop.f32.mrf.mxu0
    %557 = vdwg.mxu0
    %558 = vrot.lane.b32.xlu0 %v368, 88
    %v559 = vpop.permute.xlu0 %558
    %v561 = vsel %vm282, %v559, 0.0
    %562 = vadd.xlane.f32.xlu0 %v561
    %v563 = vpop.xlane.xlu0 %562
    %v564 = vlaneseq
    %v565 = vshrl.u32 %v564, 7
    %v566 = vsub.s32 0, %v565
    %v567 = vrot.slane %v555, %v566
    %v568 = vadd.f32 %v563, %v567
    %vm569 = vcmp.gt.f32.partialorder %v568, 0.0
    %v570 = vmul.f32 %v568, 0.2
    %v571 = vsel %vm569, %v568, %v570
    %v572 = vadd.f32 %v571, %v275
    %v573 = vsel %vm385, %v572, -inf
    %574 = vmax.xlane.f32.xlu0 %v573
    %v575 = vpop.xlane.xlu0 %574
    %v576 = vsub.f32 %v572, %v575
    %v577 = vmul.f32 %v576, 1.442695
    %v578 = vpow.pop %v577
    %v579 = vmul.f32 %v578, %v273
    %v580 = vsel %vm385, %v579, 0.0
    %581 = vadd.xlane.f32.xlu0 %v580
    %v582 = vpop.xlane.xlu0 %581
    %v585 = vsel %vm385, %v579, 0
    %v587 = vsel %vm400, %v481, 0
    %589 = vmatprep.subr.mxu0 0.0
    %590 = vmatpush1.msra.mxu0 0.0
    %591 = vmatprep.subr.mxu0 0.0
    %592 = vmatpush1.msra.mxu0 0.0
    %593 = vmatprep.subr.mxu0 0.0
    %594 = vmatpush1.msra.mxu0 0.0
    %595 = vmatprep.subr.mxu0 0.0
    %596 = vmatpush1.msra.mxu0 0.0
    %597 = vmatprep.subr.mxu0 0.0
    %598 = vmatpush1.msra.mxu0 0.0
    %599 = vmatprep.subr.mxu0 0.0
    %600 = vmatpush1.msra.mxu0 0.0
    %601 = vmatprep.subr.mxu0 0.0
    %602 = vmatpush1.msra.mxu0 0.0
    %603 = vmatprep.subr.mxu0 0.0
    %604 = vmatpush1.msra.mxu0 0.0
    %605 = vmatprep.subr.mxu0 0.0
    %606 = vmatpush1.msra.mxu0 0.0
    %607 = vmatprep.subr.mxu0 0.0
    %608 = vmatpush1.msra.mxu0 0.0
    %609 = vmatprep.subr.mxu0 0.0
    %610 = vmatpush1.msra.mxu0 0.0
    %611 = vmatprep.subr.mxu0 0.0
    %612 = vmatpush1.msra.mxu0 0.0
    %613 = vmatprep.subr.mxu0 0.0
    %614 = vmatpush1.msra.mxu0 0.0
    %615 = vmatprep.subr.mxu0 0.0
    %616 = vmatpush1.msra.mxu0 0.0
    %617 = vmatprep.subr.mxu0 0.0
    %618 = vmatpush1.msra.mxu0 %v587
    %619 = vmatprep.subr.mxu0 0.0
    %620 = vmatpush1.msra.mxu0 %v479
    %621 = vmatprep.subr.mxu0 0.0
    %622 = vmatpush2.msra.mxu0 0.0
    %623 = vmatprep.subr.mxu0 0.0
    %624 = vmatpush2.msra.mxu0 0.0
    %625 = vmatprep.subr.mxu0 0.0
    %626 = vmatpush2.msra.mxu0 0.0
    %627 = vmatprep.subr.mxu0 0.0
    %628 = vmatpush2.msra.mxu0 0.0
    %629 = vmatprep.subr.mxu0 0.0
    %630 = vmatpush2.msra.mxu0 0.0
    %631 = vmatprep.subr.mxu0 0.0
    %632 = vmatpush2.msra.mxu0 0.0
    %633 = vmatprep.subr.mxu0 0.0
    %634 = vmatpush2.msra.mxu0 0.0
    %635 = vmatprep.subr.mxu0 0.0
    %636 = vmatpush2.msra.mxu0 0.0
    %637 = vmatprep.subr.mxu0 0.0
    %638 = vmatpush2.msra.mxu0 0.0
    %639 = vmatprep.subr.mxu0 0.0
    %640 = vmatpush2.msra.mxu0 0.0
    %641 = vmatprep.subr.mxu0 0.0
    %642 = vmatpush2.msra.mxu0 0.0
    %643 = vmatprep.subr.mxu0 0.0
    %644 = vmatpush2.msra.mxu0 0.0
    %645 = vmatprep.subr.mxu0 0.0
    %646 = vmatpush2.msra.mxu0 0.0
    %647 = vmatprep.subr.mxu0 0.0
    %648 = vmatpush2.msra.mxu0 0.0
    %649 = vmatprep.subr.mxu0 0.0
    %650 = vmatpush2.msra.mxu0 0.0
    %651 = vmatprep.subr.mxu0 0.0
    %652 = vmatpush2.msra.mxu0 0.0
    %653 = vmatprep.mubr.f32.mxu0 0.0
    %654 = vmatmul.mubr.f32.gmra.mxu0 %v585
    %v655 = vpop.f32.mrf.mxu0
    %v656 = vadd.f32 0.0, %v655
    %v657 = vpop.f32.mrf.mxu0
    %658 = vdwg.mxu0
    %v659 = vmax.f32 %v582, 1e-30
    %v660 = vrcp.pop %v659
    %v661 = vmul.f32 %v656, %v660
    %662 = vrot.lane.b32.xlu0 %v272, 112
    %v663 = vpop.permute.xlu0 %662
    %664 = vrot.lane.b32.xlu0 %v256, 80
    %v665 = vpop.permute.xlu0 %664
    %666 = vrot.lane.b32.xlu0 %v261, 80
    %v667 = vpop.permute.xlu0 %666
    %v668 = vsel %vm282, %v663, 0
    %v670 = vsel %vm282, %v665, 0
    %v672 = vsel %vm282, %v667, 0
    %674 = vmatprep.subr.mxu0 0.0
    %675 = vmatpush1.xpose.msra.mxu0 0.0
    %676 = vmatprep.subr.mxu0 0.0
    %677 = vmatpush1.xpose.msra.mxu0 0.0
    %678 = vmatprep.subr.mxu0 0.0
    %679 = vmatpush1.xpose.msra.mxu0 0.0
    %680 = vmatprep.subr.mxu0 0.0
    %681 = vmatpush1.xpose.msra.mxu0 0.0
    %682 = vmatprep.subr.mxu0 0.0
    %683 = vmatpush1.xpose.msra.mxu0 0.0
    %684 = vmatprep.subr.mxu0 0.0
    %685 = vmatpush1.xpose.msra.mxu0 0.0
    %686 = vmatprep.subr.mxu0 0.0
    %687 = vmatpush1.xpose.msra.mxu0 0.0
    %688 = vmatprep.subr.mxu0 0.0
    %689 = vmatpush1.xpose.msra.mxu0 0.0
    %690 = vmatprep.subr.mxu0 0.0
    %691 = vmatpush1.xpose.msra.mxu0 0.0
    %692 = vmatprep.subr.mxu0 0.0
    %693 = vmatpush1.xpose.msra.mxu0 0.0
    %694 = vmatprep.subr.mxu0 0.0
    %695 = vmatpush1.xpose.msra.mxu0 0.0
    %696 = vmatprep.subr.mxu0 0.0
    %697 = vmatpush1.xpose.msra.mxu0 0.0
    %698 = vmatprep.subr.mxu0 0.0
    %699 = vmatpush1.xpose.msra.mxu0 0.0
    %700 = vmatprep.subr.mxu0 0.0
    %701 = vmatpush1.xpose.msra.mxu0 0.0
    %702 = vmatprep.subr.mxu0 0.0
    %703 = vmatpush1.xpose.msra.mxu0 %v672
    %704 = vmatprep.subr.mxu0 0.0
    %705 = vmatpush1.xpose.msra.mxu0 %v670
    %706 = vmatprep.subr.mxu0 0.0
    %707 = vmatpush2.xpose.msra.mxu0 0.0
    %708 = vmatprep.subr.mxu0 0.0
    %709 = vmatpush2.xpose.msra.mxu0 0.0
    %710 = vmatprep.subr.mxu0 0.0
    %711 = vmatpush2.xpose.msra.mxu0 0.0
    %712 = vmatprep.subr.mxu0 0.0
    %713 = vmatpush2.xpose.msra.mxu0 0.0
    %714 = vmatprep.subr.mxu0 0.0
    %715 = vmatpush2.xpose.msra.mxu0 0.0
    %716 = vmatprep.subr.mxu0 0.0
    %717 = vmatpush2.xpose.msra.mxu0 0.0
    %718 = vmatprep.subr.mxu0 0.0
    %719 = vmatpush2.xpose.msra.mxu0 0.0
    %720 = vmatprep.subr.mxu0 0.0
    %721 = vmatpush2.xpose.msra.mxu0 0.0
    %722 = vmatprep.subr.mxu0 0.0
    %723 = vmatpush2.xpose.msra.mxu0 0.0
    %724 = vmatprep.subr.mxu0 0.0
    %725 = vmatpush2.xpose.msra.mxu0 0.0
    %726 = vmatprep.subr.mxu0 0.0
    %727 = vmatpush2.xpose.msra.mxu0 0.0
    %728 = vmatprep.subr.mxu0 0.0
    %729 = vmatpush2.xpose.msra.mxu0 0.0
    %730 = vmatprep.subr.mxu0 0.0
    %731 = vmatpush2.xpose.msra.mxu0 0.0
    %732 = vmatprep.subr.mxu0 0.0
    %733 = vmatpush2.xpose.msra.mxu0 0.0
    %734 = vmatprep.subr.mxu0 0.0
    %735 = vmatpush2.xpose.msra.mxu0 0.0
    %736 = vmatprep.subr.mxu0 0.0
    %737 = vmatpush2.xpose.msra.mxu0 0.0
    %738 = vmatprep.mubr.f32.mxu0 0.0
    %739 = vmatmul.mubr.f32.gmra.mxu0 %v668
    %v740 = vpop.f32.mrf.mxu0
    %v741 = vadd.f32 0.0, %v740
    %v742 = vpop.f32.mrf.mxu0
    %743 = vdwg.mxu0
    %744 = vrot.lane.b32.xlu0 %v368, 80
    %v745 = vpop.permute.xlu0 %744
    %v747 = vsel %vm282, %v745, 0.0
    %748 = vadd.xlane.f32.xlu0 %v747
    %v749 = vpop.xlane.xlu0 %748
    %v750 = vlaneseq
    %v751 = vshrl.u32 %v750, 7
    %v752 = vsub.s32 0, %v751
    %v753 = vrot.slane %v741, %v752
    %v754 = vadd.f32 %v749, %v753
    %vm755 = vcmp.gt.f32.partialorder %v754, 0.0
    %v756 = vmul.f32 %v754, 0.2
    %v757 = vsel %vm755, %v754, %v756
    %v758 = vadd.f32 %v757, %v275
    %v759 = vsel %vm385, %v758, -inf
    %760 = vmax.xlane.f32.xlu0 %v759
    %v761 = vpop.xlane.xlu0 %760
    %v762 = vsub.f32 %v758, %v761
    %v763 = vmul.f32 %v762, 1.442695
    %v764 = vpow.pop %v763
    %v765 = vmul.f32 %v764, %v273
    %v766 = vsel %vm385, %v765, 0.0
    %767 = vadd.xlane.f32.xlu0 %v766
    %v768 = vpop.xlane.xlu0 %767
    %v771 = vsel %vm385, %v765, 0
    %v773 = vsel %vm400, %v667, 0
    %775 = vmatprep.subr.mxu0 0.0
    %776 = vmatpush1.msra.mxu0 0.0
    %777 = vmatprep.subr.mxu0 0.0
    %778 = vmatpush1.msra.mxu0 0.0
    %779 = vmatprep.subr.mxu0 0.0
    %780 = vmatpush1.msra.mxu0 0.0
    %781 = vmatprep.subr.mxu0 0.0
    %782 = vmatpush1.msra.mxu0 0.0
    %783 = vmatprep.subr.mxu0 0.0
    %784 = vmatpush1.msra.mxu0 0.0
    %785 = vmatprep.subr.mxu0 0.0
    %786 = vmatpush1.msra.mxu0 0.0
    %787 = vmatprep.subr.mxu0 0.0
    %788 = vmatpush1.msra.mxu0 0.0
    %789 = vmatprep.subr.mxu0 0.0
    %790 = vmatpush1.msra.mxu0 0.0
    %791 = vmatprep.subr.mxu0 0.0
    %792 = vmatpush1.msra.mxu0 0.0
    %793 = vmatprep.subr.mxu0 0.0
    %794 = vmatpush1.msra.mxu0 0.0
    %795 = vmatprep.subr.mxu0 0.0
    %796 = vmatpush1.msra.mxu0 0.0
    %797 = vmatprep.subr.mxu0 0.0
    %798 = vmatpush1.msra.mxu0 0.0
    %799 = vmatprep.subr.mxu0 0.0
    %800 = vmatpush1.msra.mxu0 0.0
    %801 = vmatprep.subr.mxu0 0.0
    %802 = vmatpush1.msra.mxu0 0.0
    %803 = vmatprep.subr.mxu0 0.0
    %804 = vmatpush1.msra.mxu0 %v773
    %805 = vmatprep.subr.mxu0 0.0
    %806 = vmatpush1.msra.mxu0 %v665
    %807 = vmatprep.subr.mxu0 0.0
    %808 = vmatpush2.msra.mxu0 0.0
    %809 = vmatprep.subr.mxu0 0.0
    %810 = vmatpush2.msra.mxu0 0.0
    %811 = vmatprep.subr.mxu0 0.0
    %812 = vmatpush2.msra.mxu0 0.0
    %813 = vmatprep.subr.mxu0 0.0
    %814 = vmatpush2.msra.mxu0 0.0
    %815 = vmatprep.subr.mxu0 0.0
    %816 = vmatpush2.msra.mxu0 0.0
    %817 = vmatprep.subr.mxu0 0.0
    %818 = vmatpush2.msra.mxu0 0.0
    %819 = vmatprep.subr.mxu0 0.0
    %820 = vmatpush2.msra.mxu0 0.0
    %821 = vmatprep.subr.mxu0 0.0
    %822 = vmatpush2.msra.mxu0 0.0
    %823 = vmatprep.subr.mxu0 0.0
    %824 = vmatpush2.msra.mxu0 0.0
    %825 = vmatprep.subr.mxu0 0.0
    %826 = vmatpush2.msra.mxu0 0.0
    %827 = vmatprep.subr.mxu0 0.0
    %828 = vmatpush2.msra.mxu0 0.0
    %829 = vmatprep.subr.mxu0 0.0
    %830 = vmatpush2.msra.mxu0 0.0
    %831 = vmatprep.subr.mxu0 0.0
    %832 = vmatpush2.msra.mxu0 0.0
    %833 = vmatprep.subr.mxu0 0.0
    %834 = vmatpush2.msra.mxu0 0.0
    %835 = vmatprep.subr.mxu0 0.0
    %836 = vmatpush2.msra.mxu0 0.0
    %837 = vmatprep.subr.mxu0 0.0
    %838 = vmatpush2.msra.mxu0 0.0
    %839 = vmatprep.mubr.f32.mxu0 0.0
    %840 = vmatmul.mubr.f32.gmra.mxu0 %v771
    %v841 = vpop.f32.mrf.mxu0
    %v842 = vadd.f32 0.0, %v841
    %v843 = vpop.f32.mrf.mxu0
    %844 = vdwg.mxu0
    %v845 = vmax.f32 %v768, 1e-30
    %v846 = vrcp.pop %v845
    %v847 = vmul.f32 %v842, %v846
    %848 = vrot.lane.b32.xlu0 %v272, 104
    %v849 = vpop.permute.xlu0 %848
    %850 = vrot.lane.b32.xlu0 %v256, 72
    %v851 = vpop.permute.xlu0 %850
    %852 = vrot.lane.b32.xlu0 %v261, 72
    %v853 = vpop.permute.xlu0 %852
    %v854 = vsel %vm282, %v849, 0
    %v856 = vsel %vm282, %v851, 0
    %v858 = vsel %vm282, %v853, 0
    %860 = vmatprep.subr.mxu0 0.0
    %861 = vmatpush1.xpose.msra.mxu0 0.0
    %862 = vmatprep.subr.mxu0 0.0
    %863 = vmatpush1.xpose.msra.mxu0 0.0
    %864 = vmatprep.subr.mxu0 0.0
    %865 = vmatpush1.xpose.msra.mxu0 0.0
    %866 = vmatprep.subr.mxu0 0.0
    %867 = vmatpush1.xpose.msra.mxu0 0.0
    %868 = vmatprep.subr.mxu0 0.0
    %869 = vmatpush1.xpose.msra.mxu0 0.0
    %870 = vmatprep.subr.mxu0 0.0
    %871 = vmatpush1.xpose.msra.mxu0 0.0
    %872 = vmatprep.subr.mxu0 0.0
    %873 = vmatpush1.xpose.msra.mxu0 0.0
    %874 = vmatprep.subr.mxu0 0.0
    %875 = vmatpush1.xpose.msra.mxu0 0.0
    %876 = vmatprep.subr.mxu0 0.0
    %877 = vmatpush1.xpose.msra.mxu0 0.0
    %878 = vmatprep.subr.mxu0 0.0
    %879 = vmatpush1.xpose.msra.mxu0 0.0
    %880 = vmatprep.subr.mxu0 0.0
    %881 = vmatpush1.xpose.msra.mxu0 0.0
    %882 = vmatprep.subr.mxu0 0.0
    %883 = vmatpush1.xpose.msra.mxu0 0.0
    %884 = vmatprep.subr.mxu0 0.0
    %885 = vmatpush1.xpose.msra.mxu0 0.0
    %886 = vmatprep.subr.mxu0 0.0
    %887 = vmatpush1.xpose.msra.mxu0 0.0
    %888 = vmatprep.subr.mxu0 0.0
    %889 = vmatpush1.xpose.msra.mxu0 %v858
    %890 = vmatprep.subr.mxu0 0.0
    %891 = vmatpush1.xpose.msra.mxu0 %v856
    %892 = vmatprep.subr.mxu0 0.0
    %893 = vmatpush2.xpose.msra.mxu0 0.0
    %894 = vmatprep.subr.mxu0 0.0
    %895 = vmatpush2.xpose.msra.mxu0 0.0
    %896 = vmatprep.subr.mxu0 0.0
    %897 = vmatpush2.xpose.msra.mxu0 0.0
    %898 = vmatprep.subr.mxu0 0.0
    %899 = vmatpush2.xpose.msra.mxu0 0.0
    %900 = vmatprep.subr.mxu0 0.0
    %901 = vmatpush2.xpose.msra.mxu0 0.0
    %902 = vmatprep.subr.mxu0 0.0
    %903 = vmatpush2.xpose.msra.mxu0 0.0
    %904 = vmatprep.subr.mxu0 0.0
    %905 = vmatpush2.xpose.msra.mxu0 0.0
    %906 = vmatprep.subr.mxu0 0.0
    %907 = vmatpush2.xpose.msra.mxu0 0.0
    %908 = vmatprep.subr.mxu0 0.0
    %909 = vmatpush2.xpose.msra.mxu0 0.0
    %910 = vmatprep.subr.mxu0 0.0
    %911 = vmatpush2.xpose.msra.mxu0 0.0
    %912 = vmatprep.subr.mxu0 0.0
    %913 = vmatpush2.xpose.msra.mxu0 0.0
    %914 = vmatprep.subr.mxu0 0.0
    %915 = vmatpush2.xpose.msra.mxu0 0.0
    %916 = vmatprep.subr.mxu0 0.0
    %917 = vmatpush2.xpose.msra.mxu0 0.0
    %918 = vmatprep.subr.mxu0 0.0
    %919 = vmatpush2.xpose.msra.mxu0 0.0
    %920 = vmatprep.subr.mxu0 0.0
    %921 = vmatpush2.xpose.msra.mxu0 0.0
    %922 = vmatprep.subr.mxu0 0.0
    %923 = vmatpush2.xpose.msra.mxu0 0.0
    %924 = vmatprep.mubr.f32.mxu0 0.0
    %925 = vmatmul.mubr.f32.gmra.mxu0 %v854
    %v926 = vpop.f32.mrf.mxu0
    %v927 = vadd.f32 0.0, %v926
    %v928 = vpop.f32.mrf.mxu0
    %929 = vdwg.mxu0
    %930 = vrot.lane.b32.xlu0 %v368, 72
    %v931 = vpop.permute.xlu0 %930
    %v933 = vsel %vm282, %v931, 0.0
    %934 = vadd.xlane.f32.xlu0 %v933
    %v935 = vpop.xlane.xlu0 %934
    %v936 = vlaneseq
    %v937 = vshrl.u32 %v936, 7
    %v938 = vsub.s32 0, %v937
    %v939 = vrot.slane %v927, %v938
    %v940 = vadd.f32 %v935, %v939
    %vm941 = vcmp.gt.f32.partialorder %v940, 0.0
    %v942 = vmul.f32 %v940, 0.2
    %v943 = vsel %vm941, %v940, %v942
    %v944 = vadd.f32 %v943, %v275
    %v945 = vsel %vm385, %v944, -inf
    %946 = vmax.xlane.f32.xlu0 %v945
    %v947 = vpop.xlane.xlu0 %946
    %v948 = vsub.f32 %v944, %v947
    %v949 = vmul.f32 %v948, 1.442695
    %v950 = vpow.pop %v949
    %v951 = vmul.f32 %v950, %v273
    %v952 = vsel %vm385, %v951, 0.0
    %953 = vadd.xlane.f32.xlu0 %v952
    %v954 = vpop.xlane.xlu0 %953
    %v957 = vsel %vm385, %v951, 0
    %v959 = vsel %vm400, %v853, 0
    %961 = vmatprep.subr.mxu0 0.0
    %962 = vmatpush1.msra.mxu0 0.0
    %963 = vmatprep.subr.mxu0 0.0
    %964 = vmatpush1.msra.mxu0 0.0
    %965 = vmatprep.subr.mxu0 0.0
    %966 = vmatpush1.msra.mxu0 0.0
    %967 = vmatprep.subr.mxu0 0.0
    %968 = vmatpush1.msra.mxu0 0.0
    %969 = vmatprep.subr.mxu0 0.0
    %970 = vmatpush1.msra.mxu0 0.0
    %971 = vmatprep.subr.mxu0 0.0
    %972 = vmatpush1.msra.mxu0 0.0
    %973 = vmatprep.subr.mxu0 0.0
    %974 = vmatpush1.msra.mxu0 0.0
    %975 = vmatprep.subr.mxu0 0.0
    %976 = vmatpush1.msra.mxu0 0.0
    %977 = vmatprep.subr.mxu0 0.0
    %978 = vmatpush1.msra.mxu0 0.0
    %979 = vmatprep.subr.mxu0 0.0
    %980 = vmatpush1.msra.mxu0 0.0
    %981 = vmatprep.subr.mxu0 0.0
    %982 = vmatpush1.msra.mxu0 0.0
    %983 = vmatprep.subr.mxu0 0.0
    %984 = vmatpush1.msra.mxu0 0.0
    %985 = vmatprep.subr.mxu0 0.0
    %986 = vmatpush1.msra.mxu0 0.0
    %987 = vmatprep.subr.mxu0 0.0
    %988 = vmatpush1.msra.mxu0 0.0
    %989 = vmatprep.subr.mxu0 0.0
    %990 = vmatpush1.msra.mxu0 %v959
    %991 = vmatprep.subr.mxu0 0.0
    %992 = vmatpush1.msra.mxu0 %v851
    %993 = vmatprep.subr.mxu0 0.0
    %994 = vmatpush2.msra.mxu0 0.0
    %995 = vmatprep.subr.mxu0 0.0
    %996 = vmatpush2.msra.mxu0 0.0
    %997 = vmatprep.subr.mxu0 0.0
    %998 = vmatpush2.msra.mxu0 0.0
    %999 = vmatprep.subr.mxu0 0.0
    %1000 = vmatpush2.msra.mxu0 0.0
    %1001 = vmatprep.subr.mxu0 0.0
    %1002 = vmatpush2.msra.mxu0 0.0
    %1003 = vmatprep.subr.mxu0 0.0
    %1004 = vmatpush2.msra.mxu0 0.0
    %1005 = vmatprep.subr.mxu0 0.0
    %1006 = vmatpush2.msra.mxu0 0.0
    %1007 = vmatprep.subr.mxu0 0.0
    %1008 = vmatpush2.msra.mxu0 0.0
    %1009 = vmatprep.subr.mxu0 0.0
    %1010 = vmatpush2.msra.mxu0 0.0
    %1011 = vmatprep.subr.mxu0 0.0
    %1012 = vmatpush2.msra.mxu0 0.0
    %1013 = vmatprep.subr.mxu0 0.0
    %1014 = vmatpush2.msra.mxu0 0.0
    %1015 = vmatprep.subr.mxu0 0.0
    %1016 = vmatpush2.msra.mxu0 0.0
    %1017 = vmatprep.subr.mxu0 0.0
    %1018 = vmatpush2.msra.mxu0 0.0
    %1019 = vmatprep.subr.mxu0 0.0
    %1020 = vmatpush2.msra.mxu0 0.0
    %1021 = vmatprep.subr.mxu0 0.0
    %1022 = vmatpush2.msra.mxu0 0.0
    %1023 = vmatprep.subr.mxu0 0.0
    %1024 = vmatpush2.msra.mxu0 0.0
    %1025 = vmatprep.mubr.f32.mxu0 0.0
    %1026 = vmatmul.mubr.f32.gmra.mxu0 %v957
    %v1027 = vpop.f32.mrf.mxu0
    %v1028 = vadd.f32 0.0, %v1027
    %v1029 = vpop.f32.mrf.mxu0
    %1030 = vdwg.mxu0
    %v1031 = vmax.f32 %v954, 1e-30
    %v1032 = vrcp.pop %v1031
    %v1033 = vmul.f32 %v1028, %v1032
    %1035 = vrot.lane.b32.xlu0 %v661, 8
    %v1036 = vpop.permute.xlu0 %1035
    %1039 = vrot.lane.b32.xlu0 %v847, 16
    %v1040 = vpop.permute.xlu0 %1039
    %1043 = vrot.lane.b32.xlu0 %v1033, 24
    %v1044 = vpop.permute.xlu0 %1043
    %v1046 = vsel %vm282, %v475, %v1036
    %v1047 = vsel %vm182, %v1046, %v1040
    %vm1048 = vcmask 195584
    %v1049 = vsel %vm1048, %v1047, %v1044
    %v1050 = vadd.f32 %v271, %v1049
    %v1051 = vlaneseq
    %v1052 = vshrl.u32 %v1051, 7
    %v1053 = vsub.s32 2, %v1052
    %v1054 = vrot.slane %v272, %v1053
    %v1055 = vadd.f32 %v1050, %v1054
    %s1056 = scalar_lea.vmem [#allocation8], 8
    %v1057 = vld [vmem:[%s1056] sm:$0xff]
    %v1058 = vsub.f32 1.0, %v1057
    %v1059 = vmul.f32 %v1058, -1e+30
    %v1060 = vrot.slane %v272, 3
    %1061 = vrot.lane.b32.xlu0 %v256, 64
    %v1062 = vpop.permute.xlu0 %1061
    %1063 = vrot.lane.b32.xlu0 %v261, 64
    %v1064 = vpop.permute.xlu0 %1063
    %v1065 = vsel %vm282, %v1060, 0
    %v1067 = vsel %vm282, %v1062, 0
    %v1069 = vsel %vm282, %v1064, 0
    %1071 = vmatprep.subr.mxu0 0.0
    %1072 = vmatpush1.xpose.msra.mxu0 0.0
    %1073 = vmatprep.subr.mxu0 0.0
    %1074 = vmatpush1.xpose.msra.mxu0 0.0
    %1075 = vmatprep.subr.mxu0 0.0
    %1076 = vmatpush1.xpose.msra.mxu0 0.0
    %1077 = vmatprep.subr.mxu0 0.0
    %1078 = vmatpush1.xpose.msra.mxu0 0.0
    %1079 = vmatprep.subr.mxu0 0.0
    %1080 = vmatpush1.xpose.msra.mxu0 0.0
    %1081 = vmatprep.subr.mxu0 0.0
    %1082 = vmatpush1.xpose.msra.mxu0 0.0
    %1083 = vmatprep.subr.mxu0 0.0
    %1084 = vmatpush1.xpose.msra.mxu0 0.0
    %1085 = vmatprep.subr.mxu0 0.0
    %1086 = vmatpush1.xpose.msra.mxu0 0.0
    %1087 = vmatprep.subr.mxu0 0.0
    %1088 = vmatpush1.xpose.msra.mxu0 0.0
    %1089 = vmatprep.subr.mxu0 0.0
    %1090 = vmatpush1.xpose.msra.mxu0 0.0
    %1091 = vmatprep.subr.mxu0 0.0
    %1092 = vmatpush1.xpose.msra.mxu0 0.0
    %1093 = vmatprep.subr.mxu0 0.0
    %1094 = vmatpush1.xpose.msra.mxu0 0.0
    %1095 = vmatprep.subr.mxu0 0.0
    %1096 = vmatpush1.xpose.msra.mxu0 0.0
    %1097 = vmatprep.subr.mxu0 0.0
    %1098 = vmatpush1.xpose.msra.mxu0 0.0
    %1099 = vmatprep.subr.mxu0 0.0
    %1100 = vmatpush1.xpose.msra.mxu0 %v1069
    %1101 = vmatprep.subr.mxu0 0.0
    %1102 = vmatpush1.xpose.msra.mxu0 %v1067
    %1103 = vmatprep.subr.mxu0 0.0
    %1104 = vmatpush2.xpose.msra.mxu0 0.0
    %1105 = vmatprep.subr.mxu0 0.0
    %1106 = vmatpush2.xpose.msra.mxu0 0.0
    %1107 = vmatprep.subr.mxu0 0.0
    %1108 = vmatpush2.xpose.msra.mxu0 0.0
    %1109 = vmatprep.subr.mxu0 0.0
    %1110 = vmatpush2.xpose.msra.mxu0 0.0
    %1111 = vmatprep.subr.mxu0 0.0
    %1112 = vmatpush2.xpose.msra.mxu0 0.0
    %1113 = vmatprep.subr.mxu0 0.0
    %1114 = vmatpush2.xpose.msra.mxu0 0.0
    %1115 = vmatprep.subr.mxu0 0.0
    %1116 = vmatpush2.xpose.msra.mxu0 0.0
    %1117 = vmatprep.subr.mxu0 0.0
    %1118 = vmatpush2.xpose.msra.mxu0 0.0
    %1119 = vmatprep.subr.mxu0 0.0
    %1120 = vmatpush2.xpose.msra.mxu0 0.0
    %1121 = vmatprep.subr.mxu0 0.0
    %1122 = vmatpush2.xpose.msra.mxu0 0.0
    %1123 = vmatprep.subr.mxu0 0.0
    %1124 = vmatpush2.xpose.msra.mxu0 0.0
    %1125 = vmatprep.subr.mxu0 0.0
    %1126 = vmatpush2.xpose.msra.mxu0 0.0
    %1127 = vmatprep.subr.mxu0 0.0
    %1128 = vmatpush2.xpose.msra.mxu0 0.0
    %1129 = vmatprep.subr.mxu0 0.0
    %1130 = vmatpush2.xpose.msra.mxu0 0.0
    %1131 = vmatprep.subr.mxu0 0.0
    %1132 = vmatpush2.xpose.msra.mxu0 0.0
    %1133 = vmatprep.subr.mxu0 0.0
    %1134 = vmatpush2.xpose.msra.mxu0 0.0
    %1135 = vmatprep.mubr.f32.mxu0 0.0
    %1136 = vmatmul.mubr.f32.gmra.mxu0 %v1065
    %v1137 = vpop.f32.mrf.mxu0
    %v1138 = vadd.f32 0.0, %v1137
    %v1139 = vpop.f32.mrf.mxu0
    %1140 = vdwg.mxu0
    %v1141 = vlaneseq
    %v1142 = vshrl.u32 %v1141, 7
    %v1143 = vsub.s32 4, %v1142
    %v1144 = vrot.slane %v272, %v1143
    %1146 = vrot.lane.b32.xlu0 %v1144, 64
    %v1147 = vpop.permute.xlu0 %1146
    %v1149 = vmul.f32 %v256, %v1147
    %1151 = vrot.lane.b32.xlu0 %v1149, 64
    %v1152 = vpop.permute.xlu0 %1151
    %v1154 = vsel %vm282, %v1152, 0.0
    %1155 = vadd.xlane.f32.xlu0 %v1154
    %v1156 = vpop.xlane.xlu0 %1155
    %v1157 = vlaneseq
    %v1158 = vshrl.u32 %v1157, 7
    %v1159 = vsub.s32 0, %v1158
    %v1160 = vrot.slane %v1138, %v1159
    %v1161 = vadd.f32 %v1156, %v1160
    %vm1162 = vcmp.gt.f32.partialorder %v1161, 0.0
    %v1163 = vmul.f32 %v1161, 0.2
    %v1164 = vsel %vm1162, %v1161, %v1163
    %v1165 = vadd.f32 %v1164, %v1059
    %v1166 = vsel %vm385, %v1165, -inf
    %1167 = vmax.xlane.f32.xlu0 %v1166
    %v1168 = vpop.xlane.xlu0 %1167
    %v1169 = vsub.f32 %v1165, %v1168
    %v1170 = vmul.f32 %v1169, 1.442695
    %v1171 = vpow.pop %v1170
    %v1172 = vmul.f32 %v1171, %v1057
    %v1173 = vsel %vm385, %v1172, 0.0
    %1174 = vadd.xlane.f32.xlu0 %v1173
    %v1175 = vpop.xlane.xlu0 %1174
    %v1178 = vsel %vm385, %v1172, 0
    %v1180 = vsel %vm400, %v1064, 0
    %1182 = vmatprep.subr.mxu0 0.0
    %1183 = vmatpush1.msra.mxu0 0.0
    %1184 = vmatprep.subr.mxu0 0.0
    %1185 = vmatpush1.msra.mxu0 0.0
    %1186 = vmatprep.subr.mxu0 0.0
    %1187 = vmatpush1.msra.mxu0 0.0
    %1188 = vmatprep.subr.mxu0 0.0
    %1189 = vmatpush1.msra.mxu0 0.0
    %1190 = vmatprep.subr.mxu0 0.0
    %1191 = vmatpush1.msra.mxu0 0.0
    %1192 = vmatprep.subr.mxu0 0.0
    %1193 = vmatpush1.msra.mxu0 0.0
    %1194 = vmatprep.subr.mxu0 0.0
    %1195 = vmatpush1.msra.mxu0 0.0
    %1196 = vmatprep.subr.mxu0 0.0
    %1197 = vmatpush1.msra.mxu0 0.0
    %1198 = vmatprep.subr.mxu0 0.0
    %1199 = vmatpush1.msra.mxu0 0.0
    %1200 = vmatprep.subr.mxu0 0.0
    %1201 = vmatpush1.msra.mxu0 0.0
    %1202 = vmatprep.subr.mxu0 0.0
    %1203 = vmatpush1.msra.mxu0 0.0
    %1204 = vmatprep.subr.mxu0 0.0
    %1205 = vmatpush1.msra.mxu0 0.0
    %1206 = vmatprep.subr.mxu0 0.0
    %1207 = vmatpush1.msra.mxu0 0.0
    %1208 = vmatprep.subr.mxu0 0.0
    %1209 = vmatpush1.msra.mxu0 0.0
    %1210 = vmatprep.subr.mxu0 0.0
    %1211 = vmatpush1.msra.mxu0 %v1180
    %1212 = vmatprep.subr.mxu0 0.0
    %1213 = vmatpush1.msra.mxu0 %v1062
    %1214 = vmatprep.subr.mxu0 0.0
    %1215 = vmatpush2.msra.mxu0 0.0
    %1216 = vmatprep.subr.mxu0 0.0
    %1217 = vmatpush2.msra.mxu0 0.0
    %1218 = vmatprep.subr.mxu0 0.0
    %1219 = vmatpush2.msra.mxu0 0.0
    %1220 = vmatprep.subr.mxu0 0.0
    %1221 = vmatpush2.msra.mxu0 0.0
    %1222 = vmatprep.subr.mxu0 0.0
    %1223 = vmatpush2.msra.mxu0 0.0
    %1224 = vmatprep.subr.mxu0 0.0
    %1225 = vmatpush2.msra.mxu0 0.0
    %1226 = vmatprep.subr.mxu0 0.0
    %1227 = vmatpush2.msra.mxu0 0.0
    %1228 = vmatprep.subr.mxu0 0.0
    %1229 = vmatpush2.msra.mxu0 0.0
    %1230 = vmatprep.subr.mxu0 0.0
    %1231 = vmatpush2.msra.mxu0 0.0
    %1232 = vmatprep.subr.mxu0 0.0
    %1233 = vmatpush2.msra.mxu0 0.0
    %1234 = vmatprep.subr.mxu0 0.0
    %1235 = vmatpush2.msra.mxu0 0.0
    %1236 = vmatprep.subr.mxu0 0.0
    %1237 = vmatpush2.msra.mxu0 0.0
    %1238 = vmatprep.subr.mxu0 0.0
    %1239 = vmatpush2.msra.mxu0 0.0
    %1240 = vmatprep.subr.mxu0 0.0
    %1241 = vmatpush2.msra.mxu0 0.0
    %1242 = vmatprep.subr.mxu0 0.0
    %1243 = vmatpush2.msra.mxu0 0.0
    %1244 = vmatprep.subr.mxu0 0.0
    %1245 = vmatpush2.msra.mxu0 0.0
    %1246 = vmatprep.mubr.f32.mxu0 0.0
    %1247 = vmatmul.mubr.f32.gmra.mxu0 %v1178
    %v1248 = vpop.f32.mrf.mxu0
    %v1249 = vadd.f32 0.0, %v1248
    %v1250 = vpop.f32.mrf.mxu0
    %1251 = vdwg.mxu0
    %v1252 = vmax.f32 %v1175, 1e-30
    %v1253 = vrcp.pop %v1252
    %v1254 = vmul.f32 %v1249, %v1253
    %1255 = vrot.lane.b32.xlu0 %v1060, 120
    %v1256 = vpop.permute.xlu0 %1255
    %1257 = vrot.lane.b32.xlu0 %v256, 56
    %v1258 = vpop.permute.xlu0 %1257
    %1259 = vrot.lane.b32.xlu0 %v261, 56
    %v1260 = vpop.permute.xlu0 %1259
    %v1261 = vsel %vm282, %v1256, 0
    %v1263 = vsel %vm282, %v1258, 0
    %v1265 = vsel %vm282, %v1260, 0
    %1267 = vmatprep.subr.mxu0 0.0
    %1268 = vmatpush1.xpose.msra.mxu0 0.0
    %1269 = vmatprep.subr.mxu0 0.0
    %1270 = vmatpush1.xpose.msra.mxu0 0.0
    %1271 = vmatprep.subr.mxu0 0.0
    %1272 = vmatpush1.xpose.msra.mxu0 0.0
    %1273 = vmatprep.subr.mxu0 0.0
    %1274 = vmatpush1.xpose.msra.mxu0 0.0
    %1275 = vmatprep.subr.mxu0 0.0
    %1276 = vmatpush1.xpose.msra.mxu0 0.0
    %1277 = vmatprep.subr.mxu0 0.0
    %1278 = vmatpush1.xpose.msra.mxu0 0.0
    %1279 = vmatprep.subr.mxu0 0.0
    %1280 = vmatpush1.xpose.msra.mxu0 0.0
    %1281 = vmatprep.subr.mxu0 0.0
    %1282 = vmatpush1.xpose.msra.mxu0 0.0
    %1283 = vmatprep.subr.mxu0 0.0
    %1284 = vmatpush1.xpose.msra.mxu0 0.0
    %1285 = vmatprep.subr.mxu0 0.0
    %1286 = vmatpush1.xpose.msra.mxu0 0.0
    %1287 = vmatprep.subr.mxu0 0.0
    %1288 = vmatpush1.xpose.msra.mxu0 0.0
    %1289 = vmatprep.subr.mxu0 0.0
    %1290 = vmatpush1.xpose.msra.mxu0 0.0
    %1291 = vmatprep.subr.mxu0 0.0
    %1292 = vmatpush1.xpose.msra.mxu0 0.0
    %1293 = vmatprep.subr.mxu0 0.0
    %1294 = vmatpush1.xpose.msra.mxu0 0.0
    %1295 = vmatprep.subr.mxu0 0.0
    %1296 = vmatpush1.xpose.msra.mxu0 %v1265
    %1297 = vmatprep.subr.mxu0 0.0
    %1298 = vmatpush1.xpose.msra.mxu0 %v1263
    %1299 = vmatprep.subr.mxu0 0.0
    %1300 = vmatpush2.xpose.msra.mxu0 0.0
    %1301 = vmatprep.subr.mxu0 0.0
    %1302 = vmatpush2.xpose.msra.mxu0 0.0
    %1303 = vmatprep.subr.mxu0 0.0
    %1304 = vmatpush2.xpose.msra.mxu0 0.0
    %1305 = vmatprep.subr.mxu0 0.0
    %1306 = vmatpush2.xpose.msra.mxu0 0.0
    %1307 = vmatprep.subr.mxu0 0.0
    %1308 = vmatpush2.xpose.msra.mxu0 0.0
    %1309 = vmatprep.subr.mxu0 0.0
    %1310 = vmatpush2.xpose.msra.mxu0 0.0
    %1311 = vmatprep.subr.mxu0 0.0
    %1312 = vmatpush2.xpose.msra.mxu0 0.0
    %1313 = vmatprep.subr.mxu0 0.0
    %1314 = vmatpush2.xpose.msra.mxu0 0.0
    %1315 = vmatprep.subr.mxu0 0.0
    %1316 = vmatpush2.xpose.msra.mxu0 0.0
    %1317 = vmatprep.subr.mxu0 0.0
    %1318 = vmatpush2.xpose.msra.mxu0 0.0
    %1319 = vmatprep.subr.mxu0 0.0
    %1320 = vmatpush2.xpose.msra.mxu0 0.0
    %1321 = vmatprep.subr.mxu0 0.0
    %1322 = vmatpush2.xpose.msra.mxu0 0.0
    %1323 = vmatprep.subr.mxu0 0.0
    %1324 = vmatpush2.xpose.msra.mxu0 0.0
    %1325 = vmatprep.subr.mxu0 0.0
    %1326 = vmatpush2.xpose.msra.mxu0 0.0
    %1327 = vmatprep.subr.mxu0 0.0
    %1328 = vmatpush2.xpose.msra.mxu0 0.0
    %1329 = vmatprep.subr.mxu0 0.0
    %1330 = vmatpush2.xpose.msra.mxu0 0.0
    %1331 = vmatprep.mubr.f32.mxu0 0.0
    %1332 = vmatmul.mubr.f32.gmra.mxu0 %v1261
    %v1333 = vpop.f32.mrf.mxu0
    %v1334 = vadd.f32 0.0, %v1333
    %v1335 = vpop.f32.mrf.mxu0
    %1336 = vdwg.mxu0
    %1337 = vrot.lane.b32.xlu0 %v1149, 56
    %v1338 = vpop.permute.xlu0 %1337
    %v1340 = vsel %vm282, %v1338, 0.0
    %1341 = vadd.xlane.f32.xlu0 %v1340
    %v1342 = vpop.xlane.xlu0 %1341
    %v1343 = vlaneseq
    %v1344 = vshrl.u32 %v1343, 7
    %v1345 = vsub.s32 0, %v1344
    %v1346 = vrot.slane %v1334, %v1345
    %v1347 = vadd.f32 %v1342, %v1346
    %vm1348 = vcmp.gt.f32.partialorder %v1347, 0.0
    %v1349 = vmul.f32 %v1347, 0.2
    %v1350 = vsel %vm1348, %v1347, %v1349
    %v1351 = vadd.f32 %v1350, %v1059
    %v1352 = vsel %vm385, %v1351, -inf
    %1353 = vmax.xlane.f32.xlu0 %v1352
    %v1354 = vpop.xlane.xlu0 %1353
    %v1355 = vsub.f32 %v1351, %v1354
    %v1356 = vmul.f32 %v1355, 1.442695
    %v1357 = vpow.pop %v1356
    %v1358 = vmul.f32 %v1357, %v1057
    %v1359 = vsel %vm385, %v1358, 0.0
    %1360 = vadd.xlane.f32.xlu0 %v1359
    %v1361 = vpop.xlane.xlu0 %1360
    %v1364 = vsel %vm385, %v1358, 0
    %v1366 = vsel %vm400, %v1260, 0
    %1368 = vmatprep.subr.mxu0 0.0
    %1369 = vmatpush1.msra.mxu0 0.0
    %1370 = vmatprep.subr.mxu0 0.0
    %1371 = vmatpush1.msra.mxu0 0.0
    %1372 = vmatprep.subr.mxu0 0.0
    %1373 = vmatpush1.msra.mxu0 0.0
    %1374 = vmatprep.subr.mxu0 0.0
    %1375 = vmatpush1.msra.mxu0 0.0
    %1376 = vmatprep.subr.mxu0 0.0
    %1377 = vmatpush1.msra.mxu0 0.0
    %1378 = vmatprep.subr.mxu0 0.0
    %1379 = vmatpush1.msra.mxu0 0.0
    %1380 = vmatprep.subr.mxu0 0.0
    %1381 = vmatpush1.msra.mxu0 0.0
    %1382 = vmatprep.subr.mxu0 0.0
    %1383 = vmatpush1.msra.mxu0 0.0
    %1384 = vmatprep.subr.mxu0 0.0
    %1385 = vmatpush1.msra.mxu0 0.0
    %1386 = vmatprep.subr.mxu0 0.0
    %1387 = vmatpush1.msra.mxu0 0.0
    %1388 = vmatprep.subr.mxu0 0.0
    %1389 = vmatpush1.msra.mxu0 0.0
    %1390 = vmatprep.subr.mxu0 0.0
    %1391 = vmatpush1.msra.mxu0 0.0
    %1392 = vmatprep.subr.mxu0 0.0
    %1393 = vmatpush1.msra.mxu0 0.0
    %1394 = vmatprep.subr.mxu0 0.0
    %1395 = vmatpush1.msra.mxu0 0.0
    %1396 = vmatprep.subr.mxu0 0.0
    %1397 = vmatpush1.msra.mxu0 %v1366
    %1398 = vmatprep.subr.mxu0 0.0
    %1399 = vmatpush1.msra.mxu0 %v1258
    %1400 = vmatprep.subr.mxu0 0.0
    %1401 = vmatpush2.msra.mxu0 0.0
    %1402 = vmatprep.subr.mxu0 0.0
    %1403 = vmatpush2.msra.mxu0 0.0
    %1404 = vmatprep.subr.mxu0 0.0
    %1405 = vmatpush2.msra.mxu0 0.0
    %1406 = vmatprep.subr.mxu0 0.0
    %1407 = vmatpush2.msra.mxu0 0.0
    %1408 = vmatprep.subr.mxu0 0.0
    %1409 = vmatpush2.msra.mxu0 0.0
    %1410 = vmatprep.subr.mxu0 0.0
    %1411 = vmatpush2.msra.mxu0 0.0
    %1412 = vmatprep.subr.mxu0 0.0
    %1413 = vmatpush2.msra.mxu0 0.0
    %1414 = vmatprep.subr.mxu0 0.0
    %1415 = vmatpush2.msra.mxu0 0.0
    %1416 = vmatprep.subr.mxu0 0.0
    %1417 = vmatpush2.msra.mxu0 0.0
    %1418 = vmatprep.subr.mxu0 0.0
    %1419 = vmatpush2.msra.mxu0 0.0
    %1420 = vmatprep.subr.mxu0 0.0
    %1421 = vmatpush2.msra.mxu0 0.0
    %1422 = vmatprep.subr.mxu0 0.0
    %1423 = vmatpush2.msra.mxu0 0.0
    %1424 = vmatprep.subr.mxu0 0.0
    %1425 = vmatpush2.msra.mxu0 0.0
    %1426 = vmatprep.subr.mxu0 0.0
    %1427 = vmatpush2.msra.mxu0 0.0
    %1428 = vmatprep.subr.mxu0 0.0
    %1429 = vmatpush2.msra.mxu0 0.0
    %1430 = vmatprep.subr.mxu0 0.0
    %1431 = vmatpush2.msra.mxu0 0.0
    %1432 = vmatprep.mubr.f32.mxu0 0.0
    %1433 = vmatmul.mubr.f32.gmra.mxu0 %v1364
    %v1434 = vpop.f32.mrf.mxu0
    %v1435 = vadd.f32 0.0, %v1434
    %v1436 = vpop.f32.mrf.mxu0
    %1437 = vdwg.mxu0
    %v1438 = vmax.f32 %v1361, 1e-30
    %v1439 = vrcp.pop %v1438
    %v1440 = vmul.f32 %v1435, %v1439
    %1441 = vrot.lane.b32.xlu0 %v1060, 112
    %v1442 = vpop.permute.xlu0 %1441
    %1443 = vrot.lane.b32.xlu0 %v256, 48
    %v1444 = vpop.permute.xlu0 %1443
    %1445 = vrot.lane.b32.xlu0 %v261, 48
    %v1446 = vpop.permute.xlu0 %1445
    %v1447 = vsel %vm282, %v1442, 0
    %v1449 = vsel %vm282, %v1444, 0
    %v1451 = vsel %vm282, %v1446, 0
    %1453 = vmatprep.subr.mxu0 0.0
    %1454 = vmatpush1.xpose.msra.mxu0 0.0
    %1455 = vmatprep.subr.mxu0 0.0
    %1456 = vmatpush1.xpose.msra.mxu0 0.0
    %1457 = vmatprep.subr.mxu0 0.0
    %1458 = vmatpush1.xpose.msra.mxu0 0.0
    %1459 = vmatprep.subr.mxu0 0.0
    %1460 = vmatpush1.xpose.msra.mxu0 0.0
    %1461 = vmatprep.subr.mxu0 0.0
    %1462 = vmatpush1.xpose.msra.mxu0 0.0
    %1463 = vmatprep.subr.mxu0 0.0
    %1464 = vmatpush1.xpose.msra.mxu0 0.0
    %1465 = vmatprep.subr.mxu0 0.0
    %1466 = vmatpush1.xpose.msra.mxu0 0.0
    %1467 = vmatprep.subr.mxu0 0.0
    %1468 = vmatpush1.xpose.msra.mxu0 0.0
    %1469 = vmatprep.subr.mxu0 0.0
    %1470 = vmatpush1.xpose.msra.mxu0 0.0
    %1471 = vmatprep.subr.mxu0 0.0
    %1472 = vmatpush1.xpose.msra.mxu0 0.0
    %1473 = vmatprep.subr.mxu0 0.0
    %1474 = vmatpush1.xpose.msra.mxu0 0.0
    %1475 = vmatprep.subr.mxu0 0.0
    %1476 = vmatpush1.xpose.msra.mxu0 0.0
    %1477 = vmatprep.subr.mxu0 0.0
    %1478 = vmatpush1.xpose.msra.mxu0 0.0
    %1479 = vmatprep.subr.mxu0 0.0
    %1480 = vmatpush1.xpose.msra.mxu0 0.0
    %1481 = vmatprep.subr.mxu0 0.0
    %1482 = vmatpush1.xpose.msra.mxu0 %v1451
    %1483 = vmatprep.subr.mxu0 0.0
    %1484 = vmatpush1.xpose.msra.mxu0 %v1449
    %1485 = vmatprep.subr.mxu0 0.0
    %1486 = vmatpush2.xpose.msra.mxu0 0.0
    %1487 = vmatprep.subr.mxu0 0.0
    %1488 = vmatpush2.xpose.msra.mxu0 0.0
    %1489 = vmatprep.subr.mxu0 0.0
    %1490 = vmatpush2.xpose.msra.mxu0 0.0
    %1491 = vmatprep.subr.mxu0 0.0
    %1492 = vmatpush2.xpose.msra.mxu0 0.0
    %1493 = vmatprep.subr.mxu0 0.0
    %1494 = vmatpush2.xpose.msra.mxu0 0.0
    %1495 = vmatprep.subr.mxu0 0.0
    %1496 = vmatpush2.xpose.msra.mxu0 0.0
    %1497 = vmatprep.subr.mxu0 0.0
    %1498 = vmatpush2.xpose.msra.mxu0 0.0
    %1499 = vmatprep.subr.mxu0 0.0
    %1500 = vmatpush2.xpose.msra.mxu0 0.0
    %1501 = vmatprep.subr.mxu0 0.0
    %1502 = vmatpush2.xpose.msra.mxu0 0.0
    %1503 = vmatprep.subr.mxu0 0.0
    %1504 = vmatpush2.xpose.msra.mxu0 0.0
    %1505 = vmatprep.subr.mxu0 0.0
    %1506 = vmatpush2.xpose.msra.mxu0 0.0
    %1507 = vmatprep.subr.mxu0 0.0
    %1508 = vmatpush2.xpose.msra.mxu0 0.0
    %1509 = vmatprep.subr.mxu0 0.0
    %1510 = vmatpush2.xpose.msra.mxu0 0.0
    %1511 = vmatprep.subr.mxu0 0.0
    %1512 = vmatpush2.xpose.msra.mxu0 0.0
    %1513 = vmatprep.subr.mxu0 0.0
    %1514 = vmatpush2.xpose.msra.mxu0 0.0
    %1515 = vmatprep.subr.mxu0 0.0
    %1516 = vmatpush2.xpose.msra.mxu0 0.0
    %1517 = vmatprep.mubr.f32.mxu0 0.0
    %1518 = vmatmul.mubr.f32.gmra.mxu0 %v1447
    %v1519 = vpop.f32.mrf.mxu0
    %v1520 = vadd.f32 0.0, %v1519
    %v1521 = vpop.f32.mrf.mxu0
    %1522 = vdwg.mxu0
    %1523 = vrot.lane.b32.xlu0 %v1149, 48
    %v1524 = vpop.permute.xlu0 %1523
    %v1526 = vsel %vm282, %v1524, 0.0
    %1527 = vadd.xlane.f32.xlu0 %v1526
    %v1528 = vpop.xlane.xlu0 %1527
    %v1529 = vlaneseq
    %v1530 = vshrl.u32 %v1529, 7
    %v1531 = vsub.s32 0, %v1530
    %v1532 = vrot.slane %v1520, %v1531
    %v1533 = vadd.f32 %v1528, %v1532
    %vm1534 = vcmp.gt.f32.partialorder %v1533, 0.0
    %v1535 = vmul.f32 %v1533, 0.2
    %v1536 = vsel %vm1534, %v1533, %v1535
    %v1537 = vadd.f32 %v1536, %v1059
    %v1538 = vsel %vm385, %v1537, -inf
    %1539 = vmax.xlane.f32.xlu0 %v1538
    %v1540 = vpop.xlane.xlu0 %1539
    %v1541 = vsub.f32 %v1537, %v1540
    %v1542 = vmul.f32 %v1541, 1.442695
    %v1543 = vpow.pop %v1542
    %v1544 = vmul.f32 %v1543, %v1057
    %v1545 = vsel %vm385, %v1544, 0.0
    %1546 = vadd.xlane.f32.xlu0 %v1545
    %v1547 = vpop.xlane.xlu0 %1546
    %v1550 = vsel %vm385, %v1544, 0
    %v1552 = vsel %vm400, %v1446, 0
    %1554 = vmatprep.subr.mxu0 0.0
    %1555 = vmatpush1.msra.mxu0 0.0
    %1556 = vmatprep.subr.mxu0 0.0
    %1557 = vmatpush1.msra.mxu0 0.0
    %1558 = vmatprep.subr.mxu0 0.0
    %1559 = vmatpush1.msra.mxu0 0.0
    %1560 = vmatprep.subr.mxu0 0.0
    %1561 = vmatpush1.msra.mxu0 0.0
    %1562 = vmatprep.subr.mxu0 0.0
    %1563 = vmatpush1.msra.mxu0 0.0
    %1564 = vmatprep.subr.mxu0 0.0
    %1565 = vmatpush1.msra.mxu0 0.0
    %1566 = vmatprep.subr.mxu0 0.0
    %1567 = vmatpush1.msra.mxu0 0.0
    %1568 = vmatprep.subr.mxu0 0.0
    %1569 = vmatpush1.msra.mxu0 0.0
    %1570 = vmatprep.subr.mxu0 0.0
    %1571 = vmatpush1.msra.mxu0 0.0
    %1572 = vmatprep.subr.mxu0 0.0
    %1573 = vmatpush1.msra.mxu0 0.0
    %1574 = vmatprep.subr.mxu0 0.0
    %1575 = vmatpush1.msra.mxu0 0.0
    %1576 = vmatprep.subr.mxu0 0.0
    %1577 = vmatpush1.msra.mxu0 0.0
    %1578 = vmatprep.subr.mxu0 0.0
    %1579 = vmatpush1.msra.mxu0 0.0
    %1580 = vmatprep.subr.mxu0 0.0
    %1581 = vmatpush1.msra.mxu0 0.0
    %1582 = vmatprep.subr.mxu0 0.0
    %1583 = vmatpush1.msra.mxu0 %v1552
    %1584 = vmatprep.subr.mxu0 0.0
    %1585 = vmatpush1.msra.mxu0 %v1444
    %1586 = vmatprep.subr.mxu0 0.0
    %1587 = vmatpush2.msra.mxu0 0.0
    %1588 = vmatprep.subr.mxu0 0.0
    %1589 = vmatpush2.msra.mxu0 0.0
    %1590 = vmatprep.subr.mxu0 0.0
    %1591 = vmatpush2.msra.mxu0 0.0
    %1592 = vmatprep.subr.mxu0 0.0
    %1593 = vmatpush2.msra.mxu0 0.0
    %1594 = vmatprep.subr.mxu0 0.0
    %1595 = vmatpush2.msra.mxu0 0.0
    %1596 = vmatprep.subr.mxu0 0.0
    %1597 = vmatpush2.msra.mxu0 0.0
    %1598 = vmatprep.subr.mxu0 0.0
    %1599 = vmatpush2.msra.mxu0 0.0
    %1600 = vmatprep.subr.mxu0 0.0
    %1601 = vmatpush2.msra.mxu0 0.0
    %1602 = vmatprep.subr.mxu0 0.0
    %1603 = vmatpush2.msra.mxu0 0.0
    %1604 = vmatprep.subr.mxu0 0.0
    %1605 = vmatpush2.msra.mxu0 0.0
    %1606 = vmatprep.subr.mxu0 0.0
    %1607 = vmatpush2.msra.mxu0 0.0
    %1608 = vmatprep.subr.mxu0 0.0
    %1609 = vmatpush2.msra.mxu0 0.0
    %1610 = vmatprep.subr.mxu0 0.0
    %1611 = vmatpush2.msra.mxu0 0.0
    %1612 = vmatprep.subr.mxu0 0.0
    %1613 = vmatpush2.msra.mxu0 0.0
    %1614 = vmatprep.subr.mxu0 0.0
    %1615 = vmatpush2.msra.mxu0 0.0
    %1616 = vmatprep.subr.mxu0 0.0
    %1617 = vmatpush2.msra.mxu0 0.0
    %1618 = vmatprep.mubr.f32.mxu0 0.0
    %1619 = vmatmul.mubr.f32.gmra.mxu0 %v1550
    %v1620 = vpop.f32.mrf.mxu0
    %v1621 = vadd.f32 0.0, %v1620
    %v1622 = vpop.f32.mrf.mxu0
    %1623 = vdwg.mxu0
    %v1624 = vmax.f32 %v1547, 1e-30
    %v1625 = vrcp.pop %v1624
    %v1626 = vmul.f32 %v1621, %v1625
    %1627 = vrot.lane.b32.xlu0 %v1060, 104
    %v1628 = vpop.permute.xlu0 %1627
    %1629 = vrot.lane.b32.xlu0 %v256, 40
    %v1630 = vpop.permute.xlu0 %1629
    %1631 = vrot.lane.b32.xlu0 %v261, 40
    %v1632 = vpop.permute.xlu0 %1631
    %v1633 = vsel %vm282, %v1628, 0
    %v1635 = vsel %vm282, %v1630, 0
    %v1637 = vsel %vm282, %v1632, 0
    %1639 = vmatprep.subr.mxu0 0.0
    %1640 = vmatpush1.xpose.msra.mxu0 0.0
    %1641 = vmatprep.subr.mxu0 0.0
    %1642 = vmatpush1.xpose.msra.mxu0 0.0
    %1643 = vmatprep.subr.mxu0 0.0
    %1644 = vmatpush1.xpose.msra.mxu0 0.0
    %1645 = vmatprep.subr.mxu0 0.0
    %1646 = vmatpush1.xpose.msra.mxu0 0.0
    %1647 = vmatprep.subr.mxu0 0.0
    %1648 = vmatpush1.xpose.msra.mxu0 0.0
    %1649 = vmatprep.subr.mxu0 0.0
    %1650 = vmatpush1.xpose.msra.mxu0 0.0
    %1651 = vmatprep.subr.mxu0 0.0
    %1652 = vmatpush1.xpose.msra.mxu0 0.0
    %1653 = vmatprep.subr.mxu0 0.0
    %1654 = vmatpush1.xpose.msra.mxu0 0.0
    %1655 = vmatprep.subr.mxu0 0.0
    %1656 = vmatpush1.xpose.msra.mxu0 0.0
    %1657 = vmatprep.subr.mxu0 0.0
    %1658 = vmatpush1.xpose.msra.mxu0 0.0
    %1659 = vmatprep.subr.mxu0 0.0
    %1660 = vmatpush1.xpose.msra.mxu0 0.0
    %1661 = vmatprep.subr.mxu0 0.0
    %1662 = vmatpush1.xpose.msra.mxu0 0.0
    %1663 = vmatprep.subr.mxu0 0.0
    %1664 = vmatpush1.xpose.msra.mxu0 0.0
    %1665 = vmatprep.subr.mxu0 0.0
    %1666 = vmatpush1.xpose.msra.mxu0 0.0
    %1667 = vmatprep.subr.mxu0 0.0
    %1668 = vmatpush1.xpose.msra.mxu0 %v1637
    %1669 = vmatprep.subr.mxu0 0.0
    %1670 = vmatpush1.xpose.msra.mxu0 %v1635
    %1671 = vmatprep.subr.mxu0 0.0
    %1672 = vmatpush2.xpose.msra.mxu0 0.0
    %1673 = vmatprep.subr.mxu0 0.0
    %1674 = vmatpush2.xpose.msra.mxu0 0.0
    %1675 = vmatprep.subr.mxu0 0.0
    %1676 = vmatpush2.xpose.msra.mxu0 0.0
    %1677 = vmatprep.subr.mxu0 0.0
    %1678 = vmatpush2.xpose.msra.mxu0 0.0
    %1679 = vmatprep.subr.mxu0 0.0
    %1680 = vmatpush2.xpose.msra.mxu0 0.0
    %1681 = vmatprep.subr.mxu0 0.0
    %1682 = vmatpush2.xpose.msra.mxu0 0.0
    %1683 = vmatprep.subr.mxu0 0.0
    %1684 = vmatpush2.xpose.msra.mxu0 0.0
    %1685 = vmatprep.subr.mxu0 0.0
    %1686 = vmatpush2.xpose.msra.mxu0 0.0
    %1687 = vmatprep.subr.mxu0 0.0
    %1688 = vmatpush2.xpose.msra.mxu0 0.0
    %1689 = vmatprep.subr.mxu0 0.0
    %1690 = vmatpush2.xpose.msra.mxu0 0.0
    %1691 = vmatprep.subr.mxu0 0.0
    %1692 = vmatpush2.xpose.msra.mxu0 0.0
    %1693 = vmatprep.subr.mxu0 0.0
    %1694 = vmatpush2.xpose.msra.mxu0 0.0
    %1695 = vmatprep.subr.mxu0 0.0
    %1696 = vmatpush2.xpose.msra.mxu0 0.0
    %1697 = vmatprep.subr.mxu0 0.0
    %1698 = vmatpush2.xpose.msra.mxu0 0.0
    %1699 = vmatprep.subr.mxu0 0.0
    %1700 = vmatpush2.xpose.msra.mxu0 0.0
    %1701 = vmatprep.subr.mxu0 0.0
    %1702 = vmatpush2.xpose.msra.mxu0 0.0
    %1703 = vmatprep.mubr.f32.mxu0 0.0
    %1704 = vmatmul.mubr.f32.gmra.mxu0 %v1633
    %v1705 = vpop.f32.mrf.mxu0
    %v1706 = vadd.f32 0.0, %v1705
    %v1707 = vpop.f32.mrf.mxu0
    %1708 = vdwg.mxu0
    %1709 = vrot.lane.b32.xlu0 %v1149, 40
    %v1710 = vpop.permute.xlu0 %1709
    %v1712 = vsel %vm282, %v1710, 0.0
    %1713 = vadd.xlane.f32.xlu0 %v1712
    %v1714 = vpop.xlane.xlu0 %1713
    %v1715 = vlaneseq
    %v1716 = vshrl.u32 %v1715, 7
    %v1717 = vsub.s32 0, %v1716
    %v1718 = vrot.slane %v1706, %v1717
    %v1719 = vadd.f32 %v1714, %v1718
    %vm1720 = vcmp.gt.f32.partialorder %v1719, 0.0
    %v1721 = vmul.f32 %v1719, 0.2
    %v1722 = vsel %vm1720, %v1719, %v1721
    %v1723 = vadd.f32 %v1722, %v1059
    %v1724 = vsel %vm385, %v1723, -inf
    %1725 = vmax.xlane.f32.xlu0 %v1724
    %v1726 = vpop.xlane.xlu0 %1725
    %v1727 = vsub.f32 %v1723, %v1726
    %v1728 = vmul.f32 %v1727, 1.442695
    %v1729 = vpow.pop %v1728
    %v1730 = vmul.f32 %v1729, %v1057
    %v1731 = vsel %vm385, %v1730, 0.0
    %1732 = vadd.xlane.f32.xlu0 %v1731
    %v1733 = vpop.xlane.xlu0 %1732
    %v1736 = vsel %vm385, %v1730, 0
    %v1738 = vsel %vm400, %v1632, 0
    %1740 = vmatprep.subr.mxu0 0.0
    %1741 = vmatpush1.msra.mxu0 0.0
    %1742 = vmatprep.subr.mxu0 0.0
    %1743 = vmatpush1.msra.mxu0 0.0
    %1744 = vmatprep.subr.mxu0 0.0
    %1745 = vmatpush1.msra.mxu0 0.0
    %1746 = vmatprep.subr.mxu0 0.0
    %1747 = vmatpush1.msra.mxu0 0.0
    %1748 = vmatprep.subr.mxu0 0.0
    %1749 = vmatpush1.msra.mxu0 0.0
    %1750 = vmatprep.subr.mxu0 0.0
    %1751 = vmatpush1.msra.mxu0 0.0
    %1752 = vmatprep.subr.mxu0 0.0
    %1753 = vmatpush1.msra.mxu0 0.0
    %1754 = vmatprep.subr.mxu0 0.0
    %1755 = vmatpush1.msra.mxu0 0.0
    %1756 = vmatprep.subr.mxu0 0.0
    %1757 = vmatpush1.msra.mxu0 0.0
    %1758 = vmatprep.subr.mxu0 0.0
    %1759 = vmatpush1.msra.mxu0 0.0
    %1760 = vmatprep.subr.mxu0 0.0
    %1761 = vmatpush1.msra.mxu0 0.0
    %1762 = vmatprep.subr.mxu0 0.0
    %1763 = vmatpush1.msra.mxu0 0.0
    %1764 = vmatprep.subr.mxu0 0.0
    %1765 = vmatpush1.msra.mxu0 0.0
    %1766 = vmatprep.subr.mxu0 0.0
    %1767 = vmatpush1.msra.mxu0 0.0
    %1768 = vmatprep.subr.mxu0 0.0
    %1769 = vmatpush1.msra.mxu0 %v1738
    %1770 = vmatprep.subr.mxu0 0.0
    %1771 = vmatpush1.msra.mxu0 %v1630
    %1772 = vmatprep.subr.mxu0 0.0
    %1773 = vmatpush2.msra.mxu0 0.0
    %1774 = vmatprep.subr.mxu0 0.0
    %1775 = vmatpush2.msra.mxu0 0.0
    %1776 = vmatprep.subr.mxu0 0.0
    %1777 = vmatpush2.msra.mxu0 0.0
    %1778 = vmatprep.subr.mxu0 0.0
    %1779 = vmatpush2.msra.mxu0 0.0
    %1780 = vmatprep.subr.mxu0 0.0
    %1781 = vmatpush2.msra.mxu0 0.0
    %1782 = vmatprep.subr.mxu0 0.0
    %1783 = vmatpush2.msra.mxu0 0.0
    %1784 = vmatprep.subr.mxu0 0.0
    %1785 = vmatpush2.msra.mxu0 0.0
    %1786 = vmatprep.subr.mxu0 0.0
    %1787 = vmatpush2.msra.mxu0 0.0
    %1788 = vmatprep.subr.mxu0 0.0
    %1789 = vmatpush2.msra.mxu0 0.0
    %1790 = vmatprep.subr.mxu0 0.0
    %1791 = vmatpush2.msra.mxu0 0.0
    %1792 = vmatprep.subr.mxu0 0.0
    %1793 = vmatpush2.msra.mxu0 0.0
    %1794 = vmatprep.subr.mxu0 0.0
    %1795 = vmatpush2.msra.mxu0 0.0
    %1796 = vmatprep.subr.mxu0 0.0
    %1797 = vmatpush2.msra.mxu0 0.0
    %1798 = vmatprep.subr.mxu0 0.0
    %1799 = vmatpush2.msra.mxu0 0.0
    %1800 = vmatprep.subr.mxu0 0.0
    %1801 = vmatpush2.msra.mxu0 0.0
    %1802 = vmatprep.subr.mxu0 0.0
    %1803 = vmatpush2.msra.mxu0 0.0
    %1804 = vmatprep.mubr.f32.mxu0 0.0
    %1805 = vmatmul.mubr.f32.gmra.mxu0 %v1736
    %v1806 = vpop.f32.mrf.mxu0
    %v1807 = vadd.f32 0.0, %v1806
    %v1808 = vpop.f32.mrf.mxu0
    %1809 = vdwg.mxu0
    %v1810 = vmax.f32 %v1733, 1e-30
    %v1811 = vrcp.pop %v1810
    %v1812 = vmul.f32 %v1807, %v1811
    %1814 = vrot.lane.b32.xlu0 %v1440, 8
    %v1815 = vpop.permute.xlu0 %1814
    %1818 = vrot.lane.b32.xlu0 %v1626, 16
    %v1819 = vpop.permute.xlu0 %1818
    %1822 = vrot.lane.b32.xlu0 %v1812, 24
    %v1823 = vpop.permute.xlu0 %1822
    %v1825 = vsel %vm282, %v1254, %v1815
    %v1826 = vsel %vm182, %v1825, %v1819
    %v1827 = vsel %vm1048, %v1826, %v1823
    %v1828 = vadd.f32 %v1055, %v1827
    %v1829 = vlaneseq
    %v1830 = vshrl.u32 %v1829, 7
    %v1831 = vsub.s32 5, %v1830
    %v1832 = vrot.slane %v272, %v1831
    %v1833 = vadd.f32 %v1828, %v1832
    %v1834 = vld [vmem:[#allocation10] sm:$0xf]
    %v1835 = vlaneseq
    %v1836 = vshrl.u32 %v1835, 7
    %v1837 = vsub.s32 2, %v1836
    %v1838 = vrot.slane %v1834, %v1837
    %v1839 = vsub.f32 %v1833, %v1838
    %v1840 = vadd.f32 %v1834, 1e-05
    %v1841 = vrsqrt.pop %v1840
    %v1842 = vlaneseq
    %v1843 = vshrl.u32 %v1842, 7
    %v1844 = vsub.s32 3, %v1843
    %v1845 = vrot.slane %v1841, %v1844
    %v1846 = vmul.f32 %v1839, %v1845
    %v1847 = vlaneseq
    %v1848 = vshrl.u32 %v1847, 7
    %v1849 = vsub.s32 0, %v1848
    %v1850 = vrot.slane %v1834, %v1849
    %v1851 = vmul.f32 %v1846, %v1850
    %v1852 = vlaneseq
    %v1853 = vshrl.u32 %v1852, 7
    %v1854 = vsub.s32 1, %v1853
    %v1855 = vrot.slane %v1834, %v1854
    %v1856 = vadd.f32 %v1851, %v1855
    %vm1857 = vcmp.gt.f32.partialorder %v1856, 0.0
    %v1858 = vmin.f32 %v1856, 0.0
    %v1859 = vmul.f32 %v1858, 1.442695
    %v1860 = vpow.pop %v1859
    %v1861 = vsub.f32 %v1860, 1.0
    %v1862 = vsel %vm1857, %v1856, %v1861
    %v1863 = vld [vmem:[%s6] sm:$0xff]
    %v1864 = vld [vmem:[%s6 + $0x8] sm:$0xff]
    %v1865 = vld [vmem:[%s6 + $0x10] sm:$0xff]
    %v1866 = vld [vmem:[%s6 + $0x18] sm:$0xff]
    %vm1867 = vcmask 261120
    %v1869 = vsel %vm1867, %v1862, 0
    %1871 = vmatprep.subr.mxu0 0.0
    %1872 = vmatpush1.msra.mxu0 0.0
    %1873 = vmatprep.subr.mxu0 0.0
    %1874 = vmatpush1.msra.mxu0 0.0
    %1875 = vmatprep.subr.mxu0 0.0
    %1876 = vmatpush1.msra.mxu0 0.0
    %1877 = vmatprep.subr.mxu0 0.0
    %1878 = vmatpush1.msra.mxu0 0.0
    %1879 = vmatprep.subr.mxu0 0.0
    %1880 = vmatpush1.msra.mxu0 0.0
    %1881 = vmatprep.subr.mxu0 0.0
    %1882 = vmatpush1.msra.mxu0 0.0
    %1883 = vmatprep.subr.mxu0 0.0
    %1884 = vmatpush1.msra.mxu0 0.0
    %1885 = vmatprep.subr.mxu0 0.0
    %1886 = vmatpush1.msra.mxu0 0.0
    %1887 = vmatprep.subr.mxu0 0.0
    %1888 = vmatpush1.msra.mxu0 0.0
    %1889 = vmatprep.subr.mxu0 0.0
    %1890 = vmatpush1.msra.mxu0 0.0
    %1891 = vmatprep.subr.mxu0 0.0
    %1892 = vmatpush1.msra.mxu0 0.0
    %1893 = vmatprep.subr.mxu0 0.0
    %1894 = vmatpush1.msra.mxu0 0.0
    %1895 = vmatprep.subr.mxu0 0.0
    %1896 = vmatpush1.msra.mxu0 %v1866
    %1897 = vmatprep.subr.mxu0 0.0
    %1898 = vmatpush1.msra.mxu0 %v1865
    %1899 = vmatprep.subr.mxu0 0.0
    %1900 = vmatpush1.msra.mxu0 %v1864
    %1901 = vmatprep.subr.mxu0 0.0
    %1902 = vmatpush1.msra.mxu0 %v1863
    %1903 = vmatprep.subr.mxu0 0.0
    %1904 = vmatpush2.msra.mxu0 0.0
    %1905 = vmatprep.subr.mxu0 0.0
    %1906 = vmatpush2.msra.mxu0 0.0
    %1907 = vmatprep.subr.mxu0 0.0
    %1908 = vmatpush2.msra.mxu0 0.0
    %1909 = vmatprep.subr.mxu0 0.0
    %1910 = vmatpush2.msra.mxu0 0.0
    %1911 = vmatprep.subr.mxu0 0.0
    %1912 = vmatpush2.msra.mxu0 0.0
    %1913 = vmatprep.subr.mxu0 0.0
    %1914 = vmatpush2.msra.mxu0 0.0
    %1915 = vmatprep.subr.mxu0 0.0
    %1916 = vmatpush2.msra.mxu0 0.0
    %1917 = vmatprep.subr.mxu0 0.0
    %1918 = vmatpush2.msra.mxu0 0.0
    %1919 = vmatprep.subr.mxu0 0.0
    %1920 = vmatpush2.msra.mxu0 0.0
    %1921 = vmatprep.subr.mxu0 0.0
    %1922 = vmatpush2.msra.mxu0 0.0
    %1923 = vmatprep.subr.mxu0 0.0
    %1924 = vmatpush2.msra.mxu0 0.0
    %1925 = vmatprep.subr.mxu0 0.0
    %1926 = vmatpush2.msra.mxu0 0.0
    %1927 = vmatprep.subr.mxu0 0.0
    %1928 = vmatpush2.msra.mxu0 0.0
    %1929 = vmatprep.subr.mxu0 0.0
    %1930 = vmatpush2.msra.mxu0 0.0
    %1931 = vmatprep.subr.mxu0 0.0
    %1932 = vmatpush2.msra.mxu0 0.0
    %1933 = vmatprep.subr.mxu0 0.0
    %1934 = vmatpush2.msra.mxu0 0.0
    %1935 = vmatprep.mubr.f32.mxu0 0.0
    %1936 = vmatmul.mubr.f32.gmra.mxu0 %v1869
    %v1937 = vpop.f32.mrf.mxu0
    %v1938 = vadd.f32 0.0, %v1937
    %v1939 = vpop.f32.mrf.mxu0
    %1940 = vdwg.mxu0
    %v1941 = vld [vmem:[#allocation11] sm:$0x1]
    %v1943 = vlaneseq
    %v1944 = vshrl.u32 %v1943, 7
    %v1945 = vsub.s32 0, %v1944
    %v1946 = vrot.slane %v1941, %v1945
    %v1948 = vadd.f32 %v1938, %v1946
    %v1949 = vld [vmem:[#allocation13] sm:$0x3f]
    %v1950 = vld [vmem:[#allocation14] sm:$0xf]
    %v1951 = vsub.f32 1.0, %v1950
    %v1952 = vmul.f32 %v1951, -1e+30
    %1954 = vrot.lane.b32.xlu0 %v1938, 96
    %v1955 = vpop.permute.xlu0 %1954
    %v1957 = vsel %vm282, %v1949, 0
    %v1959 = vsel %vm282, %v1955, 0
    %1961 = vmatprep.subr.mxu0 0.0
    %1962 = vmatpush1.xpose.msra.mxu0 0.0
    %1963 = vmatprep.subr.mxu0 0.0
    %1964 = vmatpush1.xpose.msra.mxu0 0.0
    %1965 = vmatprep.subr.mxu0 0.0
    %1966 = vmatpush1.xpose.msra.mxu0 0.0
    %1967 = vmatprep.subr.mxu0 0.0
    %1968 = vmatpush1.xpose.msra.mxu0 0.0
    %1969 = vmatprep.subr.mxu0 0.0
    %1970 = vmatpush1.xpose.msra.mxu0 0.0
    %1971 = vmatprep.subr.mxu0 0.0
    %1972 = vmatpush1.xpose.msra.mxu0 0.0
    %1973 = vmatprep.subr.mxu0 0.0
    %1974 = vmatpush1.xpose.msra.mxu0 0.0
    %1975 = vmatprep.subr.mxu0 0.0
    %1976 = vmatpush1.xpose.msra.mxu0 0.0
    %1977 = vmatprep.subr.mxu0 0.0
    %1978 = vmatpush1.xpose.msra.mxu0 0.0
    %1979 = vmatprep.subr.mxu0 0.0
    %1980 = vmatpush1.xpose.msra.mxu0 0.0
    %1981 = vmatprep.subr.mxu0 0.0
    %1982 = vmatpush1.xpose.msra.mxu0 0.0
    %1983 = vmatprep.subr.mxu0 0.0
    %1984 = vmatpush1.xpose.msra.mxu0 0.0
    %1985 = vmatprep.subr.mxu0 0.0
    %1986 = vmatpush1.xpose.msra.mxu0 0.0
    %1987 = vmatprep.subr.mxu0 0.0
    %1988 = vmatpush1.xpose.msra.mxu0 0.0
    %1989 = vmatprep.subr.mxu0 0.0
    %1990 = vmatpush1.xpose.msra.mxu0 0.0
    %1991 = vmatprep.subr.mxu0 0.0
    %1992 = vmatpush1.xpose.msra.mxu0 %v1959
    %1993 = vmatprep.subr.mxu0 0.0
    %1994 = vmatpush2.xpose.msra.mxu0 0.0
    %1995 = vmatprep.subr.mxu0 0.0
    %1996 = vmatpush2.xpose.msra.mxu0 0.0
    %1997 = vmatprep.subr.mxu0 0.0
    %1998 = vmatpush2.xpose.msra.mxu0 0.0
    %1999 = vmatprep.subr.mxu0 0.0
    %2000 = vmatpush2.xpose.msra.mxu0 0.0
    %2001 = vmatprep.subr.mxu0 0.0
    %2002 = vmatpush2.xpose.msra.mxu0 0.0
    %2003 = vmatprep.subr.mxu0 0.0
    %2004 = vmatpush2.xpose.msra.mxu0 0.0
    %2005 = vmatprep.subr.mxu0 0.0
    %2006 = vmatpush2.xpose.msra.mxu0 0.0
    %2007 = vmatprep.subr.mxu0 0.0
    %2008 = vmatpush2.xpose.msra.mxu0 0.0
    %2009 = vmatprep.subr.mxu0 0.0
    %2010 = vmatpush2.xpose.msra.mxu0 0.0
    %2011 = vmatprep.subr.mxu0 0.0
    %2012 = vmatpush2.xpose.msra.mxu0 0.0
    %2013 = vmatprep.subr.mxu0 0.0
    %2014 = vmatpush2.xpose.msra.mxu0 0.0
    %2015 = vmatprep.subr.mxu0 0.0
    %2016 = vmatpush2.xpose.msra.mxu0 0.0
    %2017 = vmatprep.subr.mxu0 0.0
    %2018 = vmatpush2.xpose.msra.mxu0 0.0
    %2019 = vmatprep.subr.mxu0 0.0
    %2020 = vmatpush2.xpose.msra.mxu0 0.0
    %2021 = vmatprep.subr.mxu0 0.0
    %2022 = vmatpush2.xpose.msra.mxu0 0.0
    %2023 = vmatprep.subr.mxu0 0.0
    %2024 = vmatpush2.xpose.msra.mxu0 0.0
    %2025 = vmatprep.mubr.f32.mxu0 0.0
    %2026 = vmatmul.mubr.f32.gmra.mxu0 %v1957
    %v2027 = vpop.f32.mrf.mxu0
    %v2028 = vadd.f32 0.0, %v2027
    %v2029 = vpop.f32.mrf.mxu0
    %2030 = vdwg.mxu0
    %v2031 = vlaneseq
    %v2032 = vshrl.u32 %v2031, 7
    %v2033 = vsub.s32 1, %v2032
    %v2034 = vrot.slane %v1949, %v2033
    %2036 = vrot.lane.b32.xlu0 %v2034, 32
    %v2037 = vpop.permute.xlu0 %2036
    %v2039 = vmul.f32 %v1938, %v2037
    %2041 = vrot.lane.b32.xlu0 %v2039, 96
    %v2042 = vpop.permute.xlu0 %2041
    %vm2044 = vcmask 60416
    %v2045 = vsel %vm2044, %v2042, 0.0
    %2046 = vadd.xlane.f32.xlu0 %v2045
    %v2047 = vpop.xlane.xlu0 %2046
    %v2048 = vlaneseq
    %v2049 = vshrl.u32 %v2048, 7
    %v2050 = vsub.s32 0, %v2049
    %v2051 = vrot.slane %v2028, %v2050
    %v2052 = vadd.f32 %v2047, %v2051
    %vm2053 = vcmp.gt.f32.partialorder %v2052, 0.0
    %v2054 = vmul.f32 %v2052, 0.2
    %v2055 = vsel %vm2053, %v2052, %v2054
    %v2056 = vadd.f32 %v2055, %v1952
    %v2057 = vsel %vm2044, %v2056, -inf
    %2058 = vmax.xlane.f32.xlu0 %v2057
    %v2059 = vpop.xlane.xlu0 %2058
    %v2060 = vsub.f32 %v2056, %v2059
    %v2061 = vmul.f32 %v2060, 1.442695
    %v2062 = vpow.pop %v2061
    %v2063 = vmul.f32 %v2062, %v1950
    %v2064 = vsel %vm2044, %v2063, 0.0
    %2065 = vadd.xlane.f32.xlu0 %v2064
    %v2066 = vpop.xlane.xlu0 %2065
    %v2069 = vsel %vm282, %v2063, 0
    %2071 = vmatprep.subr.mxu0 0.0
    %2072 = vmatpush1.msra.mxu0 0.0
    %2073 = vmatprep.subr.mxu0 0.0
    %2074 = vmatpush1.msra.mxu0 0.0
    %2075 = vmatprep.subr.mxu0 0.0
    %2076 = vmatpush1.msra.mxu0 0.0
    %2077 = vmatprep.subr.mxu0 0.0
    %2078 = vmatpush1.msra.mxu0 0.0
    %2079 = vmatprep.subr.mxu0 0.0
    %2080 = vmatpush1.msra.mxu0 0.0
    %2081 = vmatprep.subr.mxu0 0.0
    %2082 = vmatpush1.msra.mxu0 0.0
    %2083 = vmatprep.subr.mxu0 0.0
    %2084 = vmatpush1.msra.mxu0 0.0
    %2085 = vmatprep.subr.mxu0 0.0
    %2086 = vmatpush1.msra.mxu0 0.0
    %2087 = vmatprep.subr.mxu0 0.0
    %2088 = vmatpush1.msra.mxu0 0.0
    %2089 = vmatprep.subr.mxu0 0.0
    %2090 = vmatpush1.msra.mxu0 0.0
    %2091 = vmatprep.subr.mxu0 0.0
    %2092 = vmatpush1.msra.mxu0 0.0
    %2093 = vmatprep.subr.mxu0 0.0
    %2094 = vmatpush1.msra.mxu0 0.0
    %2095 = vmatprep.subr.mxu0 0.0
    %2096 = vmatpush1.msra.mxu0 0.0
    %2097 = vmatprep.subr.mxu0 0.0
    %2098 = vmatpush1.msra.mxu0 0.0
    %2099 = vmatprep.subr.mxu0 0.0
    %2100 = vmatpush1.msra.mxu0 0.0
    %2101 = vmatprep.subr.mxu0 0.0
    %2102 = vmatpush1.msra.mxu0 %v1955
    %2103 = vmatprep.subr.mxu0 0.0
    %2104 = vmatpush2.msra.mxu0 0.0
    %2105 = vmatprep.subr.mxu0 0.0
    %2106 = vmatpush2.msra.mxu0 0.0
    %2107 = vmatprep.subr.mxu0 0.0
    %2108 = vmatpush2.msra.mxu0 0.0
    %2109 = vmatprep.subr.mxu0 0.0
    %2110 = vmatpush2.msra.mxu0 0.0
    %2111 = vmatprep.subr.mxu0 0.0
    %2112 = vmatpush2.msra.mxu0 0.0
    %2113 = vmatprep.subr.mxu0 0.0
    %2114 = vmatpush2.msra.mxu0 0.0
    %2115 = vmatprep.subr.mxu0 0.0
    %2116 = vmatpush2.msra.mxu0 0.0
    %2117 = vmatprep.subr.mxu0 0.0
    %2118 = vmatpush2.msra.mxu0 0.0
    %2119 = vmatprep.subr.mxu0 0.0
    %2120 = vmatpush2.msra.mxu0 0.0
    %2121 = vmatprep.subr.mxu0 0.0
    %2122 = vmatpush2.msra.mxu0 0.0
    %2123 = vmatprep.subr.mxu0 0.0
    %2124 = vmatpush2.msra.mxu0 0.0
    %2125 = vmatprep.subr.mxu0 0.0
    %2126 = vmatpush2.msra.mxu0 0.0
    %2127 = vmatprep.subr.mxu0 0.0
    %2128 = vmatpush2.msra.mxu0 0.0
    %2129 = vmatprep.subr.mxu0 0.0
    %2130 = vmatpush2.msra.mxu0 0.0
    %2131 = vmatprep.subr.mxu0 0.0
    %2132 = vmatpush2.msra.mxu0 0.0
    %2133 = vmatprep.subr.mxu0 0.0
    %2134 = vmatpush2.msra.mxu0 0.0
    %2135 = vmatprep.mubr.f32.mxu0 0.0
    %2136 = vmatmul.mubr.f32.gmra.mxu0 %v2069
    %v2137 = vpop.f32.mrf.mxu0
    %v2138 = vadd.f32 0.0, %v2137
    %v2139 = vpop.f32.mrf.mxu0
    %2140 = vdwg.mxu0
    %v2141 = vmax.f32 %v2066, 1e-30
    %v2142 = vrcp.pop %v2141
    %v2143 = vmul.f32 %v2138, %v2142
    %2144 = vrot.lane.b32.xlu0 %v1949, 120
    %v2145 = vpop.permute.xlu0 %2144
    %2146 = vrot.lane.b32.xlu0 %v1938, 88
    %v2147 = vpop.permute.xlu0 %2146
    %v2148 = vsel %vm282, %v2145, 0
    %v2150 = vsel %vm282, %v2147, 0
    %2152 = vmatprep.subr.mxu0 0.0
    %2153 = vmatpush1.xpose.msra.mxu0 0.0
    %2154 = vmatprep.subr.mxu0 0.0
    %2155 = vmatpush1.xpose.msra.mxu0 0.0
    %2156 = vmatprep.subr.mxu0 0.0
    %2157 = vmatpush1.xpose.msra.mxu0 0.0
    %2158 = vmatprep.subr.mxu0 0.0
    %2159 = vmatpush1.xpose.msra.mxu0 0.0
    %2160 = vmatprep.subr.mxu0 0.0
    %2161 = vmatpush1.xpose.msra.mxu0 0.0
    %2162 = vmatprep.subr.mxu0 0.0
    %2163 = vmatpush1.xpose.msra.mxu0 0.0
    %2164 = vmatprep.subr.mxu0 0.0
    %2165 = vmatpush1.xpose.msra.mxu0 0.0
    %2166 = vmatprep.subr.mxu0 0.0
    %2167 = vmatpush1.xpose.msra.mxu0 0.0
    %2168 = vmatprep.subr.mxu0 0.0
    %2169 = vmatpush1.xpose.msra.mxu0 0.0
    %2170 = vmatprep.subr.mxu0 0.0
    %2171 = vmatpush1.xpose.msra.mxu0 0.0
    %2172 = vmatprep.subr.mxu0 0.0
    %2173 = vmatpush1.xpose.msra.mxu0 0.0
    %2174 = vmatprep.subr.mxu0 0.0
    %2175 = vmatpush1.xpose.msra.mxu0 0.0
    %2176 = vmatprep.subr.mxu0 0.0
    %2177 = vmatpush1.xpose.msra.mxu0 0.0
    %2178 = vmatprep.subr.mxu0 0.0
    %2179 = vmatpush1.xpose.msra.mxu0 0.0
    %2180 = vmatprep.subr.mxu0 0.0
    %2181 = vmatpush1.xpose.msra.mxu0 0.0
    %2182 = vmatprep.subr.mxu0 0.0
    %2183 = vmatpush1.xpose.msra.mxu0 %v2150
    %2184 = vmatprep.subr.mxu0 0.0
    %2185 = vmatpush2.xpose.msra.mxu0 0.0
    %2186 = vmatprep.subr.mxu0 0.0
    %2187 = vmatpush2.xpose.msra.mxu0 0.0
    %2188 = vmatprep.subr.mxu0 0.0
    %2189 = vmatpush2.xpose.msra.mxu0 0.0
    %2190 = vmatprep.subr.mxu0 0.0
    %2191 = vmatpush2.xpose.msra.mxu0 0.0
    %2192 = vmatprep.subr.mxu0 0.0
    %2193 = vmatpush2.xpose.msra.mxu0 0.0
    %2194 = vmatprep.subr.mxu0 0.0
    %2195 = vmatpush2.xpose.msra.mxu0 0.0
    %2196 = vmatprep.subr.mxu0 0.0
    %2197 = vmatpush2.xpose.msra.mxu0 0.0
    %2198 = vmatprep.subr.mxu0 0.0
    %2199 = vmatpush2.xpose.msra.mxu0 0.0
    %2200 = vmatprep.subr.mxu0 0.0
    %2201 = vmatpush2.xpose.msra.mxu0 0.0
    %2202 = vmatprep.subr.mxu0 0.0
    %2203 = vmatpush2.xpose.msra.mxu0 0.0
    %2204 = vmatprep.subr.mxu0 0.0
    %2205 = vmatpush2.xpose.msra.mxu0 0.0
    %2206 = vmatprep.subr.mxu0 0.0
    %2207 = vmatpush2.xpose.msra.mxu0 0.0
    %2208 = vmatprep.subr.mxu0 0.0
    %2209 = vmatpush2.xpose.msra.mxu0 0.0
    %2210 = vmatprep.subr.mxu0 0.0
    %2211 = vmatpush2.xpose.msra.mxu0 0.0
    %2212 = vmatprep.subr.mxu0 0.0
    %2213 = vmatpush2.xpose.msra.mxu0 0.0
    %2214 = vmatprep.subr.mxu0 0.0
    %2215 = vmatpush2.xpose.msra.mxu0 0.0
    %2216 = vmatprep.mubr.f32.mxu0 0.0
    %2217 = vmatmul.mubr.f32.gmra.mxu0 %v2148
    %v2218 = vpop.f32.mrf.mxu0
    %v2219 = vadd.f32 0.0, %v2218
    %v2220 = vpop.f32.mrf.mxu0
    %2221 = vdwg.mxu0
    %2222 = vrot.lane.b32.xlu0 %v2039, 88
    %v2223 = vpop.permute.xlu0 %2222
    %v2225 = vsel %vm2044, %v2223, 0.0
    %2226 = vadd.xlane.f32.xlu0 %v2225
    %v2227 = vpop.xlane.xlu0 %2226
    %v2228 = vlaneseq
    %v2229 = vshrl.u32 %v2228, 7
    %v2230 = vsub.s32 0, %v2229
    %v2231 = vrot.slane %v2219, %v2230
    %v2232 = vadd.f32 %v2227, %v2231
    %vm2233 = vcmp.gt.f32.partialorder %v2232, 0.0
    %v2234 = vmul.f32 %v2232, 0.2
    %v2235 = vsel %vm2233, %v2232, %v2234
    %v2236 = vadd.f32 %v2235, %v1952
    %v2237 = vsel %vm2044, %v2236, -inf
    %2238 = vmax.xlane.f32.xlu0 %v2237
    %v2239 = vpop.xlane.xlu0 %2238
    %v2240 = vsub.f32 %v2236, %v2239
    %v2241 = vmul.f32 %v2240, 1.442695
    %v2242 = vpow.pop %v2241
    %v2243 = vmul.f32 %v2242, %v1950
    %v2244 = vsel %vm2044, %v2243, 0.0
    %2245 = vadd.xlane.f32.xlu0 %v2244
    %v2246 = vpop.xlane.xlu0 %2245
    %v2249 = vsel %vm282, %v2243, 0
    %2251 = vmatprep.subr.mxu0 0.0
    %2252 = vmatpush1.msra.mxu0 0.0
    %2253 = vmatprep.subr.mxu0 0.0
    %2254 = vmatpush1.msra.mxu0 0.0
    %2255 = vmatprep.subr.mxu0 0.0
    %2256 = vmatpush1.msra.mxu0 0.0
    %2257 = vmatprep.subr.mxu0 0.0
    %2258 = vmatpush1.msra.mxu0 0.0
    %2259 = vmatprep.subr.mxu0 0.0
    %2260 = vmatpush1.msra.mxu0 0.0
    %2261 = vmatprep.subr.mxu0 0.0
    %2262 = vmatpush1.msra.mxu0 0.0
    %2263 = vmatprep.subr.mxu0 0.0
    %2264 = vmatpush1.msra.mxu0 0.0
    %2265 = vmatprep.subr.mxu0 0.0
    %2266 = vmatpush1.msra.mxu0 0.0
    %2267 = vmatprep.subr.mxu0 0.0
    %2268 = vmatpush1.msra.mxu0 0.0
    %2269 = vmatprep.subr.mxu0 0.0
    %2270 = vmatpush1.msra.mxu0 0.0
    %2271 = vmatprep.subr.mxu0 0.0
    %2272 = vmatpush1.msra.mxu0 0.0
    %2273 = vmatprep.subr.mxu0 0.0
    %2274 = vmatpush1.msra.mxu0 0.0
    %2275 = vmatprep.subr.mxu0 0.0
    %2276 = vmatpush1.msra.mxu0 0.0
    %2277 = vmatprep.subr.mxu0 0.0
    %2278 = vmatpush1.msra.mxu0 0.0
    %2279 = vmatprep.subr.mxu0 0.0
    %2280 = vmatpush1.msra.mxu0 0.0
    %2281 = vmatprep.subr.mxu0 0.0
    %2282 = vmatpush1.msra.mxu0 %v2147
    %2283 = vmatprep.subr.mxu0 0.0
    %2284 = vmatpush2.msra.mxu0 0.0
    %2285 = vmatprep.subr.mxu0 0.0
    %2286 = vmatpush2.msra.mxu0 0.0
    %2287 = vmatprep.subr.mxu0 0.0
    %2288 = vmatpush2.msra.mxu0 0.0
    %2289 = vmatprep.subr.mxu0 0.0
    %2290 = vmatpush2.msra.mxu0 0.0
    %2291 = vmatprep.subr.mxu0 0.0
    %2292 = vmatpush2.msra.mxu0 0.0
    %2293 = vmatprep.subr.mxu0 0.0
    %2294 = vmatpush2.msra.mxu0 0.0
    %2295 = vmatprep.subr.mxu0 0.0
    %2296 = vmatpush2.msra.mxu0 0.0
    %2297 = vmatprep.subr.mxu0 0.0
    %2298 = vmatpush2.msra.mxu0 0.0
    %2299 = vmatprep.subr.mxu0 0.0
    %2300 = vmatpush2.msra.mxu0 0.0
    %2301 = vmatprep.subr.mxu0 0.0
    %2302 = vmatpush2.msra.mxu0 0.0
    %2303 = vmatprep.subr.mxu0 0.0
    %2304 = vmatpush2.msra.mxu0 0.0
    %2305 = vmatprep.subr.mxu0 0.0
    %2306 = vmatpush2.msra.mxu0 0.0
    %2307 = vmatprep.subr.mxu0 0.0
    %2308 = vmatpush2.msra.mxu0 0.0
    %2309 = vmatprep.subr.mxu0 0.0
    %2310 = vmatpush2.msra.mxu0 0.0
    %2311 = vmatprep.subr.mxu0 0.0
    %2312 = vmatpush2.msra.mxu0 0.0
    %2313 = vmatprep.subr.mxu0 0.0
    %2314 = vmatpush2.msra.mxu0 0.0
    %2315 = vmatprep.mubr.f32.mxu0 0.0
    %2316 = vmatmul.mubr.f32.gmra.mxu0 %v2249
    %v2317 = vpop.f32.mrf.mxu0
    %v2318 = vadd.f32 0.0, %v2317
    %v2319 = vpop.f32.mrf.mxu0
    %2320 = vdwg.mxu0
    %v2321 = vmax.f32 %v2246, 1e-30
    %v2322 = vrcp.pop %v2321
    %v2323 = vmul.f32 %v2318, %v2322
    %2324 = vrot.lane.b32.xlu0 %v1949, 112
    %v2325 = vpop.permute.xlu0 %2324
    %2326 = vrot.lane.b32.xlu0 %v1938, 80
    %v2327 = vpop.permute.xlu0 %2326
    %v2328 = vsel %vm282, %v2325, 0
    %v2330 = vsel %vm282, %v2327, 0
    %2332 = vmatprep.subr.mxu0 0.0
    %2333 = vmatpush1.xpose.msra.mxu0 0.0
    %2334 = vmatprep.subr.mxu0 0.0
    %2335 = vmatpush1.xpose.msra.mxu0 0.0
    %2336 = vmatprep.subr.mxu0 0.0
    %2337 = vmatpush1.xpose.msra.mxu0 0.0
    %2338 = vmatprep.subr.mxu0 0.0
    %2339 = vmatpush1.xpose.msra.mxu0 0.0
    %2340 = vmatprep.subr.mxu0 0.0
    %2341 = vmatpush1.xpose.msra.mxu0 0.0
    %2342 = vmatprep.subr.mxu0 0.0
    %2343 = vmatpush1.xpose.msra.mxu0 0.0
    %2344 = vmatprep.subr.mxu0 0.0
    %2345 = vmatpush1.xpose.msra.mxu0 0.0
    %2346 = vmatprep.subr.mxu0 0.0
    %2347 = vmatpush1.xpose.msra.mxu0 0.0
    %2348 = vmatprep.subr.mxu0 0.0
    %2349 = vmatpush1.xpose.msra.mxu0 0.0
    %2350 = vmatprep.subr.mxu0 0.0
    %2351 = vmatpush1.xpose.msra.mxu0 0.0
    %2352 = vmatprep.subr.mxu0 0.0
    %2353 = vmatpush1.xpose.msra.mxu0 0.0
    %2354 = vmatprep.subr.mxu0 0.0
    %2355 = vmatpush1.xpose.msra.mxu0 0.0
    %2356 = vmatprep.subr.mxu0 0.0
    %2357 = vmatpush1.xpose.msra.mxu0 0.0
    %2358 = vmatprep.subr.mxu0 0.0
    %2359 = vmatpush1.xpose.msra.mxu0 0.0
    %2360 = vmatprep.subr.mxu0 0.0
    %2361 = vmatpush1.xpose.msra.mxu0 0.0
    %2362 = vmatprep.subr.mxu0 0.0
    %2363 = vmatpush1.xpose.msra.mxu0 %v2330
    %2364 = vmatprep.subr.mxu0 0.0
    %2365 = vmatpush2.xpose.msra.mxu0 0.0
    %2366 = vmatprep.subr.mxu0 0.0
    %2367 = vmatpush2.xpose.msra.mxu0 0.0
    %2368 = vmatprep.subr.mxu0 0.0
    %2369 = vmatpush2.xpose.msra.mxu0 0.0
    %2370 = vmatprep.subr.mxu0 0.0
    %2371 = vmatpush2.xpose.msra.mxu0 0.0
    %2372 = vmatprep.subr.mxu0 0.0
    %2373 = vmatpush2.xpose.msra.mxu0 0.0
    %2374 = vmatprep.subr.mxu0 0.0
    %2375 = vmatpush2.xpose.msra.mxu0 0.0
    %2376 = vmatprep.subr.mxu0 0.0
    %2377 = vmatpush2.xpose.msra.mxu0 0.0
    %2378 = vmatprep.subr.mxu0 0.0
    %2379 = vmatpush2.xpose.msra.mxu0 0.0
    %2380 = vmatprep.subr.mxu0 0.0
    %2381 = vmatpush2.xpose.msra.mxu0 0.0
    %2382 = vmatprep.subr.mxu0 0.0
    %2383 = vmatpush2.xpose.msra.mxu0 0.0
    %2384 = vmatprep.subr.mxu0 0.0
    %2385 = vmatpush2.xpose.msra.mxu0 0.0
    %2386 = vmatprep.subr.mxu0 0.0
    %2387 = vmatpush2.xpose.msra.mxu0 0.0
    %2388 = vmatprep.subr.mxu0 0.0
    %2389 = vmatpush2.xpose.msra.mxu0 0.0
    %2390 = vmatprep.subr.mxu0 0.0
    %2391 = vmatpush2.xpose.msra.mxu0 0.0
    %2392 = vmatprep.subr.mxu0 0.0
    %2393 = vmatpush2.xpose.msra.mxu0 0.0
    %2394 = vmatprep.subr.mxu0 0.0
    %2395 = vmatpush2.xpose.msra.mxu0 0.0
    %2396 = vmatprep.mubr.f32.mxu0 0.0
    %2397 = vmatmul.mubr.f32.gmra.mxu0 %v2328
    %v2398 = vpop.f32.mrf.mxu0
    %v2399 = vadd.f32 0.0, %v2398
    %v2400 = vpop.f32.mrf.mxu0
    %2401 = vdwg.mxu0
    %2402 = vrot.lane.b32.xlu0 %v2039, 80
    %v2403 = vpop.permute.xlu0 %2402
    %v2405 = vsel %vm2044, %v2403, 0.0
    %2406 = vadd.xlane.f32.xlu0 %v2405
    %v2407 = vpop.xlane.xlu0 %2406
    %v2408 = vlaneseq
    %v2409 = vshrl.u32 %v2408, 7
    %v2410 = vsub.s32 0, %v2409
    %v2411 = vrot.slane %v2399, %v2410
    %v2412 = vadd.f32 %v2407, %v2411
    %vm2413 = vcmp.gt.f32.partialorder %v2412, 0.0
    %v2414 = vmul.f32 %v2412, 0.2
    %v2415 = vsel %vm2413, %v2412, %v2414
    %v2416 = vadd.f32 %v2415, %v1952
    %v2417 = vsel %vm2044, %v2416, -inf
    %2418 = vmax.xlane.f32.xlu0 %v2417
    %v2419 = vpop.xlane.xlu0 %2418
    %v2420 = vsub.f32 %v2416, %v2419
    %v2421 = vmul.f32 %v2420, 1.442695
    %v2422 = vpow.pop %v2421
    %v2423 = vmul.f32 %v2422, %v1950
    %v2424 = vsel %vm2044, %v2423, 0.0
    %2425 = vadd.xlane.f32.xlu0 %v2424
    %v2426 = vpop.xlane.xlu0 %2425
    %v2429 = vsel %vm282, %v2423, 0
    %2431 = vmatprep.subr.mxu0 0.0
    %2432 = vmatpush1.msra.mxu0 0.0
    %2433 = vmatprep.subr.mxu0 0.0
    %2434 = vmatpush1.msra.mxu0 0.0
    %2435 = vmatprep.subr.mxu0 0.0
    %2436 = vmatpush1.msra.mxu0 0.0
    %2437 = vmatprep.subr.mxu0 0.0
    %2438 = vmatpush1.msra.mxu0 0.0
    %2439 = vmatprep.subr.mxu0 0.0
    %2440 = vmatpush1.msra.mxu0 0.0
    %2441 = vmatprep.subr.mxu0 0.0
    %2442 = vmatpush1.msra.mxu0 0.0
    %2443 = vmatprep.subr.mxu0 0.0
    %2444 = vmatpush1.msra.mxu0 0.0
    %2445 = vmatprep.subr.mxu0 0.0
    %2446 = vmatpush1.msra.mxu0 0.0
    %2447 = vmatprep.subr.mxu0 0.0
    %2448 = vmatpush1.msra.mxu0 0.0
    %2449 = vmatprep.subr.mxu0 0.0
    %2450 = vmatpush1.msra.mxu0 0.0
    %2451 = vmatprep.subr.mxu0 0.0
    %2452 = vmatpush1.msra.mxu0 0.0
    %2453 = vmatprep.subr.mxu0 0.0
    %2454 = vmatpush1.msra.mxu0 0.0
    %2455 = vmatprep.subr.mxu0 0.0
    %2456 = vmatpush1.msra.mxu0 0.0
    %2457 = vmatprep.subr.mxu0 0.0
    %2458 = vmatpush1.msra.mxu0 0.0
    %2459 = vmatprep.subr.mxu0 0.0
    %2460 = vmatpush1.msra.mxu0 0.0
    %2461 = vmatprep.subr.mxu0 0.0
    %2462 = vmatpush1.msra.mxu0 %v2327
    %2463 = vmatprep.subr.mxu0 0.0
    %2464 = vmatpush2.msra.mxu0 0.0
    %2465 = vmatprep.subr.mxu0 0.0
    %2466 = vmatpush2.msra.mxu0 0.0
    %2467 = vmatprep.subr.mxu0 0.0
    %2468 = vmatpush2.msra.mxu0 0.0
    %2469 = vmatprep.subr.mxu0 0.0
    %2470 = vmatpush2.msra.mxu0 0.0
    %2471 = vmatprep.subr.mxu0 0.0
    %2472 = vmatpush2.msra.mxu0 0.0
    %2473 = vmatprep.subr.mxu0 0.0
    %2474 = vmatpush2.msra.mxu0 0.0
    %2475 = vmatprep.subr.mxu0 0.0
    %2476 = vmatpush2.msra.mxu0 0.0
    %2477 = vmatprep.subr.mxu0 0.0
    %2478 = vmatpush2.msra.mxu0 0.0
    %2479 = vmatprep.subr.mxu0 0.0
    %2480 = vmatpush2.msra.mxu0 0.0
    %2481 = vmatprep.subr.mxu0 0.0
    %2482 = vmatpush2.msra.mxu0 0.0
    %2483 = vmatprep.subr.mxu0 0.0
    %2484 = vmatpush2.msra.mxu0 0.0
    %2485 = vmatprep.subr.mxu0 0.0
    %2486 = vmatpush2.msra.mxu0 0.0
    %2487 = vmatprep.subr.mxu0 0.0
    %2488 = vmatpush2.msra.mxu0 0.0
    %2489 = vmatprep.subr.mxu0 0.0
    %2490 = vmatpush2.msra.mxu0 0.0
    %2491 = vmatprep.subr.mxu0 0.0
    %2492 = vmatpush2.msra.mxu0 0.0
    %2493 = vmatprep.subr.mxu0 0.0
    %2494 = vmatpush2.msra.mxu0 0.0
    %2495 = vmatprep.mubr.f32.mxu0 0.0
    %2496 = vmatmul.mubr.f32.gmra.mxu0 %v2429
    %v2497 = vpop.f32.mrf.mxu0
    %v2498 = vadd.f32 0.0, %v2497
    %v2499 = vpop.f32.mrf.mxu0
    %2500 = vdwg.mxu0
    %v2501 = vmax.f32 %v2426, 1e-30
    %v2502 = vrcp.pop %v2501
    %v2503 = vmul.f32 %v2498, %v2502
    %2504 = vrot.lane.b32.xlu0 %v1949, 104
    %v2505 = vpop.permute.xlu0 %2504
    %2506 = vrot.lane.b32.xlu0 %v1938, 72
    %v2507 = vpop.permute.xlu0 %2506
    %v2508 = vsel %vm282, %v2505, 0
    %v2510 = vsel %vm282, %v2507, 0
    %2512 = vmatprep.subr.mxu0 0.0
    %2513 = vmatpush1.xpose.msra.mxu0 0.0
    %2514 = vmatprep.subr.mxu0 0.0
    %2515 = vmatpush1.xpose.msra.mxu0 0.0
    %2516 = vmatprep.subr.mxu0 0.0
    %2517 = vmatpush1.xpose.msra.mxu0 0.0
    %2518 = vmatprep.subr.mxu0 0.0
    %2519 = vmatpush1.xpose.msra.mxu0 0.0
    %2520 = vmatprep.subr.mxu0 0.0
    %2521 = vmatpush1.xpose.msra.mxu0 0.0
    %2522 = vmatprep.subr.mxu0 0.0
    %2523 = vmatpush1.xpose.msra.mxu0 0.0
    %2524 = vmatprep.subr.mxu0 0.0
    %2525 = vmatpush1.xpose.msra.mxu0 0.0
    %2526 = vmatprep.subr.mxu0 0.0
    %2527 = vmatpush1.xpose.msra.mxu0 0.0
    %2528 = vmatprep.subr.mxu0 0.0
    %2529 = vmatpush1.xpose.msra.mxu0 0.0
    %2530 = vmatprep.subr.mxu0 0.0
    %2531 = vmatpush1.xpose.msra.mxu0 0.0
    %2532 = vmatprep.subr.mxu0 0.0
    %2533 = vmatpush1.xpose.msra.mxu0 0.0
    %2534 = vmatprep.subr.mxu0 0.0
    %2535 = vmatpush1.xpose.msra.mxu0 0.0
    %2536 = vmatprep.subr.mxu0 0.0
    %2537 = vmatpush1.xpose.msra.mxu0 0.0
    %2538 = vmatprep.subr.mxu0 0.0
    %2539 = vmatpush1.xpose.msra.mxu0 0.0
    %2540 = vmatprep.subr.mxu0 0.0
    %2541 = vmatpush1.xpose.msra.mxu0 0.0
    %2542 = vmatprep.subr.mxu0 0.0
    %2543 = vmatpush1.xpose.msra.mxu0 %v2510
    %2544 = vmatprep.subr.mxu0 0.0
    %2545 = vmatpush2.xpose.msra.mxu0 0.0
    %2546 = vmatprep.subr.mxu0 0.0
    %2547 = vmatpush2.xpose.msra.mxu0 0.0
    %2548 = vmatprep.subr.mxu0 0.0
    %2549 = vmatpush2.xpose.msra.mxu0 0.0
    %2550 = vmatprep.subr.mxu0 0.0
    %2551 = vmatpush2.xpose.msra.mxu0 0.0
    %2552 = vmatprep.subr.mxu0 0.0
    %2553 = vmatpush2.xpose.msra.mxu0 0.0
    %2554 = vmatprep.subr.mxu0 0.0
    %2555 = vmatpush2.xpose.msra.mxu0 0.0
    %2556 = vmatprep.subr.mxu0 0.0
    %2557 = vmatpush2.xpose.msra.mxu0 0.0
    %2558 = vmatprep.subr.mxu0 0.0
    %2559 = vmatpush2.xpose.msra.mxu0 0.0
    %2560 = vmatprep.subr.mxu0 0.0
    %2561 = vmatpush2.xpose.msra.mxu0 0.0
    %2562 = vmatprep.subr.mxu0 0.0
    %2563 = vmatpush2.xpose.msra.mxu0 0.0
    %2564 = vmatprep.subr.mxu0 0.0
    %2565 = vmatpush2.xpose.msra.mxu0 0.0
    %2566 = vmatprep.subr.mxu0 0.0
    %2567 = vmatpush2.xpose.msra.mxu0 0.0
    %2568 = vmatprep.subr.mxu0 0.0
    %2569 = vmatpush2.xpose.msra.mxu0 0.0
    %2570 = vmatprep.subr.mxu0 0.0
    %2571 = vmatpush2.xpose.msra.mxu0 0.0
    %2572 = vmatprep.subr.mxu0 0.0
    %2573 = vmatpush2.xpose.msra.mxu0 0.0
    %2574 = vmatprep.subr.mxu0 0.0
    %2575 = vmatpush2.xpose.msra.mxu0 0.0
    %2576 = vmatprep.mubr.f32.mxu0 0.0
    %2577 = vmatmul.mubr.f32.gmra.mxu0 %v2508
    %v2578 = vpop.f32.mrf.mxu0
    %v2579 = vadd.f32 0.0, %v2578
    %v2580 = vpop.f32.mrf.mxu0
    %2581 = vdwg.mxu0
    %2582 = vrot.lane.b32.xlu0 %v2039, 72
    %v2583 = vpop.permute.xlu0 %2582
    %v2585 = vsel %vm2044, %v2583, 0.0
    %2586 = vadd.xlane.f32.xlu0 %v2585
    %v2587 = vpop.xlane.xlu0 %2586
    %v2588 = vlaneseq
    %v2589 = vshrl.u32 %v2588, 7
    %v2590 = vsub.s32 0, %v2589
    %v2591 = vrot.slane %v2579, %v2590
    %v2592 = vadd.f32 %v2587, %v2591
    %vm2593 = vcmp.gt.f32.partialorder %v2592, 0.0
    %v2594 = vmul.f32 %v2592, 0.2
    %v2595 = vsel %vm2593, %v2592, %v2594
    %v2596 = vadd.f32 %v2595, %v1952
    %v2597 = vsel %vm2044, %v2596, -inf
    %2598 = vmax.xlane.f32.xlu0 %v2597
    %v2599 = vpop.xlane.xlu0 %2598
    %v2600 = vsub.f32 %v2596, %v2599
    %v2601 = vmul.f32 %v2600, 1.442695
    %v2602 = vpow.pop %v2601
    %v2603 = vmul.f32 %v2602, %v1950
    %v2604 = vsel %vm2044, %v2603, 0.0
    %2605 = vadd.xlane.f32.xlu0 %v2604
    %v2606 = vpop.xlane.xlu0 %2605
    %v2609 = vsel %vm282, %v2603, 0
    %2611 = vmatprep.subr.mxu0 0.0
    %2612 = vmatpush1.msra.mxu0 0.0
    %2613 = vmatprep.subr.mxu0 0.0
    %2614 = vmatpush1.msra.mxu0 0.0
    %2615 = vmatprep.subr.mxu0 0.0
    %2616 = vmatpush1.msra.mxu0 0.0
    %2617 = vmatprep.subr.mxu0 0.0
    %2618 = vmatpush1.msra.mxu0 0.0
    %2619 = vmatprep.subr.mxu0 0.0
    %2620 = vmatpush1.msra.mxu0 0.0
    %2621 = vmatprep.subr.mxu0 0.0
    %2622 = vmatpush1.msra.mxu0 0.0
    %2623 = vmatprep.subr.mxu0 0.0
    %2624 = vmatpush1.msra.mxu0 0.0
    %2625 = vmatprep.subr.mxu0 0.0
    %2626 = vmatpush1.msra.mxu0 0.0
    %2627 = vmatprep.subr.mxu0 0.0
    %2628 = vmatpush1.msra.mxu0 0.0
    %2629 = vmatprep.subr.mxu0 0.0
    %2630 = vmatpush1.msra.mxu0 0.0
    %2631 = vmatprep.subr.mxu0 0.0
    %2632 = vmatpush1.msra.mxu0 0.0
    %2633 = vmatprep.subr.mxu0 0.0
    %2634 = vmatpush1.msra.mxu0 0.0
    %2635 = vmatprep.subr.mxu0 0.0
    %2636 = vmatpush1.msra.mxu0 0.0
    %2637 = vmatprep.subr.mxu0 0.0
    %2638 = vmatpush1.msra.mxu0 0.0
    %2639 = vmatprep.subr.mxu0 0.0
    %2640 = vmatpush1.msra.mxu0 0.0
    %2641 = vmatprep.subr.mxu0 0.0
    %2642 = vmatpush1.msra.mxu0 %v2507
    %2643 = vmatprep.subr.mxu0 0.0
    %2644 = vmatpush2.msra.mxu0 0.0
    %2645 = vmatprep.subr.mxu0 0.0
    %2646 = vmatpush2.msra.mxu0 0.0
    %2647 = vmatprep.subr.mxu0 0.0
    %2648 = vmatpush2.msra.mxu0 0.0
    %2649 = vmatprep.subr.mxu0 0.0
    %2650 = vmatpush2.msra.mxu0 0.0
    %2651 = vmatprep.subr.mxu0 0.0
    %2652 = vmatpush2.msra.mxu0 0.0
    %2653 = vmatprep.subr.mxu0 0.0
    %2654 = vmatpush2.msra.mxu0 0.0
    %2655 = vmatprep.subr.mxu0 0.0
    %2656 = vmatpush2.msra.mxu0 0.0
    %2657 = vmatprep.subr.mxu0 0.0
    %2658 = vmatpush2.msra.mxu0 0.0
    %2659 = vmatprep.subr.mxu0 0.0
    %2660 = vmatpush2.msra.mxu0 0.0
    %2661 = vmatprep.subr.mxu0 0.0
    %2662 = vmatpush2.msra.mxu0 0.0
    %2663 = vmatprep.subr.mxu0 0.0
    %2664 = vmatpush2.msra.mxu0 0.0
    %2665 = vmatprep.subr.mxu0 0.0
    %2666 = vmatpush2.msra.mxu0 0.0
    %2667 = vmatprep.subr.mxu0 0.0
    %2668 = vmatpush2.msra.mxu0 0.0
    %2669 = vmatprep.subr.mxu0 0.0
    %2670 = vmatpush2.msra.mxu0 0.0
    %2671 = vmatprep.subr.mxu0 0.0
    %2672 = vmatpush2.msra.mxu0 0.0
    %2673 = vmatprep.subr.mxu0 0.0
    %2674 = vmatpush2.msra.mxu0 0.0
    %2675 = vmatprep.mubr.f32.mxu0 0.0
    %2676 = vmatmul.mubr.f32.gmra.mxu0 %v2609
    %v2677 = vpop.f32.mrf.mxu0
    %v2678 = vadd.f32 0.0, %v2677
    %v2679 = vpop.f32.mrf.mxu0
    %2680 = vdwg.mxu0
    %v2681 = vmax.f32 %v2606, 1e-30
    %v2682 = vrcp.pop %v2681
    %v2683 = vmul.f32 %v2678, %v2682
    %2685 = vrot.lane.b32.xlu0 %v2323, 8
    %v2686 = vpop.permute.xlu0 %2685
    %2689 = vrot.lane.b32.xlu0 %v2503, 16
    %v2690 = vpop.permute.xlu0 %2689
    %2693 = vrot.lane.b32.xlu0 %v2683, 24
    %v2694 = vpop.permute.xlu0 %2693
    %v2696 = vsel %vm282, %v2143, %v2686
    %v2697 = vsel %vm182, %v2696, %v2690
    %v2698 = vsel %vm1048, %v2697, %v2694
    %v2699 = vadd.f32 %v1948, %v2698
    %v2700 = vlaneseq
    %v2701 = vshrl.u32 %v2700, 7
    %v2702 = vsub.s32 2, %v2701
    %v2703 = vrot.slane %v1949, %v2702
    %v2704 = vadd.f32 %v2699, %v2703
    %s2705 = scalar_lea.vmem [#allocation14], 4
    %v2706 = vld [vmem:[%s2705] sm:$0xf]
    %v2707 = vsub.f32 1.0, %v2706
    %v2708 = vmul.f32 %v2707, -1e+30
    %v2709 = vrot.slane %v1949, 3
    %2710 = vrot.lane.b32.xlu0 %v1938, 64
    %v2711 = vpop.permute.xlu0 %2710
    %v2712 = vsel %vm282, %v2709, 0
    %v2714 = vsel %vm282, %v2711, 0
    %2716 = vmatprep.subr.mxu0 0.0
    %2717 = vmatpush1.xpose.msra.mxu0 0.0
    %2718 = vmatprep.subr.mxu0 0.0
    %2719 = vmatpush1.xpose.msra.mxu0 0.0
    %2720 = vmatprep.subr.mxu0 0.0
    %2721 = vmatpush1.xpose.msra.mxu0 0.0
    %2722 = vmatprep.subr.mxu0 0.0
    %2723 = vmatpush1.xpose.msra.mxu0 0.0
    %2724 = vmatprep.subr.mxu0 0.0
    %2725 = vmatpush1.xpose.msra.mxu0 0.0
    %2726 = vmatprep.subr.mxu0 0.0
    %2727 = vmatpush1.xpose.msra.mxu0 0.0
    %2728 = vmatprep.subr.mxu0 0.0
    %2729 = vmatpush1.xpose.msra.mxu0 0.0
    %2730 = vmatprep.subr.mxu0 0.0
    %2731 = vmatpush1.xpose.msra.mxu0 0.0
    %2732 = vmatprep.subr.mxu0 0.0
    %2733 = vmatpush1.xpose.msra.mxu0 0.0
    %2734 = vmatprep.subr.mxu0 0.0
    %2735 = vmatpush1.xpose.msra.mxu0 0.0
    %2736 = vmatprep.subr.mxu0 0.0
    %2737 = vmatpush1.xpose.msra.mxu0 0.0
    %2738 = vmatprep.subr.mxu0 0.0
    %2739 = vmatpush1.xpose.msra.mxu0 0.0
    %2740 = vmatprep.subr.mxu0 0.0
    %2741 = vmatpush1.xpose.msra.mxu0 0.0
    %2742 = vmatprep.subr.mxu0 0.0
    %2743 = vmatpush1.xpose.msra.mxu0 0.0
    %2744 = vmatprep.subr.mxu0 0.0
    %2745 = vmatpush1.xpose.msra.mxu0 0.0
    %2746 = vmatprep.subr.mxu0 0.0
    %2747 = vmatpush1.xpose.msra.mxu0 %v2714
    %2748 = vmatprep.subr.mxu0 0.0
    %2749 = vmatpush2.xpose.msra.mxu0 0.0
    %2750 = vmatprep.subr.mxu0 0.0
    %2751 = vmatpush2.xpose.msra.mxu0 0.0
    %2752 = vmatprep.subr.mxu0 0.0
    %2753 = vmatpush2.xpose.msra.mxu0 0.0
    %2754 = vmatprep.subr.mxu0 0.0
    %2755 = vmatpush2.xpose.msra.mxu0 0.0
    %2756 = vmatprep.subr.mxu0 0.0
    %2757 = vmatpush2.xpose.msra.mxu0 0.0
    %2758 = vmatprep.subr.mxu0 0.0
    %2759 = vmatpush2.xpose.msra.mxu0 0.0
    %2760 = vmatprep.subr.mxu0 0.0
    %2761 = vmatpush2.xpose.msra.mxu0 0.0
    %2762 = vmatprep.subr.mxu0 0.0
    %2763 = vmatpush2.xpose.msra.mxu0 0.0
    %2764 = vmatprep.subr.mxu0 0.0
    %2765 = vmatpush2.xpose.msra.mxu0 0.0
    %2766 = vmatprep.subr.mxu0 0.0
    %2767 = vmatpush2.xpose.msra.mxu0 0.0
    %2768 = vmatprep.subr.mxu0 0.0
    %2769 = vmatpush2.xpose.msra.mxu0 0.0
    %2770 = vmatprep.subr.mxu0 0.0
    %2771 = vmatpush2.xpose.msra.mxu0 0.0
    %2772 = vmatprep.subr.mxu0 0.0
    %2773 = vmatpush2.xpose.msra.mxu0 0.0
    %2774 = vmatprep.subr.mxu0 0.0
    %2775 = vmatpush2.xpose.msra.mxu0 0.0
    %2776 = vmatprep.subr.mxu0 0.0
    %2777 = vmatpush2.xpose.msra.mxu0 0.0
    %2778 = vmatprep.subr.mxu0 0.0
    %2779 = vmatpush2.xpose.msra.mxu0 0.0
    %2780 = vmatprep.mubr.f32.mxu0 0.0
    %2781 = vmatmul.mubr.f32.gmra.mxu0 %v2712
    %v2782 = vpop.f32.mrf.mxu0
    %v2783 = vadd.f32 0.0, %v2782
    %v2784 = vpop.f32.mrf.mxu0
    %2785 = vdwg.mxu0
    %v2786 = vlaneseq
    %v2787 = vshrl.u32 %v2786, 7
    %v2788 = vsub.s32 4, %v2787
    %v2789 = vrot.slane %v1949, %v2788
    %2791 = vrot.lane.b32.xlu0 %v2789, 64
    %v2792 = vpop.permute.xlu0 %2791
    %v2794 = vmul.f32 %v1938, %v2792
    %2796 = vrot.lane.b32.xlu0 %v2794, 64
    %v2797 = vpop.permute.xlu0 %2796
    %v2799 = vsel %vm2044, %v2797, 0.0
    %2800 = vadd.xlane.f32.xlu0 %v2799
    %v2801 = vpop.xlane.xlu0 %2800
    %v2802 = vlaneseq
    %v2803 = vshrl.u32 %v2802, 7
    %v2804 = vsub.s32 0, %v2803
    %v2805 = vrot.slane %v2783, %v2804
    %v2806 = vadd.f32 %v2801, %v2805
    %vm2807 = vcmp.gt.f32.partialorder %v2806, 0.0
    %v2808 = vmul.f32 %v2806, 0.2
    %v2809 = vsel %vm2807, %v2806, %v2808
    %v2810 = vadd.f32 %v2809, %v2708
    %v2811 = vsel %vm2044, %v2810, -inf
    %2812 = vmax.xlane.f32.xlu0 %v2811
    %v2813 = vpop.xlane.xlu0 %2812
    %v2814 = vsub.f32 %v2810, %v2813
    %v2815 = vmul.f32 %v2814, 1.442695
    %v2816 = vpow.pop %v2815
    %v2817 = vmul.f32 %v2816, %v2706
    %v2818 = vsel %vm2044, %v2817, 0.0
    %2819 = vadd.xlane.f32.xlu0 %v2818
    %v2820 = vpop.xlane.xlu0 %2819
    %v2823 = vsel %vm282, %v2817, 0
    %2825 = vmatprep.subr.mxu0 0.0
    %2826 = vmatpush1.msra.mxu0 0.0
    %2827 = vmatprep.subr.mxu0 0.0
    %2828 = vmatpush1.msra.mxu0 0.0
    %2829 = vmatprep.subr.mxu0 0.0
    %2830 = vmatpush1.msra.mxu0 0.0
    %2831 = vmatprep.subr.mxu0 0.0
    %2832 = vmatpush1.msra.mxu0 0.0
    %2833 = vmatprep.subr.mxu0 0.0
    %2834 = vmatpush1.msra.mxu0 0.0
    %2835 = vmatprep.subr.mxu0 0.0
    %2836 = vmatpush1.msra.mxu0 0.0
    %2837 = vmatprep.subr.mxu0 0.0
    %2838 = vmatpush1.msra.mxu0 0.0
    %2839 = vmatprep.subr.mxu0 0.0
    %2840 = vmatpush1.msra.mxu0 0.0
    %2841 = vmatprep.subr.mxu0 0.0
    %2842 = vmatpush1.msra.mxu0 0.0
    %2843 = vmatprep.subr.mxu0 0.0
    %2844 = vmatpush1.msra.mxu0 0.0
    %2845 = vmatprep.subr.mxu0 0.0
    %2846 = vmatpush1.msra.mxu0 0.0
    %2847 = vmatprep.subr.mxu0 0.0
    %2848 = vmatpush1.msra.mxu0 0.0
    %2849 = vmatprep.subr.mxu0 0.0
    %2850 = vmatpush1.msra.mxu0 0.0
    %2851 = vmatprep.subr.mxu0 0.0
    %2852 = vmatpush1.msra.mxu0 0.0
    %2853 = vmatprep.subr.mxu0 0.0
    %2854 = vmatpush1.msra.mxu0 0.0
    %2855 = vmatprep.subr.mxu0 0.0
    %2856 = vmatpush1.msra.mxu0 %v2711
    %2857 = vmatprep.subr.mxu0 0.0
    %2858 = vmatpush2.msra.mxu0 0.0
    %2859 = vmatprep.subr.mxu0 0.0
    %2860 = vmatpush2.msra.mxu0 0.0
    %2861 = vmatprep.subr.mxu0 0.0
    %2862 = vmatpush2.msra.mxu0 0.0
    %2863 = vmatprep.subr.mxu0 0.0
    %2864 = vmatpush2.msra.mxu0 0.0
    %2865 = vmatprep.subr.mxu0 0.0
    %2866 = vmatpush2.msra.mxu0 0.0
    %2867 = vmatprep.subr.mxu0 0.0
    %2868 = vmatpush2.msra.mxu0 0.0
    %2869 = vmatprep.subr.mxu0 0.0
    %2870 = vmatpush2.msra.mxu0 0.0
    %2871 = vmatprep.subr.mxu0 0.0
    %2872 = vmatpush2.msra.mxu0 0.0
    %2873 = vmatprep.subr.mxu0 0.0
    %2874 = vmatpush2.msra.mxu0 0.0
    %2875 = vmatprep.subr.mxu0 0.0
    %2876 = vmatpush2.msra.mxu0 0.0
    %2877 = vmatprep.subr.mxu0 0.0
    %2878 = vmatpush2.msra.mxu0 0.0
    %2879 = vmatprep.subr.mxu0 0.0
    %2880 = vmatpush2.msra.mxu0 0.0
    %2881 = vmatprep.subr.mxu0 0.0
    %2882 = vmatpush2.msra.mxu0 0.0
    %2883 = vmatprep.subr.mxu0 0.0
    %2884 = vmatpush2.msra.mxu0 0.0
    %2885 = vmatprep.subr.mxu0 0.0
    %2886 = vmatpush2.msra.mxu0 0.0
    %2887 = vmatprep.subr.mxu0 0.0
    %2888 = vmatpush2.msra.mxu0 0.0
    %2889 = vmatprep.mubr.f32.mxu0 0.0
    %2890 = vmatmul.mubr.f32.gmra.mxu0 %v2823
    %v2891 = vpop.f32.mrf.mxu0
    %v2892 = vadd.f32 0.0, %v2891
    %v2893 = vpop.f32.mrf.mxu0
    %2894 = vdwg.mxu0
    %v2895 = vmax.f32 %v2820, 1e-30
    %v2896 = vrcp.pop %v2895
    %v2897 = vmul.f32 %v2892, %v2896
    %2898 = vrot.lane.b32.xlu0 %v2709, 120
    %v2899 = vpop.permute.xlu0 %2898
    %2900 = vrot.lane.b32.xlu0 %v1938, 56
    %v2901 = vpop.permute.xlu0 %2900
    %v2902 = vsel %vm282, %v2899, 0
    %v2904 = vsel %vm282, %v2901, 0
    %2906 = vmatprep.subr.mxu0 0.0
    %2907 = vmatpush1.xpose.msra.mxu0 0.0
    %2908 = vmatprep.subr.mxu0 0.0
    %2909 = vmatpush1.xpose.msra.mxu0 0.0
    %2910 = vmatprep.subr.mxu0 0.0
    %2911 = vmatpush1.xpose.msra.mxu0 0.0
    %2912 = vmatprep.subr.mxu0 0.0
    %2913 = vmatpush1.xpose.msra.mxu0 0.0
    %2914 = vmatprep.subr.mxu0 0.0
    %2915 = vmatpush1.xpose.msra.mxu0 0.0
    %2916 = vmatprep.subr.mxu0 0.0
    %2917 = vmatpush1.xpose.msra.mxu0 0.0
    %2918 = vmatprep.subr.mxu0 0.0
    %2919 = vmatpush1.xpose.msra.mxu0 0.0
    %2920 = vmatprep.subr.mxu0 0.0
    %2921 = vmatpush1.xpose.msra.mxu0 0.0
    %2922 = vmatprep.subr.mxu0 0.0
    %2923 = vmatpush1.xpose.msra.mxu0 0.0
    %2924 = vmatprep.subr.mxu0 0.0
    %2925 = vmatpush1.xpose.msra.mxu0 0.0
    %2926 = vmatprep.subr.mxu0 0.0
    %2927 = vmatpush1.xpose.msra.mxu0 0.0
    %2928 = vmatprep.subr.mxu0 0.0
    %2929 = vmatpush1.xpose.msra.mxu0 0.0
    %2930 = vmatprep.subr.mxu0 0.0
    %2931 = vmatpush1.xpose.msra.mxu0 0.0
    %2932 = vmatprep.subr.mxu0 0.0
    %2933 = vmatpush1.xpose.msra.mxu0 0.0
    %2934 = vmatprep.subr.mxu0 0.0
    %2935 = vmatpush1.xpose.msra.mxu0 0.0
    %2936 = vmatprep.subr.mxu0 0.0
    %2937 = vmatpush1.xpose.msra.mxu0 %v2904
    %2938 = vmatprep.subr.mxu0 0.0
    %2939 = vmatpush2.xpose.msra.mxu0 0.0
    %2940 = vmatprep.subr.mxu0 0.0
    %2941 = vmatpush2.xpose.msra.mxu0 0.0
    %2942 = vmatprep.subr.mxu0 0.0
    %2943 = vmatpush2.xpose.msra.mxu0 0.0
    %2944 = vmatprep.subr.mxu0 0.0
    %2945 = vmatpush2.xpose.msra.mxu0 0.0
    %2946 = vmatprep.subr.mxu0 0.0
    %2947 = vmatpush2.xpose.msra.mxu0 0.0
    %2948 = vmatprep.subr.mxu0 0.0
    %2949 = vmatpush2.xpose.msra.mxu0 0.0
    %2950 = vmatprep.subr.mxu0 0.0
    %2951 = vmatpush2.xpose.msra.mxu0 0.0
    %2952 = vmatprep.subr.mxu0 0.0
    %2953 = vmatpush2.xpose.msra.mxu0 0.0
    %2954 = vmatprep.subr.mxu0 0.0
    %2955 = vmatpush2.xpose.msra.mxu0 0.0
    %2956 = vmatprep.subr.mxu0 0.0
    %2957 = vmatpush2.xpose.msra.mxu0 0.0
    %2958 = vmatprep.subr.mxu0 0.0
    %2959 = vmatpush2.xpose.msra.mxu0 0.0
    %2960 = vmatprep.subr.mxu0 0.0
    %2961 = vmatpush2.xpose.msra.mxu0 0.0
    %2962 = vmatprep.subr.mxu0 0.0
    %2963 = vmatpush2.xpose.msra.mxu0 0.0
    %2964 = vmatprep.subr.mxu0 0.0
    %2965 = vmatpush2.xpose.msra.mxu0 0.0
    %2966 = vmatprep.subr.mxu0 0.0
    %2967 = vmatpush2.xpose.msra.mxu0 0.0
    %2968 = vmatprep.subr.mxu0 0.0
    %2969 = vmatpush2.xpose.msra.mxu0 0.0
    %2970 = vmatprep.mubr.f32.mxu0 0.0
    %2971 = vmatmul.mubr.f32.gmra.mxu0 %v2902
    %v2972 = vpop.f32.mrf.mxu0
    %v2973 = vadd.f32 0.0, %v2972
    %v2974 = vpop.f32.mrf.mxu0
    %2975 = vdwg.mxu0
    %2976 = vrot.lane.b32.xlu0 %v2794, 56
    %v2977 = vpop.permute.xlu0 %2976
    %v2979 = vsel %vm2044, %v2977, 0.0
    %2980 = vadd.xlane.f32.xlu0 %v2979
    %v2981 = vpop.xlane.xlu0 %2980
    %v2982 = vlaneseq
    %v2983 = vshrl.u32 %v2982, 7
    %v2984 = vsub.s32 0, %v2983
    %v2985 = vrot.slane %v2973, %v2984
    %v2986 = vadd.f32 %v2981, %v2985
    %vm2987 = vcmp.gt.f32.partialorder %v2986, 0.0
    %v2988 = vmul.f32 %v2986, 0.2
    %v2989 = vsel %vm2987, %v2986, %v2988
    %v2990 = vadd.f32 %v2989, %v2708
    %v2991 = vsel %vm2044, %v2990, -inf
    %2992 = vmax.xlane.f32.xlu0 %v2991
    %v2993 = vpop.xlane.xlu0 %2992
    %v2994 = vsub.f32 %v2990, %v2993
    %v2995 = vmul.f32 %v2994, 1.442695
    %v2996 = vpow.pop %v2995
    %v2997 = vmul.f32 %v2996, %v2706
    %v2998 = vsel %vm2044, %v2997, 0.0
    %2999 = vadd.xlane.f32.xlu0 %v2998
    %v3000 = vpop.xlane.xlu0 %2999
    %v3003 = vsel %vm282, %v2997, 0
    %3005 = vmatprep.subr.mxu0 0.0
    %3006 = vmatpush1.msra.mxu0 0.0
    %3007 = vmatprep.subr.mxu0 0.0
    %3008 = vmatpush1.msra.mxu0 0.0
    %3009 = vmatprep.subr.mxu0 0.0
    %3010 = vmatpush1.msra.mxu0 0.0
    %3011 = vmatprep.subr.mxu0 0.0
    %3012 = vmatpush1.msra.mxu0 0.0
    %3013 = vmatprep.subr.mxu0 0.0
    %3014 = vmatpush1.msra.mxu0 0.0
    %3015 = vmatprep.subr.mxu0 0.0
    %3016 = vmatpush1.msra.mxu0 0.0
    %3017 = vmatprep.subr.mxu0 0.0
    %3018 = vmatpush1.msra.mxu0 0.0
    %3019 = vmatprep.subr.mxu0 0.0
    %3020 = vmatpush1.msra.mxu0 0.0
    %3021 = vmatprep.subr.mxu0 0.0
    %3022 = vmatpush1.msra.mxu0 0.0
    %3023 = vmatprep.subr.mxu0 0.0
    %3024 = vmatpush1.msra.mxu0 0.0
    %3025 = vmatprep.subr.mxu0 0.0
    %3026 = vmatpush1.msra.mxu0 0.0
    %3027 = vmatprep.subr.mxu0 0.0
    %3028 = vmatpush1.msra.mxu0 0.0
    %3029 = vmatprep.subr.mxu0 0.0
    %3030 = vmatpush1.msra.mxu0 0.0
    %3031 = vmatprep.subr.mxu0 0.0
    %3032 = vmatpush1.msra.mxu0 0.0
    %3033 = vmatprep.subr.mxu0 0.0
    %3034 = vmatpush1.msra.mxu0 0.0
    %3035 = vmatprep.subr.mxu0 0.0
    %3036 = vmatpush1.msra.mxu0 %v2901
    %3037 = vmatprep.subr.mxu0 0.0
    %3038 = vmatpush2.msra.mxu0 0.0
    %3039 = vmatprep.subr.mxu0 0.0
    %3040 = vmatpush2.msra.mxu0 0.0
    %3041 = vmatprep.subr.mxu0 0.0
    %3042 = vmatpush2.msra.mxu0 0.0
    %3043 = vmatprep.subr.mxu0 0.0
    %3044 = vmatpush2.msra.mxu0 0.0
    %3045 = vmatprep.subr.mxu0 0.0
    %3046 = vmatpush2.msra.mxu0 0.0
    %3047 = vmatprep.subr.mxu0 0.0
    %3048 = vmatpush2.msra.mxu0 0.0
    %3049 = vmatprep.subr.mxu0 0.0
    %3050 = vmatpush2.msra.mxu0 0.0
    %3051 = vmatprep.subr.mxu0 0.0
    %3052 = vmatpush2.msra.mxu0 0.0
    %3053 = vmatprep.subr.mxu0 0.0
    %3054 = vmatpush2.msra.mxu0 0.0
    %3055 = vmatprep.subr.mxu0 0.0
    %3056 = vmatpush2.msra.mxu0 0.0
    %3057 = vmatprep.subr.mxu0 0.0
    %3058 = vmatpush2.msra.mxu0 0.0
    %3059 = vmatprep.subr.mxu0 0.0
    %3060 = vmatpush2.msra.mxu0 0.0
    %3061 = vmatprep.subr.mxu0 0.0
    %3062 = vmatpush2.msra.mxu0 0.0
    %3063 = vmatprep.subr.mxu0 0.0
    %3064 = vmatpush2.msra.mxu0 0.0
    %3065 = vmatprep.subr.mxu0 0.0
    %3066 = vmatpush2.msra.mxu0 0.0
    %3067 = vmatprep.subr.mxu0 0.0
    %3068 = vmatpush2.msra.mxu0 0.0
    %3069 = vmatprep.mubr.f32.mxu0 0.0
    %3070 = vmatmul.mubr.f32.gmra.mxu0 %v3003
    %v3071 = vpop.f32.mrf.mxu0
    %v3072 = vadd.f32 0.0, %v3071
    %v3073 = vpop.f32.mrf.mxu0
    %3074 = vdwg.mxu0
    %v3075 = vmax.f32 %v3000, 1e-30
    %v3076 = vrcp.pop %v3075
    %v3077 = vmul.f32 %v3072, %v3076
    %3078 = vrot.lane.b32.xlu0 %v2709, 112
    %v3079 = vpop.permute.xlu0 %3078
    %3080 = vrot.lane.b32.xlu0 %v1938, 48
    %v3081 = vpop.permute.xlu0 %3080
    %v3082 = vsel %vm282, %v3079, 0
    %v3084 = vsel %vm282, %v3081, 0
    %3086 = vmatprep.subr.mxu0 0.0
    %3087 = vmatpush1.xpose.msra.mxu0 0.0
    %3088 = vmatprep.subr.mxu0 0.0
    %3089 = vmatpush1.xpose.msra.mxu0 0.0
    %3090 = vmatprep.subr.mxu0 0.0
    %3091 = vmatpush1.xpose.msra.mxu0 0.0
    %3092 = vmatprep.subr.mxu0 0.0
    %3093 = vmatpush1.xpose.msra.mxu0 0.0
    %3094 = vmatprep.subr.mxu0 0.0
    %3095 = vmatpush1.xpose.msra.mxu0 0.0
    %3096 = vmatprep.subr.mxu0 0.0
    %3097 = vmatpush1.xpose.msra.mxu0 0.0
    %3098 = vmatprep.subr.mxu0 0.0
    %3099 = vmatpush1.xpose.msra.mxu0 0.0
    %3100 = vmatprep.subr.mxu0 0.0
    %3101 = vmatpush1.xpose.msra.mxu0 0.0
    %3102 = vmatprep.subr.mxu0 0.0
    %3103 = vmatpush1.xpose.msra.mxu0 0.0
    %3104 = vmatprep.subr.mxu0 0.0
    %3105 = vmatpush1.xpose.msra.mxu0 0.0
    %3106 = vmatprep.subr.mxu0 0.0
    %3107 = vmatpush1.xpose.msra.mxu0 0.0
    %3108 = vmatprep.subr.mxu0 0.0
    %3109 = vmatpush1.xpose.msra.mxu0 0.0
    %3110 = vmatprep.subr.mxu0 0.0
    %3111 = vmatpush1.xpose.msra.mxu0 0.0
    %3112 = vmatprep.subr.mxu0 0.0
    %3113 = vmatpush1.xpose.msra.mxu0 0.0
    %3114 = vmatprep.subr.mxu0 0.0
    %3115 = vmatpush1.xpose.msra.mxu0 0.0
    %3116 = vmatprep.subr.mxu0 0.0
    %3117 = vmatpush1.xpose.msra.mxu0 %v3084
    %3118 = vmatprep.subr.mxu0 0.0
    %3119 = vmatpush2.xpose.msra.mxu0 0.0
    %3120 = vmatprep.subr.mxu0 0.0
    %3121 = vmatpush2.xpose.msra.mxu0 0.0
    %3122 = vmatprep.subr.mxu0 0.0
    %3123 = vmatpush2.xpose.msra.mxu0 0.0
    %3124 = vmatprep.subr.mxu0 0.0
    %3125 = vmatpush2.xpose.msra.mxu0 0.0
    %3126 = vmatprep.subr.mxu0 0.0
    %3127 = vmatpush2.xpose.msra.mxu0 0.0
    %3128 = vmatprep.subr.mxu0 0.0
    %3129 = vmatpush2.xpose.msra.mxu0 0.0
    %3130 = vmatprep.subr.mxu0 0.0
    %3131 = vmatpush2.xpose.msra.mxu0 0.0
    %3132 = vmatprep.subr.mxu0 0.0
    %3133 = vmatpush2.xpose.msra.mxu0 0.0
    %3134 = vmatprep.subr.mxu0 0.0
    %3135 = vmatpush2.xpose.msra.mxu0 0.0
    %3136 = vmatprep.subr.mxu0 0.0
    %3137 = vmatpush2.xpose.msra.mxu0 0.0
    %3138 = vmatprep.subr.mxu0 0.0
    %3139 = vmatpush2.xpose.msra.mxu0 0.0
    %3140 = vmatprep.subr.mxu0 0.0
    %3141 = vmatpush2.xpose.msra.mxu0 0.0
    %3142 = vmatprep.subr.mxu0 0.0
    %3143 = vmatpush2.xpose.msra.mxu0 0.0
    %3144 = vmatprep.subr.mxu0 0.0
    %3145 = vmatpush2.xpose.msra.mxu0 0.0
    %3146 = vmatprep.subr.mxu0 0.0
    %3147 = vmatpush2.xpose.msra.mxu0 0.0
    %3148 = vmatprep.subr.mxu0 0.0
    %3149 = vmatpush2.xpose.msra.mxu0 0.0
    %3150 = vmatprep.mubr.f32.mxu0 0.0
    %3151 = vmatmul.mubr.f32.gmra.mxu0 %v3082
    %v3152 = vpop.f32.mrf.mxu0
    %v3153 = vadd.f32 0.0, %v3152
    %v3154 = vpop.f32.mrf.mxu0
    %3155 = vdwg.mxu0
    %3156 = vrot.lane.b32.xlu0 %v2794, 48
    %v3157 = vpop.permute.xlu0 %3156
    %v3159 = vsel %vm2044, %v3157, 0.0
    %3160 = vadd.xlane.f32.xlu0 %v3159
    %v3161 = vpop.xlane.xlu0 %3160
    %v3162 = vlaneseq
    %v3163 = vshrl.u32 %v3162, 7
    %v3164 = vsub.s32 0, %v3163
    %v3165 = vrot.slane %v3153, %v3164
    %v3166 = vadd.f32 %v3161, %v3165
    %vm3167 = vcmp.gt.f32.partialorder %v3166, 0.0
    %v3168 = vmul.f32 %v3166, 0.2
    %v3169 = vsel %vm3167, %v3166, %v3168
    %v3170 = vadd.f32 %v3169, %v2708
    %v3171 = vsel %vm2044, %v3170, -inf
    %3172 = vmax.xlane.f32.xlu0 %v3171
    %v3173 = vpop.xlane.xlu0 %3172
    %v3174 = vsub.f32 %v3170, %v3173
    %v3175 = vmul.f32 %v3174, 1.442695
    %v3176 = vpow.pop %v3175
    %v3177 = vmul.f32 %v3176, %v2706
    %v3178 = vsel %vm2044, %v3177, 0.0
    %3179 = vadd.xlane.f32.xlu0 %v3178
    %v3180 = vpop.xlane.xlu0 %3179
    %v3183 = vsel %vm282, %v3177, 0
    %3185 = vmatprep.subr.mxu0 0.0
    %3186 = vmatpush1.msra.mxu0 0.0
    %3187 = vmatprep.subr.mxu0 0.0
    %3188 = vmatpush1.msra.mxu0 0.0
    %3189 = vmatprep.subr.mxu0 0.0
    %3190 = vmatpush1.msra.mxu0 0.0
    %3191 = vmatprep.subr.mxu0 0.0
    %3192 = vmatpush1.msra.mxu0 0.0
    %3193 = vmatprep.subr.mxu0 0.0
    %3194 = vmatpush1.msra.mxu0 0.0
    %3195 = vmatprep.subr.mxu0 0.0
    %3196 = vmatpush1.msra.mxu0 0.0
    %3197 = vmatprep.subr.mxu0 0.0
    %3198 = vmatpush1.msra.mxu0 0.0
    %3199 = vmatprep.subr.mxu0 0.0
    %3200 = vmatpush1.msra.mxu0 0.0
    %3201 = vmatprep.subr.mxu0 0.0
    %3202 = vmatpush1.msra.mxu0 0.0
    %3203 = vmatprep.subr.mxu0 0.0
    %3204 = vmatpush1.msra.mxu0 0.0
    %3205 = vmatprep.subr.mxu0 0.0
    %3206 = vmatpush1.msra.mxu0 0.0
    %3207 = vmatprep.subr.mxu0 0.0
    %3208 = vmatpush1.msra.mxu0 0.0
    %3209 = vmatprep.subr.mxu0 0.0
    %3210 = vmatpush1.msra.mxu0 0.0
    %3211 = vmatprep.subr.mxu0 0.0
    %3212 = vmatpush1.msra.mxu0 0.0
    %3213 = vmatprep.subr.mxu0 0.0
    %3214 = vmatpush1.msra.mxu0 0.0
    %3215 = vmatprep.subr.mxu0 0.0
    %3216 = vmatpush1.msra.mxu0 %v3081
    %3217 = vmatprep.subr.mxu0 0.0
    %3218 = vmatpush2.msra.mxu0 0.0
    %3219 = vmatprep.subr.mxu0 0.0
    %3220 = vmatpush2.msra.mxu0 0.0
    %3221 = vmatprep.subr.mxu0 0.0
    %3222 = vmatpush2.msra.mxu0 0.0
    %3223 = vmatprep.subr.mxu0 0.0
    %3224 = vmatpush2.msra.mxu0 0.0
    %3225 = vmatprep.subr.mxu0 0.0
    %3226 = vmatpush2.msra.mxu0 0.0
    %3227 = vmatprep.subr.mxu0 0.0
    %3228 = vmatpush2.msra.mxu0 0.0
    %3229 = vmatprep.subr.mxu0 0.0
    %3230 = vmatpush2.msra.mxu0 0.0
    %3231 = vmatprep.subr.mxu0 0.0
    %3232 = vmatpush2.msra.mxu0 0.0
    %3233 = vmatprep.subr.mxu0 0.0
    %3234 = vmatpush2.msra.mxu0 0.0
    %3235 = vmatprep.subr.mxu0 0.0
    %3236 = vmatpush2.msra.mxu0 0.0
    %3237 = vmatprep.subr.mxu0 0.0
    %3238 = vmatpush2.msra.mxu0 0.0
    %3239 = vmatprep.subr.mxu0 0.0
    %3240 = vmatpush2.msra.mxu0 0.0
    %3241 = vmatprep.subr.mxu0 0.0
    %3242 = vmatpush2.msra.mxu0 0.0
    %3243 = vmatprep.subr.mxu0 0.0
    %3244 = vmatpush2.msra.mxu0 0.0
    %3245 = vmatprep.subr.mxu0 0.0
    %3246 = vmatpush2.msra.mxu0 0.0
    %3247 = vmatprep.subr.mxu0 0.0
    %3248 = vmatpush2.msra.mxu0 0.0
    %3249 = vmatprep.mubr.f32.mxu0 0.0
    %3250 = vmatmul.mubr.f32.gmra.mxu0 %v3183
    %v3251 = vpop.f32.mrf.mxu0
    %v3252 = vadd.f32 0.0, %v3251
    %v3253 = vpop.f32.mrf.mxu0
    %3254 = vdwg.mxu0
    %v3255 = vmax.f32 %v3180, 1e-30
    %v3256 = vrcp.pop %v3255
    %v3257 = vmul.f32 %v3252, %v3256
    %3258 = vrot.lane.b32.xlu0 %v2709, 104
    %v3259 = vpop.permute.xlu0 %3258
    %3260 = vrot.lane.b32.xlu0 %v1938, 40
    %v3261 = vpop.permute.xlu0 %3260
    %v3262 = vsel %vm282, %v3259, 0
    %v3264 = vsel %vm282, %v3261, 0
    %3266 = vmatprep.subr.mxu0 0.0
    %3267 = vmatpush1.xpose.msra.mxu0 0.0
    %3268 = vmatprep.subr.mxu0 0.0
    %3269 = vmatpush1.xpose.msra.mxu0 0.0
    %3270 = vmatprep.subr.mxu0 0.0
    %3271 = vmatpush1.xpose.msra.mxu0 0.0
    %3272 = vmatprep.subr.mxu0 0.0
    %3273 = vmatpush1.xpose.msra.mxu0 0.0
    %3274 = vmatprep.subr.mxu0 0.0
    %3275 = vmatpush1.xpose.msra.mxu0 0.0
    %3276 = vmatprep.subr.mxu0 0.0
    %3277 = vmatpush1.xpose.msra.mxu0 0.0
    %3278 = vmatprep.subr.mxu0 0.0
    %3279 = vmatpush1.xpose.msra.mxu0 0.0
    %3280 = vmatprep.subr.mxu0 0.0
    %3281 = vmatpush1.xpose.msra.mxu0 0.0
    %3282 = vmatprep.subr.mxu0 0.0
    %3283 = vmatpush1.xpose.msra.mxu0 0.0
    %3284 = vmatprep.subr.mxu0 0.0
    %3285 = vmatpush1.xpose.msra.mxu0 0.0
    %3286 = vmatprep.subr.mxu0 0.0
    %3287 = vmatpush1.xpose.msra.mxu0 0.0
    %3288 = vmatprep.subr.mxu0 0.0
    %3289 = vmatpush1.xpose.msra.mxu0 0.0
    %3290 = vmatprep.subr.mxu0 0.0
    %3291 = vmatpush1.xpose.msra.mxu0 0.0
    %3292 = vmatprep.subr.mxu0 0.0
    %3293 = vmatpush1.xpose.msra.mxu0 0.0
    %3294 = vmatprep.subr.mxu0 0.0
    %3295 = vmatpush1.xpose.msra.mxu0 0.0
    %3296 = vmatprep.subr.mxu0 0.0
    %3297 = vmatpush1.xpose.msra.mxu0 %v3264
    %3298 = vmatprep.subr.mxu0 0.0
    %3299 = vmatpush2.xpose.msra.mxu0 0.0
    %3300 = vmatprep.subr.mxu0 0.0
    %3301 = vmatpush2.xpose.msra.mxu0 0.0
    %3302 = vmatprep.subr.mxu0 0.0
    %3303 = vmatpush2.xpose.msra.mxu0 0.0
    %3304 = vmatprep.subr.mxu0 0.0
    %3305 = vmatpush2.xpose.msra.mxu0 0.0
    %3306 = vmatprep.subr.mxu0 0.0
    %3307 = vmatpush2.xpose.msra.mxu0 0.0
    %3308 = vmatprep.subr.mxu0 0.0
    %3309 = vmatpush2.xpose.msra.mxu0 0.0
    %3310 = vmatprep.subr.mxu0 0.0
    %3311 = vmatpush2.xpose.msra.mxu0 0.0
    %3312 = vmatprep.subr.mxu0 0.0
    %3313 = vmatpush2.xpose.msra.mxu0 0.0
    %3314 = vmatprep.subr.mxu0 0.0
    %3315 = vmatpush2.xpose.msra.mxu0 0.0
    %3316 = vmatprep.subr.mxu0 0.0
    %3317 = vmatpush2.xpose.msra.mxu0 0.0
    %3318 = vmatprep.subr.mxu0 0.0
    %3319 = vmatpush2.xpose.msra.mxu0 0.0
    %3320 = vmatprep.subr.mxu0 0.0
    %3321 = vmatpush2.xpose.msra.mxu0 0.0
    %3322 = vmatprep.subr.mxu0 0.0
    %3323 = vmatpush2.xpose.msra.mxu0 0.0
    %3324 = vmatprep.subr.mxu0 0.0
    %3325 = vmatpush2.xpose.msra.mxu0 0.0
    %3326 = vmatprep.subr.mxu0 0.0
    %3327 = vmatpush2.xpose.msra.mxu0 0.0
    %3328 = vmatprep.subr.mxu0 0.0
    %3329 = vmatpush2.xpose.msra.mxu0 0.0
    %3330 = vmatprep.mubr.f32.mxu0 0.0
    %3331 = vmatmul.mubr.f32.gmra.mxu0 %v3262
    %v3332 = vpop.f32.mrf.mxu0
    %v3333 = vadd.f32 0.0, %v3332
    %v3334 = vpop.f32.mrf.mxu0
    %3335 = vdwg.mxu0
    %3336 = vrot.lane.b32.xlu0 %v2794, 40
    %v3337 = vpop.permute.xlu0 %3336
    %v3339 = vsel %vm2044, %v3337, 0.0
    %3340 = vadd.xlane.f32.xlu0 %v3339
    %v3341 = vpop.xlane.xlu0 %3340
    %v3342 = vlaneseq
    %v3343 = vshrl.u32 %v3342, 7
    %v3344 = vsub.s32 0, %v3343
    %v3345 = vrot.slane %v3333, %v3344
    %v3346 = vadd.f32 %v3341, %v3345
    %vm3347 = vcmp.gt.f32.partialorder %v3346, 0.0
    %v3348 = vmul.f32 %v3346, 0.2
    %v3349 = vsel %vm3347, %v3346, %v3348
    %v3350 = vadd.f32 %v3349, %v2708
    %v3351 = vsel %vm2044, %v3350, -inf
    %3352 = vmax.xlane.f32.xlu0 %v3351
    %v3353 = vpop.xlane.xlu0 %3352
    %v3354 = vsub.f32 %v3350, %v3353
    %v3355 = vmul.f32 %v3354, 1.442695
    %v3356 = vpow.pop %v3355
    %v3357 = vmul.f32 %v3356, %v2706
    %v3358 = vsel %vm2044, %v3357, 0.0
    %3359 = vadd.xlane.f32.xlu0 %v3358
    %v3360 = vpop.xlane.xlu0 %3359
    %v3363 = vsel %vm282, %v3357, 0
    %3365 = vmatprep.subr.mxu0 0.0
    %3366 = vmatpush1.msra.mxu0 0.0
    %3367 = vmatprep.subr.mxu0 0.0
    %3368 = vmatpush1.msra.mxu0 0.0
    %3369 = vmatprep.subr.mxu0 0.0
    %3370 = vmatpush1.msra.mxu0 0.0
    %3371 = vmatprep.subr.mxu0 0.0
    %3372 = vmatpush1.msra.mxu0 0.0
    %3373 = vmatprep.subr.mxu0 0.0
    %3374 = vmatpush1.msra.mxu0 0.0
    %3375 = vmatprep.subr.mxu0 0.0
    %3376 = vmatpush1.msra.mxu0 0.0
    %3377 = vmatprep.subr.mxu0 0.0
    %3378 = vmatpush1.msra.mxu0 0.0
    %3379 = vmatprep.subr.mxu0 0.0
    %3380 = vmatpush1.msra.mxu0 0.0
    %3381 = vmatprep.subr.mxu0 0.0
    %3382 = vmatpush1.msra.mxu0 0.0
    %3383 = vmatprep.subr.mxu0 0.0
    %3384 = vmatpush1.msra.mxu0 0.0
    %3385 = vmatprep.subr.mxu0 0.0
    %3386 = vmatpush1.msra.mxu0 0.0
    %3387 = vmatprep.subr.mxu0 0.0
    %3388 = vmatpush1.msra.mxu0 0.0
    %3389 = vmatprep.subr.mxu0 0.0
    %3390 = vmatpush1.msra.mxu0 0.0
    %3391 = vmatprep.subr.mxu0 0.0
    %3392 = vmatpush1.msra.mxu0 0.0
    %3393 = vmatprep.subr.mxu0 0.0
    %3394 = vmatpush1.msra.mxu0 0.0
    %3395 = vmatprep.subr.mxu0 0.0
    %3396 = vmatpush1.msra.mxu0 %v3261
    %3397 = vmatprep.subr.mxu0 0.0
    %3398 = vmatpush2.msra.mxu0 0.0
    %3399 = vmatprep.subr.mxu0 0.0
    %3400 = vmatpush2.msra.mxu0 0.0
    %3401 = vmatprep.subr.mxu0 0.0
    %3402 = vmatpush2.msra.mxu0 0.0
    %3403 = vmatprep.subr.mxu0 0.0
    %3404 = vmatpush2.msra.mxu0 0.0
    %3405 = vmatprep.subr.mxu0 0.0
    %3406 = vmatpush2.msra.mxu0 0.0
    %3407 = vmatprep.subr.mxu0 0.0
    %3408 = vmatpush2.msra.mxu0 0.0
    %3409 = vmatprep.subr.mxu0 0.0
    %3410 = vmatpush2.msra.mxu0 0.0
    %3411 = vmatprep.subr.mxu0 0.0
    %3412 = vmatpush2.msra.mxu0 0.0
    %3413 = vmatprep.subr.mxu0 0.0
    %3414 = vmatpush2.msra.mxu0 0.0
    %3415 = vmatprep.subr.mxu0 0.0
    %3416 = vmatpush2.msra.mxu0 0.0
    %3417 = vmatprep.subr.mxu0 0.0
    %3418 = vmatpush2.msra.mxu0 0.0
    %3419 = vmatprep.subr.mxu0 0.0
    %3420 = vmatpush2.msra.mxu0 0.0
    %3421 = vmatprep.subr.mxu0 0.0
    %3422 = vmatpush2.msra.mxu0 0.0
    %3423 = vmatprep.subr.mxu0 0.0
    %3424 = vmatpush2.msra.mxu0 0.0
    %3425 = vmatprep.subr.mxu0 0.0
    %3426 = vmatpush2.msra.mxu0 0.0
    %3427 = vmatprep.subr.mxu0 0.0
    %3428 = vmatpush2.msra.mxu0 0.0
    %3429 = vmatprep.mubr.f32.mxu0 0.0
    %3430 = vmatmul.mubr.f32.gmra.mxu0 %v3363
    %v3431 = vpop.f32.mrf.mxu0
    %v3432 = vadd.f32 0.0, %v3431
    %v3433 = vpop.f32.mrf.mxu0
    %3434 = vdwg.mxu0
    %v3435 = vmax.f32 %v3360, 1e-30
    %v3436 = vrcp.pop %v3435
    %v3437 = vmul.f32 %v3432, %v3436
    %3439 = vrot.lane.b32.xlu0 %v3077, 8
    %v3440 = vpop.permute.xlu0 %3439
    %3443 = vrot.lane.b32.xlu0 %v3257, 16
    %v3444 = vpop.permute.xlu0 %3443
    %3447 = vrot.lane.b32.xlu0 %v3437, 24
    %v3448 = vpop.permute.xlu0 %3447
    %v3450 = vsel %vm282, %v2897, %v3440
    %v3451 = vsel %vm182, %v3450, %v3444
    %v3452 = vsel %vm1048, %v3451, %v3448
    %v3453 = vadd.f32 %v2704, %v3452
    %v3454 = vlaneseq
    %v3455 = vshrl.u32 %v3454, 7
    %v3456 = vsub.s32 5, %v3455
    %v3457 = vrot.slane %v1949, %v3456
    %v3458 = vadd.f32 %v3453, %v3457
    %v3459 = vld [vmem:[#allocation16] sm:$0xf]
    %v3460 = vlaneseq
    %v3461 = vshrl.u32 %v3460, 7
    %v3462 = vsub.s32 2, %v3461
    %v3463 = vrot.slane %v3459, %v3462
    %v3464 = vsub.f32 %v3458, %v3463
    %v3465 = vadd.f32 %v3459, 1e-05
    %v3466 = vrsqrt.pop %v3465
    %v3467 = vlaneseq
    %v3468 = vshrl.u32 %v3467, 7
    %v3469 = vsub.s32 3, %v3468
    %v3470 = vrot.slane %v3466, %v3469
    %v3471 = vmul.f32 %v3464, %v3470
    %v3472 = vlaneseq
    %v3473 = vshrl.u32 %v3472, 7
    %v3474 = vsub.s32 0, %v3473
    %v3475 = vrot.slane %v3459, %v3474
    %v3476 = vmul.f32 %v3471, %v3475
    %v3477 = vlaneseq
    %v3478 = vshrl.u32 %v3477, 7
    %v3479 = vsub.s32 1, %v3478
    %v3480 = vrot.slane %v3459, %v3479
    %v3481 = vadd.f32 %v3476, %v3480
    %vm3482 = vcmp.gt.f32.partialorder %v3481, 0.0
    %v3483 = vmin.f32 %v3481, 0.0
    %v3484 = vmul.f32 %v3483, 1.442695
    %v3485 = vpow.pop %v3484
    %v3486 = vsub.f32 %v3485, 1.0
    %v3487 = vsel %vm3482, %v3481, %v3486
    %v3488 = vld [vmem:[#allocation17] sm:$0xff]
    %v3489 = vld [vmem:[#allocation17 + $0x8] sm:$0xff]
    %v3490 = vld [vmem:[#allocation17 + $0x10] sm:$0xff]
    %v3491 = vld [vmem:[#allocation17 + $0x18] sm:$0xff]
    %v3492 = vld [vmem:[%s12] sm:$0x1]
    %v3494 = vlaneseq
    %v3495 = vshrl.u32 %v3494, 7
    %v3496 = vsub.s32 0, %v3495
    %v3497 = vrot.slane %v3492, %v3496
    %v3500 = vsel %vm1867, %v3487, 0
    %3502 = vmatprep.subr.mxu0 0.0
    %3503 = vmatpush1.msra.mxu0 0.0
    %3504 = vmatprep.subr.mxu0 0.0
    %3505 = vmatpush1.msra.mxu0 0.0
    %3506 = vmatprep.subr.mxu0 0.0
    %3507 = vmatpush1.msra.mxu0 0.0
    %3508 = vmatprep.subr.mxu0 0.0
    %3509 = vmatpush1.msra.mxu0 0.0
    %3510 = vmatprep.subr.mxu0 0.0
    %3511 = vmatpush1.msra.mxu0 0.0
    %3512 = vmatprep.subr.mxu0 0.0
    %3513 = vmatpush1.msra.mxu0 0.0
    %3514 = vmatprep.subr.mxu0 0.0
    %3515 = vmatpush1.msra.mxu0 0.0
    %3516 = vmatprep.subr.mxu0 0.0
    %3517 = vmatpush1.msra.mxu0 0.0
    %3518 = vmatprep.subr.mxu0 0.0
    %3519 = vmatpush1.msra.mxu0 0.0
    %3520 = vmatprep.subr.mxu0 0.0
    %3521 = vmatpush1.msra.mxu0 0.0
    %3522 = vmatprep.subr.mxu0 0.0
    %3523 = vmatpush1.msra.mxu0 0.0
    %3524 = vmatprep.subr.mxu0 0.0
    %3525 = vmatpush1.msra.mxu0 0.0
    %3526 = vmatprep.subr.mxu0 0.0
    %3527 = vmatpush1.msra.mxu0 %v3491
    %3528 = vmatprep.subr.mxu0 0.0
    %3529 = vmatpush1.msra.mxu0 %v3490
    %3530 = vmatprep.subr.mxu0 0.0
    %3531 = vmatpush1.msra.mxu0 %v3489
    %3532 = vmatprep.subr.mxu0 0.0
    %3533 = vmatpush1.msra.mxu0 %v3488
    %3534 = vmatprep.subr.mxu0 0.0
    %3535 = vmatpush2.msra.mxu0 0.0
    %3536 = vmatprep.subr.mxu0 0.0
    %3537 = vmatpush2.msra.mxu0 0.0
    %3538 = vmatprep.subr.mxu0 0.0
    %3539 = vmatpush2.msra.mxu0 0.0
    %3540 = vmatprep.subr.mxu0 0.0
    %3541 = vmatpush2.msra.mxu0 0.0
    %3542 = vmatprep.subr.mxu0 0.0
    %3543 = vmatpush2.msra.mxu0 0.0
    %3544 = vmatprep.subr.mxu0 0.0
    %3545 = vmatpush2.msra.mxu0 0.0
    %3546 = vmatprep.subr.mxu0 0.0
    %3547 = vmatpush2.msra.mxu0 0.0
    %3548 = vmatprep.subr.mxu0 0.0
    %3549 = vmatpush2.msra.mxu0 0.0
    %3550 = vmatprep.subr.mxu0 0.0
    %3551 = vmatpush2.msra.mxu0 0.0
    %3552 = vmatprep.subr.mxu0 0.0
    %3553 = vmatpush2.msra.mxu0 0.0
    %3554 = vmatprep.subr.mxu0 0.0
    %3555 = vmatpush2.msra.mxu0 0.0
    %3556 = vmatprep.subr.mxu0 0.0
    %3557 = vmatpush2.msra.mxu0 0.0
    %3558 = vmatprep.subr.mxu0 0.0
    %3559 = vmatpush2.msra.mxu0 0.0
    %3560 = vmatprep.subr.mxu0 0.0
    %3561 = vmatpush2.msra.mxu0 0.0
    %3562 = vmatprep.subr.mxu0 0.0
    %3563 = vmatpush2.msra.mxu0 0.0
    %3564 = vmatprep.subr.mxu0 0.0
    %3565 = vmatpush2.msra.mxu0 0.0
    %3566 = vmatprep.mubr.f32.mxu0 0.0
    %3567 = vmatmul.mubr.f32.gmra.mxu0 %v3500
    %v3568 = vpop.f32.mrf.mxu0
    %v3569 = vadd.f32 %v3497, %v3568
    %v3570 = vpop.f32.mrf.mxu0
    %3571 = vdwg.mxu0
    %v3572 = vld [vmem:[%s13] sm:$0xf]
    %v3573 = vlaneseq
    %v3574 = vshrl.u32 %v3573, 7
    %v3575 = vsub.s32 2, %v3574
    %v3576 = vrot.slane %v3572, %v3575
    %v3577 = vsub.f32 %v3569, %v3576
    %v3578 = vadd.f32 %v3572, 1e-05
    %v3579 = vrsqrt.pop %v3578
    %v3580 = vlaneseq
    %v3581 = vshrl.u32 %v3580, 7
    %v3582 = vsub.s32 3, %v3581
    %v3583 = vrot.slane %v3579, %v3582
    %v3584 = vmul.f32 %v3577, %v3583
    %v3585 = vlaneseq
    %v3586 = vshrl.u32 %v3585, 7
    %v3587 = vsub.s32 0, %v3586
    %v3588 = vrot.slane %v3572, %v3587
    %v3589 = vmul.f32 %v3584, %v3588
    %v3590 = vlaneseq
    %v3591 = vshrl.u32 %v3590, 7
    %v3592 = vsub.s32 1, %v3591
    %v3593 = vrot.slane %v3572, %v3592
    %v3594 = vadd.f32 %v3589, %v3593
    %v3595 = vmax.f32 %v3594, 0.0
    %v3596 = vld [vmem:[%s14] sm:$0xff]
    %v3597 = vld [vmem:[%s14 + $0x8] sm:$0xff]
    %v3598 = vld [vmem:[%s14 + $0x10] sm:$0xff]
    %v3599 = vld [vmem:[%s14 + $0x18] sm:$0xff]
    %v3600 = vld [vmem:[%s15] sm:$0x1]
    %v3602 = vlaneseq
    %v3603 = vshrl.u32 %v3602, 7
    %v3604 = vsub.s32 0, %v3603
    %v3605 = vrot.slane %v3600, %v3604
    %v3608 = vsel %vm1867, %v3595, 0
    %3610 = vmatprep.subr.mxu0 0.0
    %3611 = vmatpush1.msra.mxu0 0.0
    %3612 = vmatprep.subr.mxu0 0.0
    %3613 = vmatpush1.msra.mxu0 0.0
    %3614 = vmatprep.subr.mxu0 0.0
    %3615 = vmatpush1.msra.mxu0 0.0
    %3616 = vmatprep.subr.mxu0 0.0
    %3617 = vmatpush1.msra.mxu0 0.0
    %3618 = vmatprep.subr.mxu0 0.0
    %3619 = vmatpush1.msra.mxu0 0.0
    %3620 = vmatprep.subr.mxu0 0.0
    %3621 = vmatpush1.msra.mxu0 0.0
    %3622 = vmatprep.subr.mxu0 0.0
    %3623 = vmatpush1.msra.mxu0 0.0
    %3624 = vmatprep.subr.mxu0 0.0
    %3625 = vmatpush1.msra.mxu0 0.0
    %3626 = vmatprep.subr.mxu0 0.0
    %3627 = vmatpush1.msra.mxu0 0.0
    %3628 = vmatprep.subr.mxu0 0.0
    %3629 = vmatpush1.msra.mxu0 0.0
    %3630 = vmatprep.subr.mxu0 0.0
    %3631 = vmatpush1.msra.mxu0 0.0
    %3632 = vmatprep.subr.mxu0 0.0
    %3633 = vmatpush1.msra.mxu0 0.0
    %3634 = vmatprep.subr.mxu0 0.0
    %3635 = vmatpush1.msra.mxu0 %v3599
    %3636 = vmatprep.subr.mxu0 0.0
    %3637 = vmatpush1.msra.mxu0 %v3598
    %3638 = vmatprep.subr.mxu0 0.0
    %3639 = vmatpush1.msra.mxu0 %v3597
    %3640 = vmatprep.subr.mxu0 0.0
    %3641 = vmatpush1.msra.mxu0 %v3596
    %3642 = vmatprep.subr.mxu0 0.0
    %3643 = vmatpush2.msra.mxu0 0.0
    %3644 = vmatprep.subr.mxu0 0.0
    %3645 = vmatpush2.msra.mxu0 0.0
    %3646 = vmatprep.subr.mxu0 0.0
    %3647 = vmatpush2.msra.mxu0 0.0
    %3648 = vmatprep.subr.mxu0 0.0
    %3649 = vmatpush2.msra.mxu0 0.0
    %3650 = vmatprep.subr.mxu0 0.0
    %3651 = vmatpush2.msra.mxu0 0.0
    %3652 = vmatprep.subr.mxu0 0.0
    %3653 = vmatpush2.msra.mxu0 0.0
    %3654 = vmatprep.subr.mxu0 0.0
    %3655 = vmatpush2.msra.mxu0 0.0
    %3656 = vmatprep.subr.mxu0 0.0
    %3657 = vmatpush2.msra.mxu0 0.0
    %3658 = vmatprep.subr.mxu0 0.0
    %3659 = vmatpush2.msra.mxu0 0.0
    %3660 = vmatprep.subr.mxu0 0.0
    %3661 = vmatpush2.msra.mxu0 0.0
    %3662 = vmatprep.subr.mxu0 0.0
    %3663 = vmatpush2.msra.mxu0 0.0
    %3664 = vmatprep.subr.mxu0 0.0
    %3665 = vmatpush2.msra.mxu0 0.0
    %3666 = vmatprep.subr.mxu0 0.0
    %3667 = vmatpush2.msra.mxu0 0.0
    %3668 = vmatprep.subr.mxu0 0.0
    %3669 = vmatpush2.msra.mxu0 0.0
    %3670 = vmatprep.subr.mxu0 0.0
    %3671 = vmatpush2.msra.mxu0 0.0
    %3672 = vmatprep.subr.mxu0 0.0
    %3673 = vmatpush2.msra.mxu0 0.0
    %3674 = vmatprep.mubr.f32.mxu0 0.0
    %3675 = vmatmul.mubr.f32.gmra.mxu0 %v3608
    %v3676 = vpop.f32.mrf.mxu0
    %v3677 = vadd.f32 %v3605, %v3676
    %v3678 = vpop.f32.mrf.mxu0
    %3679 = vdwg.mxu0
    %3680 = vst.msk [vmem:[#allocation19] sm:$0xf] %vm2044, %v3677
    // Predicated region
    $region106: #{tpu_custom_call.1} parent=1 // pred_check
      _
    $region107: #{tpu_custom_call.1} parent=1 // pred_check_branch
      %3682 = sbr.rel (0) target = $region109
    $region108: #{tpu_custom_call.1} parent=1 // pred_region
      %s3684 = ssub.s32 64, 64
      %3685 = vsyncadd [#allocation4], %s3684
      %s3687 = sshll.u32 [#allocation19], 4
      %s3688 = int_to_ptr.vmem [resolvable:$true] %s3687
      %3690 = dma.vmem_to_hbm [thread:$0]  %s3688, 64, %s16, [#allocation4]
    $region109: #{tpu_custom_call.1} parent=1 // pred_fallthru
      _
    // Predicated region
    $region110: #{tpu_custom_call.1} parent=1 // pred_check
      _
    $region111: #{tpu_custom_call.1} parent=1 // pred_check_branch
      %3692 = sbr.rel (0) target = $region113
    $region112: #{tpu_custom_call.1} parent=1 // pred_region
      %3693 = dma.done [#allocation4], 64
    $region113: #{tpu_custom_call.1} parent=1 // pred_fallthru
      _
    %3694 = vsyncpa [#allocation3], 1
    %3695 = vsyncpa [#allocation6], 1
    %3696 = vsyncpa [#allocation9], 1
    %3697 = vsyncpa [#allocation12], 1
    %3698 = vsyncpa [#allocation15], 1
    %3699 = vsyncpa [#allocation18], 1
    %3700 = vsyncpa [#allocation4], 1

</llo_original>
